<compile_context>
chip_gen: v5e
topology: v5e:2x2
jax: 0.10.0
libtpu: 0.0.40
codegen_flags: <defaults>
</compile_context>

<pallas_src>
import jax
import jax.numpy as jnp
from jax.experimental import pallas as pl
from jax.experimental.pallas import tpu as pltpu

_PAD = 8  # left padding of the staging buffers; 8 keeps the interior store
          # sublane-aligned for f32 (tile = (8, 128)).


def _zero_halo(buf, H, W):
    """Zero the halo of a (H+2, W+2*_PAD, C) staging buffer (aligned stores only)."""
    C = buf.shape[2]
    strip = jnp.zeros((H + 2, _PAD, C), jnp.float32)
    buf[:, 0:_PAD, :] = strip                            # left strip (incl. col _PAD-1)
    buf[:, _PAD + W:_PAD + W + _PAD, :] = strip          # right strip (incl. col _PAD+W)
    row = jnp.zeros((W, C), jnp.float32)
    buf[0, _PAD:_PAD + W, :] = row                       # top halo row
    buf[H + 1, _PAD:_PAD + W, :] = row                   # bottom halo row


def _conv3x3_im2col(buf, w_ref, H, W):
    """3x3 conv (stride 1, pad 1) from a zero-padded staging buffer.

    buf   : (H+2, W+2*_PAD, C) VMEM scratch, image interior at [1:H+1, _PAD:_PAD+W]
    w_ref : (9*C, Cout) weights, rows ordered (dy, dx, c) to match the tap order
    returns (H*W, Cout) float32
    """
    taps = []
    for dy in range(3):
        for dx in range(3):
            taps.append(buf[dy:dy + H, _PAD - 1 + dx:_PAD - 1 + dx + W, :])
    patches = jnp.concatenate(taps, axis=2)              # (H, W, 9*C)
    patches = patches.reshape(H * W, patches.shape[2])   # (H*W, 9*C); W%8==0 -> view
    return jnp.dot(patches, w_ref[...], preferred_element_type=jnp.float32)


def _basic_block_kernel(x_ref, w1_ref, b1_ref, w2_ref, b2_ref, o_ref,
                        xpad, midpad):
    """One batch element per grid step (fused im2col variant).

    x_ref  : (1, H, W, Cin)
    w1_ref : (9*Cin, Cout)    conv1 weights with BN1 scale folded in
    b1_ref : (1, Cout)        folded BN1 bias
    w2_ref : (9*Cout, Cout)   conv2 weights with BN2 scale folded in
    b2_ref : (1, Cout)        folded BN2 bias
    o_ref  : (1, H*W, Cout)
    xpad   : (H+2, W+2*_PAD, Cin)  VMEM staging buffer for conv1 input
    midpad : (H+2, W+2*_PAD, Cout) VMEM staging buffer for conv2 input
    """
    H, W = x_ref.shape[1], x_ref.shape[2]
    Cin = x_ref.shape[3]

    x = x_ref[0].astype(jnp.float32)                     # (H, W, Cin)

    # ---- conv1 + bn1 (scale folded into w1) + relu ----
    _zero_halo(xpad, H, W)
    xpad[1:H + 1, _PAD:_PAD + W, :] = x                  # aligned interior store
    out1 = _conv3x3_im2col(xpad, w1_ref, H, W) + b1_ref[0]
    out1 = jnp.maximum(out1, 0.0)                        # (H*W, Cout)

    # ---- conv2 + bn2 ----
    Cout = out1.shape[1]
    _zero_halo(midpad, H, W)
    midpad[1:H + 1, _PAD:_PAD + W, :] = out1.reshape(H, W, Cout)
    out2 = _conv3x3_im2col(midpad, w2_ref, H, W) + b2_ref[0]

    # ---- residual (identity, no downsample) + relu ----
    out2 = out2 + x.reshape(H * W, Cin)
    o_ref[0] = jnp.maximum(out2, 0.0).astype(o_ref.dtype)


def _fold_bn_into_conv(w_hwio, gamma, beta, mean, var, eps):
    """Fold inference BN into the conv: w' = w * s (per Cout), b' = beta - mean*s."""
    scale = gamma / jnp.sqrt(var + eps)
    w_folded = (w_hwio * scale[None, None, None, :]).astype(jnp.float32)
    bias = (beta - mean * scale).reshape(1, -1).astype(jnp.float32)
    return w_folded, bias


def basic_block_forward(x_nhwc, w1, g1, be1, rm1, rv1, w2, g2, be2, rm2, rv2,
                        eps=1e-5):
    """x_nhwc: (N, H, W, Cin) f32, conv weights in HWIO. Returns (N, H, W, Cout)."""
    N, H, W, Cin = x_nhwc.shape
    Cout = w1.shape[-1]
    assert Cin == Cout, "BasicBlock with downsample=None requires inplanes == planes"

    w1f, b1 = _fold_bn_into_conv(w1, g1, be1, rm1, rv1, eps)
    w2f, b2 = _fold_bn_into_conv(w2, g2, be2, rm2, rv2, eps)

    # (3, 3, C, Cout) -> (9*C, Cout); row order (dy, dx, c) matches kernel taps.
    w1m = w1f.reshape(9 * Cin, Cout)
    w2m = w2f.reshape(9 * Cout, Cout)

    pw = W + 2 * _PAD
    out = pl.pallas_call(
        _basic_block_kernel,
        out_shape=jax.ShapeDtypeStruct((N, H * W, Cout), x_nhwc.dtype),
        grid_spec=pltpu.PrefetchScalarGridSpec(
            num_scalar_prefetch=0,
            grid=(N,),
            in_specs=[
                pl.BlockSpec((1, H, W, Cin), lambda n: (n, 0, 0, 0)),
                pl.BlockSpec((9 * Cin, Cout), lambda n: (0, 0)),
                pl.BlockSpec((1, Cout), lambda n: (0, 0)),
                pl.BlockSpec((9 * Cout, Cout), lambda n: (0, 0)),
                pl.BlockSpec((1, Cout), lambda n: (0, 0)),
            ],
            out_specs=pl.BlockSpec((1, H * W, Cout), lambda n: (n, 0, 0)),
            scratch_shapes=[pltpu.VMEM((H + 2, pw, Cin), jnp.float32),
                            pltpu.VMEM((H + 2, pw, Cout), jnp.float32)],
        ),
        compiler_params=pltpu.CompilerParams(
            dimension_semantics=("parallel",)),
    )(x_nhwc, w1m, b1, w2m, b2)
    return out.reshape(N, H, W, Cout)


def _reference_forward(x_nhwc, w1, g1, be1, rm1, rv1, w2, g2, be2, rm2, rv2,
                       eps=1e-5):
    """Pure-JAX reference (NHWC / HWIO convs) for correctness checking."""
    dn = jax.lax.conv_dimension_numbers(x_nhwc.shape, w1.shape,
                                        ("NHWC", "HWIO", "NHWC"))

    def bn(y, g, b, m, v):
        return (y - m) / jnp.sqrt(v + eps) * g + b

    out = jax.lax.conv_general_dilated(x_nhwc, w1, (1, 1), ((1, 1), (1, 1)),
                                       dimension_numbers=dn)
    out = jnp.maximum(bn(out, g1, be1, rm1, rv1), 0.0)
    out = jax.lax.conv_general_dilated(out, w2, (1, 1), ((1, 1), (1, 1)),
                                       dimension_numbers=dn)
    out = bn(out, g2, be2, rm2, rv2)
    return jnp.maximum(out + x_nhwc, 0.0)


if __name__ == "__main__":
    # Shapes consistent with BasicBlock(inplanes=4, planes=4, stride=1).
    N, C, H, W = 2, 4, 16, 16
    key = jax.random.PRNGKey(0)
    keys = jax.random.split(key, 12)

    x_nchw = jax.random.normal(keys[0], (N, C, H, W), dtype=jnp.float32)

    # Conv weights: PyTorch OIHW (Cout, Cin, 3, 3) -> HWIO for the kernel.
    w1_oihw = jax.random.normal(keys[1], (C, C, 3, 3), dtype=jnp.float32) * 0.1
    w2_oihw = jax.random.normal(keys[2], (C, C, 3, 3), dtype=jnp.float32) * 0.1
    w1 = jnp.transpose(w1_oihw, (2, 3, 1, 0))
    w2 = jnp.transpose(w2_oihw, (2, 3, 1, 0))

    g1 = 1.0 + 0.1 * jax.random.normal(keys[3], (C,), dtype=jnp.float32)
    be1 = 0.1 * jax.random.normal(keys[4], (C,), dtype=jnp.float32)
    rm1 = 0.1 * jax.random.normal(keys[7], (C,), dtype=jnp.float32)
    rv1 = 0.5 + jax.random.uniform(keys[8], (C,), dtype=jnp.float32)

    g2 = 1.0 + 0.1 * jax.random.normal(keys[5], (C,), dtype=jnp.float32)
    be2 = 0.1 * jax.random.normal(keys[6], (C,), dtype=jnp.float32)
    rm2 = 0.1 * jax.random.normal(keys[9], (C,), dtype=jnp.float32)
    rv2 = 0.5 + jax.random.uniform(keys[10], (C,), dtype=jnp.float32)

    # NCHW (PyTorch) -> NHWC (kernel layout).
    x_nhwc = jnp.transpose(x_nchw, (0, 2, 3, 1))

    out_nhwc = basic_block_forward(x_nhwc, w1, g1, be1, rm1, rv1,
                                   w2, g2, be2, rm2, rv2)
    out_nhwc = jax.block_until_ready(out_nhwc)
    out_nchw = jnp.transpose(out_nhwc, (0, 3, 1, 2))

    ref_nhwc = _reference_forward(x_nhwc, w1, g1, be1, rm1, rv1,
                                  w2, g2, be2, rm2, rv2)
    assert out_nchw.shape == (N, C, H, W)
    assert jnp.allclose(out_nhwc, ref_nhwc, atol=2e-4, rtol=2e-4), \
        "Pallas BasicBlock output mismatch vs JAX reference"

    print("KERNEL_OK")
</pallas_src>

<mosaic_0001>
module attributes {stable_mosaic.version = 11 : i64} {
  func.func @_basic_block_kernel(%arg0: i32, %arg1: memref<1x16x16x4xf32, #tpu.memory_space<vmem>>, %arg2: memref<36x4xf32, #tpu.memory_space<vmem>>, %arg3: memref<1x4xf32, #tpu.memory_space<vmem>>, %arg4: memref<36x4xf32, #tpu.memory_space<vmem>>, %arg5: memref<1x4xf32, #tpu.memory_space<vmem>>, %arg6: memref<1x256x4xf32, #tpu.memory_space<vmem>>, %arg7: memref<18x32x4xf32, #tpu.memory_space<vmem>>, %arg8: memref<18x32x4xf32, #tpu.memory_space<vmem>>) attributes {dimension_semantics = [#tpu.dimension_semantics<parallel>], iteration_bounds = array<i64: 2>, scalar_prefetch = 0 : i64, scratch_operands = 2 : i64, tpu.core_type = #tpu.core_type<tc>, window_params = [{transform_indices = @transform_0, window_bounds = array<i64: 1, 16, 16, 4>}, {pipeline_mode = #tpu.pipeline_mode<synchronous>, transform_indices = @transform_1, window_bounds = array<i64: 36, 4>}, {pipeline_mode = #tpu.pipeline_mode<synchronous>, transform_indices = @transform_2, window_bounds = array<i64: 1, 4>}, {pipeline_mode = #tpu.pipeline_mode<synchronous>, transform_indices = @transform_3, window_bounds = array<i64: 36, 4>}, {pipeline_mode = #tpu.pipeline_mode<synchronous>, transform_indices = @transform_4, window_bounds = array<i64: 1, 4>}, {transform_indices = @transform_5, window_bounds = array<i64: 1, 256, 4>}]} {
    %c0 = arith.constant 0 : index
    %c0_0 = arith.constant 0 : index
    %c0_1 = arith.constant 0 : index
    %c0_2 = arith.constant 0 : index
    %0 = vector.load %arg1[%c0, %c0_0, %c0_1, %c0_2] : memref<1x16x16x4xf32, #tpu.memory_space<vmem>>, vector<1x16x16x4xf32>
    %1 = vector.shape_cast %0 : vector<1x16x16x4xf32> to vector<16x16x4xf32>
    %cst = arith.constant 0.000000e+00 : f32
    %2 = vector.broadcast %cst : f32 to vector<18x8x4xf32>
    %c0_3 = arith.constant 0 : index
    %c0_4 = arith.constant 0 : index
    %c0_5 = arith.constant 0 : index
    %3 = vector.load %arg7[%c0_3, %c0_4, %c0_5] : memref<18x32x4xf32, #tpu.memory_space<vmem>>, vector<18x8x4xf32>
    tpu.vector_store %arg7[%c0_3, %c0_4, %c0_5], %2 {strides = array<i32>} : memref<18x32x4xf32, #tpu.memory_space<vmem>>, vector<18x8x4xf32>,
    %c0_6 = arith.constant 0 : index
    %c24 = arith.constant 24 : index
    %c0_7 = arith.constant 0 : index
    %4 = vector.load %arg7[%c0_6, %c24, %c0_7] : memref<18x32x4xf32, #tpu.memory_space<vmem>>, vector<18x8x4xf32>
    tpu.vector_store %arg7[%c0_6, %c24, %c0_7], %2 {strides = array<i32>} : memref<18x32x4xf32, #tpu.memory_space<vmem>>, vector<18x8x4xf32>,
    %cst_8 = arith.constant 0.000000e+00 : f32
    %5 = vector.broadcast %cst_8 : f32 to vector<16x4xf32>
    %c0_9 = arith.constant 0 : index
    %c8 = arith.constant 8 : index
    %c0_10 = arith.constant 0 : index
    %6 = vector.load %arg7[%c0_9, %c8, %c0_10] : memref<18x32x4xf32, #tpu.memory_space<vmem>>, vector<1x16x4xf32>
    %7 = vector.shape_cast %6 : vector<1x16x4xf32> to vector<16x4xf32>
    %8 = vector.shape_cast %5 : vector<16x4xf32> to vector<1x16x4xf32>
    tpu.vector_store %arg7[%c0_9, %c8, %c0_10], %8 {strides = array<i32>} : memref<18x32x4xf32, #tpu.memory_space<vmem>>, vector<1x16x4xf32>,
    %c17 = arith.constant 17 : index
    %c8_11 = arith.constant 8 : index
    %c0_12 = arith.constant 0 : index
    %9 = vector.load %arg7[%c17, %c8_11, %c0_12] : memref<18x32x4xf32, #tpu.memory_space<vmem>>, vector<1x16x4xf32>
    %10 = vector.shape_cast %9 : vector<1x16x4xf32> to vector<16x4xf32>
    %11 = vector.shape_cast %5 : vector<16x4xf32> to vector<1x16x4xf32>
    tpu.vector_store %arg7[%c17, %c8_11, %c0_12], %11 {strides = array<i32>} : memref<18x32x4xf32, #tpu.memory_space<vmem>>, vector<1x16x4xf32>,
    %c1 = arith.constant 1 : index
    %c8_13 = arith.constant 8 : index
    %c0_14 = arith.constant 0 : index
    %12 = vector.load %arg7[%c1, %c8_13, %c0_14] : memref<18x32x4xf32, #tpu.memory_space<vmem>>, vector<16x16x4xf32>
    tpu.vector_store %arg7[%c1, %c8_13, %c0_14], %1 {strides = array<i32>} : memref<18x32x4xf32, #tpu.memory_space<vmem>>, vector<16x16x4xf32>,
    %c0_15 = arith.constant 0 : index
    %c7 = arith.constant 7 : index
    %c0_16 = arith.constant 0 : index
    %13 = vector.load %arg7[%c0_15, %c7, %c0_16] : memref<18x32x4xf32, #tpu.memory_space<vmem>>, vector<16x16x4xf32>
    %c0_17 = arith.constant 0 : index
    %c8_18 = arith.constant 8 : index
    %c0_19 = arith.constant 0 : index
    %14 = vector.load %arg7[%c0_17, %c8_18, %c0_19] : memref<18x32x4xf32, #tpu.memory_space<vmem>>, vector<16x16x4xf32>
    %c0_20 = arith.constant 0 : index
    %c9 = arith.constant 9 : index
    %c0_21 = arith.constant 0 : index
    %15 = vector.load %arg7[%c0_20, %c9, %c0_21] : memref<18x32x4xf32, #tpu.memory_space<vmem>>, vector<16x16x4xf32>
    %c1_22 = arith.constant 1 : index
    %c7_23 = arith.constant 7 : index
    %c0_24 = arith.constant 0 : index
    %16 = vector.load %arg7[%c1_22, %c7_23, %c0_24] : memref<18x32x4xf32, #tpu.memory_space<vmem>>, vector<16x16x4xf32>
    %c1_25 = arith.constant 1 : index
    %c8_26 = arith.constant 8 : index
    %c0_27 = arith.constant 0 : index
    %17 = vector.load %arg7[%c1_25, %c8_26, %c0_27] : memref<18x32x4xf32, #tpu.memory_space<vmem>>, vector<16x16x4xf32>
    %c1_28 = arith.constant 1 : index
    %c9_29 = arith.constant 9 : index
    %c0_30 = arith.constant 0 : index
    %18 = vector.load %arg7[%c1_28, %c9_29, %c0_30] : memref<18x32x4xf32, #tpu.memory_space<vmem>>, vector<16x16x4xf32>
    %c2 = arith.constant 2 : index
    %c7_31 = arith.constant 7 : index
    %c0_32 = arith.constant 0 : index
    %19 = vector.load %arg7[%c2, %c7_31, %c0_32] : memref<18x32x4xf32, #tpu.memory_space<vmem>>, vector<16x16x4xf32>
    %c2_33 = arith.constant 2 : index
    %c8_34 = arith.constant 8 : index
    %c0_35 = arith.constant 0 : index
    %20 = vector.load %arg7[%c2_33, %c8_34, %c0_35] : memref<18x32x4xf32, #tpu.memory_space<vmem>>, vector<16x16x4xf32>
    %c2_36 = arith.constant 2 : index
    %c9_37 = arith.constant 9 : index
    %c0_38 = arith.constant 0 : index
    %21 = vector.load %arg7[%c2_36, %c9_37, %c0_38] : memref<18x32x4xf32, #tpu.memory_space<vmem>>, vector<16x16x4xf32>
    %22 = tpu.concatenate %13, %14, %15, %16, %17, %18, %19, %20, %21 in 2 : vector<16x16x4xf32>, vector<16x16x4xf32>, vector<16x16x4xf32>, vector<16x16x4xf32>, vector<16x16x4xf32>, vector<16x16x4xf32>, vector<16x16x4xf32>, vector<16x16x4xf32>, vector<16x16x4xf32> -> vector<16x16x36xf32>
    %23 = vector.shape_cast %22 : vector<16x16x36xf32> to vector<256x36xf32>
    %c0_39 = arith.constant 0 : index
    %c0_40 = arith.constant 0 : index
    %24 = vector.load %arg2[%c0_39, %c0_40] : memref<36x4xf32, #tpu.memory_space<vmem>>, vector<36x4xf32>
    %cst_41 = arith.constant dense<0.000000e+00> : vector<256x4xf32>
    %25 = tpu.matmul %23, %24, %cst_41 {dimension_numbers = #tpu.dot_dimension_numbers<[1], [0], [0], [1], [0, 0, 1, 1], [], []>} : vector<256x36xf32>, vector<36x4xf32>, vector<256x4xf32> -> vector<256x4xf32>
    %c0_42 = arith.constant 0 : index
    %c0_43 = arith.constant 0 : index
    %26 = vector.load %arg3[%c0_42, %c0_43] : memref<1x4xf32, #tpu.memory_space<vmem>>, vector<1x4xf32>
    %27 = vector.shape_cast %26 : vector<1x4xf32> to vector<4xf32>
    %28 = vector.shape_cast %27 : vector<4xf32> to vector<1x4xf32>
    %29 = vector.broadcast %28 : vector<1x4xf32> to vector<256x4xf32>
    %30 = arith.addf %25, %29 : vector<256x4xf32>
    %cst_44 = arith.constant 0.000000e+00 : f32
    %31 = vector.broadcast %cst_44 : f32 to vector<256x4xf32>
    %32 = arith.maximumf %30, %31 : vector<256x4xf32>
    %cst_45 = arith.constant 0.000000e+00 : f32
    %33 = vector.broadcast %cst_45 : f32 to vector<18x8x4xf32>
    %c0_46 = arith.constant 0 : index
    %c0_47 = arith.constant 0 : index
    %c0_48 = arith.constant 0 : index
    %34 = vector.load %arg8[%c0_46, %c0_47, %c0_48] : memref<18x32x4xf32, #tpu.memory_space<vmem>>, vector<18x8x4xf32>
    tpu.vector_store %arg8[%c0_46, %c0_47, %c0_48], %33 {strides = array<i32>} : memref<18x32x4xf32, #tpu.memory_space<vmem>>, vector<18x8x4xf32>,
    %c0_49 = arith.constant 0 : index
    %c24_50 = arith.constant 24 : index
    %c0_51 = arith.constant 0 : index
    %35 = vector.load %arg8[%c0_49, %c24_50, %c0_51] : memref<18x32x4xf32, #tpu.memory_space<vmem>>, vector<18x8x4xf32>
    tpu.vector_store %arg8[%c0_49, %c24_50, %c0_51], %33 {strides = array<i32>} : memref<18x32x4xf32, #tpu.memory_space<vmem>>, vector<18x8x4xf32>,
    %cst_52 = arith.constant 0.000000e+00 : f32
    %36 = vector.broadcast %cst_52 : f32 to vector<16x4xf32>
    %c0_53 = arith.constant 0 : index
    %c8_54 = arith.constant 8 : index
    %c0_55 = arith.constant 0 : index
    %37 = vector.load %arg8[%c0_53, %c8_54, %c0_55] : memref<18x32x4xf32, #tpu.memory_space<vmem>>, vector<1x16x4xf32>
    %38 = vector.shape_cast %37 : vector<1x16x4xf32> to vector<16x4xf32>
    %39 = vector.shape_cast %36 : vector<16x4xf32> to vector<1x16x4xf32>
    tpu.vector_store %arg8[%c0_53, %c8_54, %c0_55], %39 {strides = array<i32>} : memref<18x32x4xf32, #tpu.memory_space<vmem>>, vector<1x16x4xf32>,
    %c17_56 = arith.constant 17 : index
    %c8_57 = arith.constant 8 : index
    %c0_58 = arith.constant 0 : index
    %40 = vector.load %arg8[%c17_56, %c8_57, %c0_58] : memref<18x32x4xf32, #tpu.memory_space<vmem>>, vector<1x16x4xf32>
    %41 = vector.shape_cast %40 : vector<1x16x4xf32> to vector<16x4xf32>
    %42 = vector.shape_cast %36 : vector<16x4xf32> to vector<1x16x4xf32>
    tpu.vector_store %arg8[%c17_56, %c8_57, %c0_58], %42 {strides = array<i32>} : memref<18x32x4xf32, #tpu.memory_space<vmem>>, vector<1x16x4xf32>,
    %43 = vector.shape_cast %32 : vector<256x4xf32> to vector<16x16x4xf32>
    %c1_59 = arith.constant 1 : index
    %c8_60 = arith.constant 8 : index
    %c0_61 = arith.constant 0 : index
    %44 = vector.load %arg8[%c1_59, %c8_60, %c0_61] : memref<18x32x4xf32, #tpu.memory_space<vmem>>, vector<16x16x4xf32>
    tpu.vector_store %arg8[%c1_59, %c8_60, %c0_61], %43 {strides = array<i32>} : memref<18x32x4xf32, #tpu.memory_space<vmem>>, vector<16x16x4xf32>,
    %c0_62 = arith.constant 0 : index
    %c7_63 = arith.constant 7 : index
    %c0_64 = arith.constant 0 : index
    %45 = vector.load %arg8[%c0_62, %c7_63, %c0_64] : memref<18x32x4xf32, #tpu.memory_space<vmem>>, vector<16x16x4xf32>
    %c0_65 = arith.constant 0 : index
    %c8_66 = arith.constant 8 : index
    %c0_67 = arith.constant 0 : index
    %46 = vector.load %arg8[%c0_65, %c8_66, %c0_67] : memref<18x32x4xf32, #tpu.memory_space<vmem>>, vector<16x16x4xf32>
    %c0_68 = arith.constant 0 : index
    %c9_69 = arith.constant 9 : index
    %c0_70 = arith.constant 0 : index
    %47 = vector.load %arg8[%c0_68, %c9_69, %c0_70] : memref<18x32x4xf32, #tpu.memory_space<vmem>>, vector<16x16x4xf32>
    %c1_71 = arith.constant 1 : index
    %c7_72 = arith.constant 7 : index
    %c0_73 = arith.constant 0 : index
    %48 = vector.load %arg8[%c1_71, %c7_72, %c0_73] : memref<18x32x4xf32, #tpu.memory_space<vmem>>, vector<16x16x4xf32>
    %c1_74 = arith.constant 1 : index
    %c8_75 = arith.constant 8 : index
    %c0_76 = arith.constant 0 : index
    %49 = vector.load %arg8[%c1_74, %c8_75, %c0_76] : memref<18x32x4xf32, #tpu.memory_space<vmem>>, vector<16x16x4xf32>
    %c1_77 = arith.constant 1 : index
    %c9_78 = arith.constant 9 : index
    %c0_79 = arith.constant 0 : index
    %50 = vector.load %arg8[%c1_77, %c9_78, %c0_79] : memref<18x32x4xf32, #tpu.memory_space<vmem>>, vector<16x16x4xf32>
    %c2_80 = arith.constant 2 : index
    %c7_81 = arith.constant 7 : index
    %c0_82 = arith.constant 0 : index
    %51 = vector.load %arg8[%c2_80, %c7_81, %c0_82] : memref<18x32x4xf32, #tpu.memory_space<vmem>>, vector<16x16x4xf32>
    %c2_83 = arith.constant 2 : index
    %c8_84 = arith.constant 8 : index
    %c0_85 = arith.constant 0 : index
    %52 = vector.load %arg8[%c2_83, %c8_84, %c0_85] : memref<18x32x4xf32, #tpu.memory_space<vmem>>, vector<16x16x4xf32>
    %c2_86 = arith.constant 2 : index
    %c9_87 = arith.constant 9 : index
    %c0_88 = arith.constant 0 : index
    %53 = vector.load %arg8[%c2_86, %c9_87, %c0_88] : memref<18x32x4xf32, #tpu.memory_space<vmem>>, vector<16x16x4xf32>
    %54 = tpu.concatenate %45, %46, %47, %48, %49, %50, %51, %52, %53 in 2 : vector<16x16x4xf32>, vector<16x16x4xf32>, vector<16x16x4xf32>, vector<16x16x4xf32>, vector<16x16x4xf32>, vector<16x16x4xf32>, vector<16x16x4xf32>, vector<16x16x4xf32>, vector<16x16x4xf32> -> vector<16x16x36xf32>
    %55 = vector.shape_cast %54 : vector<16x16x36xf32> to vector<256x36xf32>
    %c0_89 = arith.constant 0 : index
    %c0_90 = arith.constant 0 : index
    %56 = vector.load %arg4[%c0_89, %c0_90] : memref<36x4xf32, #tpu.memory_space<vmem>>, vector<36x4xf32>
    %cst_91 = arith.constant dense<0.000000e+00> : vector<256x4xf32>
    %57 = tpu.matmul %55, %56, %cst_91 {dimension_numbers = #tpu.dot_dimension_numbers<[1], [0], [0], [1], [0, 0, 1, 1], [], []>} : vector<256x36xf32>, vector<36x4xf32>, vector<256x4xf32> -> vector<256x4xf32>
    %c0_92 = arith.constant 0 : index
    %c0_93 = arith.constant 0 : index
    %58 = vector.load %arg5[%c0_92, %c0_93] : memref<1x4xf32, #tpu.memory_space<vmem>>, vector<1x4xf32>
    %59 = vector.shape_cast %58 : vector<1x4xf32> to vector<4xf32>
    %60 = vector.shape_cast %59 : vector<4xf32> to vector<1x4xf32>
    %61 = vector.broadcast %60 : vector<1x4xf32> to vector<256x4xf32>
    %62 = arith.addf %57, %61 : vector<256x4xf32>
    %63 = vector.shape_cast %1 : vector<16x16x4xf32> to vector<256x4xf32>
    %64 = arith.addf %62, %63 : vector<256x4xf32>
    %cst_94 = arith.constant 0.000000e+00 : f32
    %65 = vector.broadcast %cst_94 : f32 to vector<256x4xf32>
    %66 = arith.maximumf %64, %65 : vector<256x4xf32>
    %c0_95 = arith.constant 0 : index
    %c0_96 = arith.constant 0 : index
    %c0_97 = arith.constant 0 : index
    %67 = vector.load %arg6[%c0_95, %c0_96, %c0_97] : memref<1x256x4xf32, #tpu.memory_space<vmem>>, vector<1x256x4xf32>
    %68 = vector.shape_cast %67 : vector<1x256x4xf32> to vector<256x4xf32>
    %69 = vector.shape_cast %66 : vector<256x4xf32> to vector<1x256x4xf32>
    tpu.vector_store %arg6[%c0_95, %c0_96, %c0_97], %69 {strides = array<i32>} : memref<1x256x4xf32, #tpu.memory_space<vmem>>, vector<1x256x4xf32>,
    return
  }
  func.func @transform_0(%arg0: i32) -> (i32, i32, i32, i32) {
    %c0_i32 = arith.constant 0 : i32
    %c0_i32_0 = arith.constant 0 : i32
    %c0_i32_1 = arith.constant 0 : i32
    %c0_i32_2 = arith.constant 0 : i32
    return %arg0, %c0_i32, %c0_i32_0, %c0_i32_1 : i32, i32, i32, i32
  }
  func.func @transform_1(%arg0: i32) -> (i32, i32) {
    %c0_i32 = arith.constant 0 : i32
    %c0_i32_0 = arith.constant 0 : i32
    %c0_i32_1 = arith.constant 0 : i32
    return %c0_i32, %c0_i32_0 : i32, i32
  }
  func.func @transform_2(%arg0: i32) -> (i32, i32) {
    %c0_i32 = arith.constant 0 : i32
    %c0_i32_0 = arith.constant 0 : i32
    %c0_i32_1 = arith.constant 0 : i32
    return %c0_i32, %c0_i32_0 : i32, i32
  }
  func.func @transform_3(%arg0: i32) -> (i32, i32) {
    %c0_i32 = arith.constant 0 : i32
    %c0_i32_0 = arith.constant 0 : i32
    %c0_i32_1 = arith.constant 0 : i32
    return %c0_i32, %c0_i32_0 : i32, i32
  }
  func.func @transform_4(%arg0: i32) -> (i32, i32) {
    %c0_i32 = arith.constant 0 : i32
    %c0_i32_0 = arith.constant 0 : i32
    %c0_i32_1 = arith.constant 0 : i32
    return %c0_i32, %c0_i32_0 : i32, i32
  }
  func.func @transform_5(%arg0: i32) -> (i32, i32, i32) {
    %c0_i32 = arith.constant 0 : i32
    %c0_i32_0 = arith.constant 0 : i32
    %c0_i32_1 = arith.constant 0 : i32
    return %arg0, %c0_i32, %c0_i32_0 : i32, i32, i32
  }
}

</mosaic_0001>

<llo_original>
// kernel: tpu_custom_call.1
$region0: #{tpu_custom_call.1}
  #allocation0 [shape = 'u32[]', space=smem, size = 0x4, offset = 0x4, fixed_abs, tag = 'smem constant byte address 0x4 - core index']
  #allocation1 [shape = 'u32[72,128]{1,0:T(1,128)}', space=vmem, size = 0x9000, scoped, tag = 'internal scratch']
  #allocation2 [shape = 'f32[18,32,4]{2,1,0:T(8,128)}', space=vmem, size = 0x48000, scoped, tag = 'scratch operand']
  #allocation3 [shape = 'f32[18,32,4]{2,1,0:T(8,128)}', space=vmem, size = 0x48000, scoped, tag = 'scratch operand']
  %s0 = inlined_call_operand.vmem [shape: f32[2,16,16,4], index: 0, kind: input, shape index: {}]
  %s1 = inlined_call_operand.vmem [shape: f32[36,4], index: 1, kind: input, shape index: {}]
  %s2 = inlined_call_operand.vmem [shape: f32[1,4], index: 2, kind: input, shape index: {}]
  %s3 = inlined_call_operand.vmem [shape: f32[36,4], index: 3, kind: input, shape index: {}]
  %s4 = inlined_call_operand.vmem [shape: f32[1,4], index: 4, kind: input, shape index: {}]
  %s5 = inlined_call_operand.vmem [shape: f32[2,256,4], index: 5, kind: output, shape index: {}]
  %s6 = sld [smem:[#allocation0]]
  $region53: #{tpu_custom_call.1} parent=0
    _
  %s8 = ssub.s32 1, %s6
  %s9 = scalar_select 0, %s8, %s6
  loop: start=0, step=1, limit=4
  $region2: #{tpu_custom_call.1} parent=0 // loop_pre_header
    _
  $region3: #{tpu_custom_call.1} parent=0 // loop_header
    %s11 = sphi 0, %s15
    %p12 = scmp.ge.s32.totalorder %s11, 4
    %s21 = sphi 0, %s23
    %s24 = sphi 0, %s21
    %s25 = sphi 0, %s24
    %s41 = sphi 0, %s25
    %s45 = sphi 0, %s45
    %s47 = sphi 0, %s45
    %s48 = sphi 0, %s47
    %s62 = sphi 0, %s48
    %s66 = sphi 0, %s66
    %s68 = sphi 0, %s66
    %s69 = sphi 0, %s68
    %s83 = sphi 0, %s69
    %s87 = sphi 0, %s87
    %s89 = sphi 0, %s87
    %s90 = sphi 0, %s89
    %s104 = sphi 0, %s90
    %s108 = sphi 0, %s108
    %s110 = sphi 0, %s108
    %s111 = sphi 0, %s110
    %s125 = sphi 0, %s111
    %s131 = sphi 0, %s133
    %s134 = sphi 0, %s131
    %s135 = sphi 0, %s134
    %s151 = sphi 0, %s135
  $region4: #{tpu_custom_call.1} parent=0 // loop_header_branch
    %14 = sbr.rel (%p12) target = $region8
  $region5: #{tpu_custom_call.1} parent=0 // loop_body
    %s16 = ssub.s32 %s11, 1
    %s17 = ssub.s32 %s11, 2
    %s18 = sadd.s32 %s11, 1
    %s19 = ssub.s32 %s11, %s18
    %p20 = scmp.eq.s32.totalorder %s19, 0
    %s22 = sadd.s32 %s21, 1
    %s23 = scalar_select %p20, %s21, %s22
    %p26 = pneg %p20
    %p27 = scmp.eq.s32.totalorder %s11, 1
    %p28 = por %p26, %p27
    %p29 = scmp.ne.s32.totalorder %s21, %s24
    %p30 = scmp.eq.s32.totalorder %s11, 0
    %p31 = por %p29, %p30
    %p32 = scmp.ne.s32.totalorder %s21, %s24
    %p33 = scmp.eq.s32.totalorder %s16, 1
    %p34 = por %p32, %p33
    %p35 = scmp.ne.s32.totalorder %s24, %s25
    %p36 = scmp.eq.s32.totalorder %s16, 0
    %p37 = por %p35, %p36
    %p38 = scmp.ne.s32.totalorder %s24, %s25
    %p39 = scmp.eq.s32.totalorder %s17, 1
    %p40 = por %p38, %p39
    %p42 = scmp.ne.s32.totalorder %s25, %s41
    %p43 = scmp.eq.s32.totalorder %s17, 0
    %p44 = por %p42, %p43
    %s46 = sadd.s32 %s45, 1
    %p49 = scmp.eq.s32.totalorder %s11, 1
    %p50 = scmp.ne.s32.totalorder %s45, %s47
    %p51 = scmp.eq.s32.totalorder %s11, 0
    %p52 = por %p50, %p51
    %p53 = scmp.ne.s32.totalorder %s45, %s47
    %p54 = scmp.eq.s32.totalorder %s16, 1
    %p55 = por %p53, %p54
    %p56 = scmp.ne.s32.totalorder %s47, %s48
    %p57 = scmp.eq.s32.totalorder %s16, 0
    %p58 = por %p56, %p57
    %p59 = scmp.ne.s32.totalorder %s47, %s48
    %p60 = scmp.eq.s32.totalorder %s17, 1
    %p61 = por %p59, %p60
    %p63 = scmp.ne.s32.totalorder %s48, %s62
    %p64 = scmp.eq.s32.totalorder %s17, 0
    %p65 = por %p63, %p64
    %s67 = sadd.s32 %s66, 1
    %p70 = scmp.eq.s32.totalorder %s11, 1
    %p71 = scmp.ne.s32.totalorder %s66, %s68
    %p72 = scmp.eq.s32.totalorder %s11, 0
    %p73 = por %p71, %p72
    %p74 = scmp.ne.s32.totalorder %s66, %s68
    %p75 = scmp.eq.s32.totalorder %s16, 1
    %p76 = por %p74, %p75
    %p77 = scmp.ne.s32.totalorder %s68, %s69
    %p78 = scmp.eq.s32.totalorder %s16, 0
    %p79 = por %p77, %p78
    %p80 = scmp.ne.s32.totalorder %s68, %s69
    %p81 = scmp.eq.s32.totalorder %s17, 1
    %p82 = por %p80, %p81
    %p84 = scmp.ne.s32.totalorder %s69, %s83
    %p85 = scmp.eq.s32.totalorder %s17, 0
    %p86 = por %p84, %p85
    %s88 = sadd.s32 %s87, 1
    %p91 = scmp.eq.s32.totalorder %s11, 1
    %p92 = scmp.ne.s32.totalorder %s87, %s89
    %p93 = scmp.eq.s32.totalorder %s11, 0
    %p94 = por %p92, %p93
    %p95 = scmp.ne.s32.totalorder %s87, %s89
    %p96 = scmp.eq.s32.totalorder %s16, 1
    %p97 = por %p95, %p96
    %p98 = scmp.ne.s32.totalorder %s89, %s90
    %p99 = scmp.eq.s32.totalorder %s16, 0
    %p100 = por %p98, %p99
    %p101 = scmp.ne.s32.totalorder %s89, %s90
    %p102 = scmp.eq.s32.totalorder %s17, 1
    %p103 = por %p101, %p102
    %p105 = scmp.ne.s32.totalorder %s90, %s104
    %p106 = scmp.eq.s32.totalorder %s17, 0
    %p107 = por %p105, %p106
    %s109 = sadd.s32 %s108, 1
    %p112 = scmp.eq.s32.totalorder %s11, 1
    %p113 = scmp.ne.s32.totalorder %s108, %s110
    %p114 = scmp.eq.s32.totalorder %s11, 0
    %p115 = por %p113, %p114
    %p116 = scmp.ne.s32.totalorder %s108, %s110
    %p117 = scmp.eq.s32.totalorder %s16, 1
    %p118 = por %p116, %p117
    %p119 = scmp.ne.s32.totalorder %s110, %s111
    %p120 = scmp.eq.s32.totalorder %s16, 0
    %p121 = por %p119, %p120
    %p122 = scmp.ne.s32.totalorder %s110, %s111
    %p123 = scmp.eq.s32.totalorder %s17, 1
    %p124 = por %p122, %p123
    %p126 = scmp.ne.s32.totalorder %s111, %s125
    %p127 = scmp.eq.s32.totalorder %s17, 0
    %p128 = por %p126, %p127
    %s129 = ssub.s32 %s11, %s18
    %p130 = scmp.eq.s32.totalorder %s129, 0
    %s132 = sadd.s32 %s131, 1
    %s133 = scalar_select %p130, %s131, %s132
    %p136 = pneg %p130
    %p137 = scmp.eq.s32.totalorder %s11, 1
    %p138 = por %p136, %p137
    %p139 = scmp.ne.s32.totalorder %s131, %s134
    %p140 = scmp.eq.s32.totalorder %s11, 0
    %p141 = por %p139, %p140
    %p142 = scmp.ne.s32.totalorder %s131, %s134
    %p143 = scmp.eq.s32.totalorder %s16, 1
    %p144 = por %p142, %p143
    %p145 = scmp.ne.s32.totalorder %s134, %s135
    %p146 = scmp.eq.s32.totalorder %s16, 0
    %p147 = por %p145, %p146
    %p148 = scmp.ne.s32.totalorder %s134, %s135
    %p149 = scmp.eq.s32.totalorder %s17, 1
    %p150 = por %p148, %p149
    %p152 = scmp.ne.s32.totalorder %s135, %s151
    %p153 = scmp.eq.s32.totalorder %s17, 0
    %p154 = por %p152, %p153
    %p155 = scmp.le.s32.totalorder 1, %s11
    %p156 = scmp.lt.s32.totalorder %s11, 3
    %p157 = pnand %p155, %p156
    %p158 = pneg %p157
    // Predicated region
    $region9: #{tpu_custom_call.1} parent=5 // pred_check
      _
    $region10: #{tpu_custom_call.1} parent=5 // pred_check_branch
      %160 = sbr.rel (%p157) target = $region12
    $region11: #{tpu_custom_call.1} parent=5 // pred_region
      %s161 = ssub.s32 %s11, 1
      // Predicated region
      $region13: #{tpu_custom_call.1} parent=11 // pred_check
        %p162 = pneg %p58
      $region14: #{tpu_custom_call.1} parent=11 // pred_check_branch
        %164 = sbr.rel (%p162) target = $region16
      $region15: #{tpu_custom_call.1} parent=11 // pred_region
        _
      $region16: #{tpu_custom_call.1} parent=11 // pred_fallthru
        _
      // Predicated region
      $region17: #{tpu_custom_call.1} parent=11 // pred_check
        %p165 = pneg %p79
      $region18: #{tpu_custom_call.1} parent=11 // pred_check_branch
        %167 = sbr.rel (%p165) target = $region20
      $region19: #{tpu_custom_call.1} parent=11 // pred_region
        _
      $region20: #{tpu_custom_call.1} parent=11 // pred_fallthru
        _
      // Predicated region
      $region21: #{tpu_custom_call.1} parent=11 // pred_check
        %p168 = pneg %p100
      $region22: #{tpu_custom_call.1} parent=11 // pred_check_branch
        %170 = sbr.rel (%p168) target = $region24
      $region23: #{tpu_custom_call.1} parent=11 // pred_region
        _
      $region24: #{tpu_custom_call.1} parent=11 // pred_fallthru
        _
      // Predicated region
      $region25: #{tpu_custom_call.1} parent=11 // pred_check
        %p171 = pneg %p121
      $region26: #{tpu_custom_call.1} parent=11 // pred_check_branch
        %173 = sbr.rel (%p171) target = $region28
      $region27: #{tpu_custom_call.1} parent=11 // pred_region
        _
      $region28: #{tpu_custom_call.1} parent=11 // pred_fallthru
        _
    $region12: #{tpu_custom_call.1} parent=5 // pred_fallthru
      _
    %p174 = scmp.lt.s32.totalorder %s11, 2
    // Predicated region
    $region29: #{tpu_custom_call.1} parent=5 // pred_check
      %p175 = pneg %p174
    $region30: #{tpu_custom_call.1} parent=5 // pred_check_branch
      %177 = sbr.rel (%p175) target = $region32
    $region31: #{tpu_custom_call.1} parent=5 // pred_region
      // Predicated region
      $region33: #{tpu_custom_call.1} parent=31 // pred_check
        %p178 = pneg %p31
      $region34: #{tpu_custom_call.1} parent=31 // pred_check_branch
        %180 = sbr.rel (%p178) target = $region36
      $region35: #{tpu_custom_call.1} parent=31 // pred_region
        %p181 = scmp.lt.s32.totalorder %s11, 1
        %s182 = scalar_select %p181, %s11, 1
        %s183 = smul.addr %s182, 32
        %s184 = smul.addr %s183, 8
        %s185 = scalar_lea.vmem %s0, %s184
      $region36: #{tpu_custom_call.1} parent=31 // pred_fallthru
        _
    $region32: #{tpu_custom_call.1} parent=5 // pred_fallthru
      _
    %p186 = scmp.le.s32.totalorder 1, %s11
    %p187 = scmp.lt.s32.totalorder %s11, 3
    %p188 = pnand %p186, %p187
    %p189 = pneg %p188
    // Predicated region
    $region37: #{tpu_custom_call.1} parent=5 // pred_check
      _
    $region38: #{tpu_custom_call.1} parent=5 // pred_check_branch
      %191 = sbr.rel (%p188) target = $region40
    $region39: #{tpu_custom_call.1} parent=5 // pred_region
      %s192 = ssub.s32 %s11, 1
      %p193 = scmp.lt.s32.totalorder %s16, 1
      %s194 = scalar_select %p193, %s16, 1
      %s195 = smul.addr %s194, 32
      %s196 = smul.addr %s195, 8
      %s197 = scalar_lea.vmem %s0, %s196
      %p198 = pneg %p37
      %p199 = pneg %p34
      %p200 = pneg %p58
      %p201 = pneg %p55
      %p202 = pneg %p79
      %p203 = pneg %p76
      %p204 = pneg %p100
      %p205 = pneg %p97
      %p206 = pneg %p121
      %p207 = pneg %p118
      %p208 = pneg %p147
      %p209 = pneg %p144
      %p210 = scmp.lt.s32.totalorder %s16, 1
      %s211 = scalar_select %p210, %s16, 1
      %s212 = smul.addr %s211, 32
      %s213 = smul.addr %s212, 8
      %s214 = scalar_lea.vmem %s5, %s213
      %p215 = scmp.lt.s32.totalorder %s16, 1
      %s216 = scalar_select %p215, %s16, 1
      %s217 = smul.addr %s216, 32
      %s218 = smul.addr %s217, 8
      %s219 = scalar_lea.vmem %s0, %s218
      %p220 = scmp.lt.s32.totalorder %s16, 1
      %s221 = scalar_select %p220, %s16, 1
      %s222 = smul.addr %s221, 32
      %s223 = smul.addr %s222, 8
      %s224 = scalar_lea.vmem %s5, %s223
      %v225 = vld [vmem:[%s219] sm:$0xff]
      %v226 = vld [vmem:[%s219 + $0x8] sm:$0xff]
      %v227 = vld [vmem:[%s219 + $0x10] sm:$0xff]
      %v228 = vld [vmem:[%s219 + $0x18] sm:$0xff]
      %v229 = vld [vmem:[%s219 + $0x20] sm:$0xff]
      %v230 = vld [vmem:[%s219 + $0x28] sm:$0xff]
      %v231 = vld [vmem:[%s219 + $0x30] sm:$0xff]
      %v232 = vld [vmem:[%s219 + $0x38] sm:$0xff]
      %v233 = vld [vmem:[%s219 + $0x40] sm:$0xff]
      %v234 = vld [vmem:[%s219 + $0x48] sm:$0xff]
      %v235 = vld [vmem:[%s219 + $0x50] sm:$0xff]
      %v236 = vld [vmem:[%s219 + $0x58] sm:$0xff]
      %v237 = vld [vmem:[%s219 + $0x60] sm:$0xff]
      %v238 = vld [vmem:[%s219 + $0x68] sm:$0xff]
      %v239 = vld [vmem:[%s219 + $0x70] sm:$0xff]
      %v240 = vld [vmem:[%s219 + $0x78] sm:$0xff]
      %v241 = vld [vmem:[%s219 + $0x80] sm:$0xff]
      %v242 = vld [vmem:[%s219 + $0x88] sm:$0xff]
      %v243 = vld [vmem:[%s219 + $0x90] sm:$0xff]
      %v244 = vld [vmem:[%s219 + $0x98] sm:$0xff]
      %v245 = vld [vmem:[%s219 + $0xa0] sm:$0xff]
      %v246 = vld [vmem:[%s219 + $0xa8] sm:$0xff]
      %v247 = vld [vmem:[%s219 + $0xb0] sm:$0xff]
      %v248 = vld [vmem:[%s219 + $0xb8] sm:$0xff]
      %v249 = vld [vmem:[%s219 + $0xc0] sm:$0xff]
      %v250 = vld [vmem:[%s219 + $0xc8] sm:$0xff]
      %v251 = vld [vmem:[%s219 + $0xd0] sm:$0xff]
      %v252 = vld [vmem:[%s219 + $0xd8] sm:$0xff]
      %v253 = vld [vmem:[%s219 + $0xe0] sm:$0xff]
      %v254 = vld [vmem:[%s219 + $0xe8] sm:$0xff]
      %v255 = vld [vmem:[%s219 + $0xf0] sm:$0xff]
      %v256 = vld [vmem:[%s219 + $0xf8] sm:$0xff]
      %vm257 = vcmask 31744
      %258 = vst.msk [vmem:[#allocation2] sm:$0xff] %vm257, 0.0
      %259 = vst.msk [vmem:[#allocation2 + $0x20] sm:$0xff] %vm257, 0.0
      %260 = vst.msk [vmem:[#allocation2 + $0x40] sm:$0xff] %vm257, 0.0
      %261 = vst.msk [vmem:[#allocation2 + $0x60] sm:$0xff] %vm257, 0.0
      %262 = vst.msk [vmem:[#allocation2 + $0x80] sm:$0xff] %vm257, 0.0
      %263 = vst.msk [vmem:[#allocation2 + $0xa0] sm:$0xff] %vm257, 0.0
      %264 = vst.msk [vmem:[#allocation2 + $0xc0] sm:$0xff] %vm257, 0.0
      %265 = vst.msk [vmem:[#allocation2 + $0xe0] sm:$0xff] %vm257, 0.0
      %266 = vst.msk [vmem:[#allocation2 + $0x100] sm:$0xff] %vm257, 0.0
      %267 = vst.msk [vmem:[#allocation2 + $0x120] sm:$0xff] %vm257, 0.0
      %268 = vst.msk [vmem:[#allocation2 + $0x140] sm:$0xff] %vm257, 0.0
      %269 = vst.msk [vmem:[#allocation2 + $0x160] sm:$0xff] %vm257, 0.0
      %270 = vst.msk [vmem:[#allocation2 + $0x180] sm:$0xff] %vm257, 0.0
      %271 = vst.msk [vmem:[#allocation2 + $0x1a0] sm:$0xff] %vm257, 0.0
      %272 = vst.msk [vmem:[#allocation2 + $0x1c0] sm:$0xff] %vm257, 0.0
      %273 = vst.msk [vmem:[#allocation2 + $0x1e0] sm:$0xff] %vm257, 0.0
      %274 = vst.msk [vmem:[#allocation2 + $0x200] sm:$0xff] %vm257, 0.0
      %275 = vst.msk [vmem:[#allocation2 + $0x220] sm:$0xff] %vm257, 0.0
      %276 = vst.msk [vmem:[#allocation2 + $0x18] sm:$0xff] %vm257, 0.0
      %277 = vst.msk [vmem:[#allocation2 + $0x38] sm:$0xff] %vm257, 0.0
      %278 = vst.msk [vmem:[#allocation2 + $0x58] sm:$0xff] %vm257, 0.0
      %279 = vst.msk [vmem:[#allocation2 + $0x78] sm:$0xff] %vm257, 0.0
      %280 = vst.msk [vmem:[#allocation2 + $0x98] sm:$0xff] %vm257, 0.0
      %281 = vst.msk [vmem:[#allocation2 + $0xb8] sm:$0xff] %vm257, 0.0
      %282 = vst.msk [vmem:[#allocation2 + $0xd8] sm:$0xff] %vm257, 0.0
      %283 = vst.msk [vmem:[#allocation2 + $0xf8] sm:$0xff] %vm257, 0.0
      %284 = vst.msk [vmem:[#allocation2 + $0x118] sm:$0xff] %vm257, 0.0
      %285 = vst.msk [vmem:[#allocation2 + $0x138] sm:$0xff] %vm257, 0.0
      %286 = vst.msk [vmem:[#allocation2 + $0x158] sm:$0xff] %vm257, 0.0
      %287 = vst.msk [vmem:[#allocation2 + $0x178] sm:$0xff] %vm257, 0.0
      %288 = vst.msk [vmem:[#allocation2 + $0x198] sm:$0xff] %vm257, 0.0
      %289 = vst.msk [vmem:[#allocation2 + $0x1b8] sm:$0xff] %vm257, 0.0
      %290 = vst.msk [vmem:[#allocation2 + $0x1d8] sm:$0xff] %vm257, 0.0
      %291 = vst.msk [vmem:[#allocation2 + $0x1f8] sm:$0xff] %vm257, 0.0
      %292 = vst.msk [vmem:[#allocation2 + $0x218] sm:$0xff] %vm257, 0.0
      %293 = vst.msk [vmem:[#allocation2 + $0x238] sm:$0xff] %vm257, 0.0
      %294 = vst.msk [vmem:[#allocation2 + $0x8] sm:$0xff] %vm257, 0.0
      %295 = vst.msk [vmem:[#allocation2 + $0x10] sm:$0xff] %vm257, 0.0
      %s296 = scalar_lea.vmem [#allocation2], 544
      %297 = vst.msk [vmem:[%s296 + $0x8] sm:$0xff] %vm257, 0.0
      %298 = vst.msk [vmem:[%s296 + $0x10] sm:$0xff] %vm257, 0.0
      %s299 = scalar_lea.vmem [#allocation2], 32
      %300 = vst.msk [vmem:[%s299 + $0x8] sm:$0xff] %vm257, %v225
      %301 = vst.msk [vmem:[%s299 + $0x10] sm:$0xff] %vm257, %v226
      %302 = vst.msk [vmem:[%s299 + $0x28] sm:$0xff] %vm257, %v227
      %303 = vst.msk [vmem:[%s299 + $0x30] sm:$0xff] %vm257, %v228
      %304 = vst.msk [vmem:[%s299 + $0x48] sm:$0xff] %vm257, %v229
      %305 = vst.msk [vmem:[%s299 + $0x50] sm:$0xff] %vm257, %v230
      %306 = vst.msk [vmem:[%s299 + $0x68] sm:$0xff] %vm257, %v231
      %307 = vst.msk [vmem:[%s299 + $0x70] sm:$0xff] %vm257, %v232
      %308 = vst.msk [vmem:[%s299 + $0x88] sm:$0xff] %vm257, %v233
      %309 = vst.msk [vmem:[%s299 + $0x90] sm:$0xff] %vm257, %v234
      %310 = vst.msk [vmem:[%s299 + $0xa8] sm:$0xff] %vm257, %v235
      %311 = vst.msk [vmem:[%s299 + $0xb0] sm:$0xff] %vm257, %v236
      %312 = vst.msk [vmem:[%s299 + $0xc8] sm:$0xff] %vm257, %v237
      %313 = vst.msk [vmem:[%s299 + $0xd0] sm:$0xff] %vm257, %v238
      %314 = vst.msk [vmem:[%s299 + $0xe8] sm:$0xff] %vm257, %v239
      %315 = vst.msk [vmem:[%s299 + $0xf0] sm:$0xff] %vm257, %v240
      %316 = vst.msk [vmem:[%s299 + $0x108] sm:$0xff] %vm257, %v241
      %317 = vst.msk [vmem:[%s299 + $0x110] sm:$0xff] %vm257, %v242
      %318 = vst.msk [vmem:[%s299 + $0x128] sm:$0xff] %vm257, %v243
      %319 = vst.msk [vmem:[%s299 + $0x130] sm:$0xff] %vm257, %v244
      %320 = vst.msk [vmem:[%s299 + $0x148] sm:$0xff] %vm257, %v245
      %321 = vst.msk [vmem:[%s299 + $0x150] sm:$0xff] %vm257, %v246
      %322 = vst.msk [vmem:[%s299 + $0x168] sm:$0xff] %vm257, %v247
      %323 = vst.msk [vmem:[%s299 + $0x170] sm:$0xff] %vm257, %v248
      %324 = vst.msk [vmem:[%s299 + $0x188] sm:$0xff] %vm257, %v249
      %325 = vst.msk [vmem:[%s299 + $0x190] sm:$0xff] %vm257, %v250
      %326 = vst.msk [vmem:[%s299 + $0x1a8] sm:$0xff] %vm257, %v251
      %327 = vst.msk [vmem:[%s299 + $0x1b0] sm:$0xff] %vm257, %v252
      %328 = vst.msk [vmem:[%s299 + $0x1c8] sm:$0xff] %vm257, %v253
      %329 = vst.msk [vmem:[%s299 + $0x1d0] sm:$0xff] %vm257, %v254
      %330 = vst.msk [vmem:[%s299 + $0x1e8] sm:$0xff] %vm257, %v255
      %331 = vst.msk [vmem:[%s299 + $0x1f0] sm:$0xff] %vm257, %v256
      %v332 = vld [vmem:[#allocation2 + $0x7] sm:$0xff]
      %v333 = vld [vmem:[#allocation2 + $0xf] sm:$0xff]
      %v334 = vld [vmem:[#allocation2 + $0x27] sm:$0xff]
      %v335 = vld [vmem:[#allocation2 + $0x2f] sm:$0xff]
      %v336 = vld [vmem:[#allocation2 + $0x47] sm:$0xff]
      %v337 = vld [vmem:[#allocation2 + $0x4f] sm:$0xff]
      %v338 = vld [vmem:[#allocation2 + $0x67] sm:$0xff]
      %v339 = vld [vmem:[#allocation2 + $0x6f] sm:$0xff]
      %v340 = vld [vmem:[#allocation2 + $0x87] sm:$0xff]
      %v341 = vld [vmem:[#allocation2 + $0x8f] sm:$0xff]
      %v342 = vld [vmem:[#allocation2 + $0xa7] sm:$0xff]
      %v343 = vld [vmem:[#allocation2 + $0xaf] sm:$0xff]
      %v344 = vld [vmem:[#allocation2 + $0xc7] sm:$0xff]
      %v345 = vld [vmem:[#allocation2 + $0xcf] sm:$0xff]
      %v346 = vld [vmem:[#allocation2 + $0xe7] sm:$0xff]
      %v347 = vld [vmem:[#allocation2 + $0xef] sm:$0xff]
      %v348 = vld [vmem:[#allocation2 + $0x107] sm:$0xff]
      %v349 = vld [vmem:[#allocation2 + $0x10f] sm:$0xff]
      %v350 = vld [vmem:[#allocation2 + $0x127] sm:$0xff]
      %v351 = vld [vmem:[#allocation2 + $0x12f] sm:$0xff]
      %v352 = vld [vmem:[#allocation2 + $0x147] sm:$0xff]
      %v353 = vld [vmem:[#allocation2 + $0x14f] sm:$0xff]
      %v354 = vld [vmem:[#allocation2 + $0x167] sm:$0xff]
      %v355 = vld [vmem:[#allocation2 + $0x16f] sm:$0xff]
      %v356 = vld [vmem:[#allocation2 + $0x187] sm:$0xff]
      %v357 = vld [vmem:[#allocation2 + $0x18f] sm:$0xff]
      %v358 = vld [vmem:[#allocation2 + $0x1a7] sm:$0xff]
      %v359 = vld [vmem:[#allocation2 + $0x1af] sm:$0xff]
      %v360 = vld [vmem:[#allocation2 + $0x1c7] sm:$0xff]
      %v361 = vld [vmem:[#allocation2 + $0x1cf] sm:$0xff]
      %v362 = vld [vmem:[#allocation2 + $0x1e7] sm:$0xff]
      %v363 = vld [vmem:[#allocation2 + $0x1ef] sm:$0xff]
      %v364 = vld [vmem:[#allocation2 + $0x8] sm:$0xff]
      %v365 = vld [vmem:[#allocation2 + $0x10] sm:$0xff]
      %v366 = vld [vmem:[#allocation2 + $0x28] sm:$0xff]
      %v367 = vld [vmem:[#allocation2 + $0x30] sm:$0xff]
      %v368 = vld [vmem:[#allocation2 + $0x48] sm:$0xff]
      %v369 = vld [vmem:[#allocation2 + $0x50] sm:$0xff]
      %v370 = vld [vmem:[#allocation2 + $0x68] sm:$0xff]
      %v371 = vld [vmem:[#allocation2 + $0x70] sm:$0xff]
      %v372 = vld [vmem:[#allocation2 + $0x88] sm:$0xff]
      %v373 = vld [vmem:[#allocation2 + $0x90] sm:$0xff]
      %v374 = vld [vmem:[#allocation2 + $0xa8] sm:$0xff]
      %v375 = vld [vmem:[#allocation2 + $0xb0] sm:$0xff]
      %v376 = vld [vmem:[#allocation2 + $0xc8] sm:$0xff]
      %v377 = vld [vmem:[#allocation2 + $0xd0] sm:$0xff]
      %v378 = vld [vmem:[#allocation2 + $0xe8] sm:$0xff]
      %v379 = vld [vmem:[#allocation2 + $0xf0] sm:$0xff]
      %v380 = vld [vmem:[#allocation2 + $0x108] sm:$0xff]
      %v381 = vld [vmem:[#allocation2 + $0x110] sm:$0xff]
      %v382 = vld [vmem:[#allocation2 + $0x128] sm:$0xff]
      %v383 = vld [vmem:[#allocation2 + $0x130] sm:$0xff]
      %v384 = vld [vmem:[#allocation2 + $0x148] sm:$0xff]
      %v385 = vld [vmem:[#allocation2 + $0x150] sm:$0xff]
      %v386 = vld [vmem:[#allocation2 + $0x168] sm:$0xff]
      %v387 = vld [vmem:[#allocation2 + $0x170] sm:$0xff]
      %v388 = vld [vmem:[#allocation2 + $0x188] sm:$0xff]
      %v389 = vld [vmem:[#allocation2 + $0x190] sm:$0xff]
      %v390 = vld [vmem:[#allocation2 + $0x1a8] sm:$0xff]
      %v391 = vld [vmem:[#allocation2 + $0x1b0] sm:$0xff]
      %v392 = vld [vmem:[#allocation2 + $0x1c8] sm:$0xff]
      %v393 = vld [vmem:[#allocation2 + $0x1d0] sm:$0xff]
      %v394 = vld [vmem:[#allocation2 + $0x1e8] sm:$0xff]
      %v395 = vld [vmem:[#allocation2 + $0x1f0] sm:$0xff]
      %v396 = vld [vmem:[#allocation2 + $0x9] sm:$0xff]
      %v397 = vld [vmem:[#allocation2 + $0x11] sm:$0xff]
      %v398 = vld [vmem:[#allocation2 + $0x29] sm:$0xff]
      %v399 = vld [vmem:[#allocation2 + $0x31] sm:$0xff]
      %v400 = vld [vmem:[#allocation2 + $0x49] sm:$0xff]
      %v401 = vld [vmem:[#allocation2 + $0x51] sm:$0xff]
      %v402 = vld [vmem:[#allocation2 + $0x69] sm:$0xff]
      %v403 = vld [vmem:[#allocation2 + $0x71] sm:$0xff]
      %v404 = vld [vmem:[#allocation2 + $0x89] sm:$0xff]
      %v405 = vld [vmem:[#allocation2 + $0x91] sm:$0xff]
      %v406 = vld [vmem:[#allocation2 + $0xa9] sm:$0xff]
      %v407 = vld [vmem:[#allocation2 + $0xb1] sm:$0xff]
      %v408 = vld [vmem:[#allocation2 + $0xc9] sm:$0xff]
      %v409 = vld [vmem:[#allocation2 + $0xd1] sm:$0xff]
      %v410 = vld [vmem:[#allocation2 + $0xe9] sm:$0xff]
      %v411 = vld [vmem:[#allocation2 + $0xf1] sm:$0xff]
      %v412 = vld [vmem:[#allocation2 + $0x109] sm:$0xff]
      %v413 = vld [vmem:[#allocation2 + $0x111] sm:$0xff]
      %v414 = vld [vmem:[#allocation2 + $0x129] sm:$0xff]
      %v415 = vld [vmem:[#allocation2 + $0x131] sm:$0xff]
      %v416 = vld [vmem:[#allocation2 + $0x149] sm:$0xff]
      %v417 = vld [vmem:[#allocation2 + $0x151] sm:$0xff]
      %v418 = vld [vmem:[#allocation2 + $0x169] sm:$0xff]
      %v419 = vld [vmem:[#allocation2 + $0x171] sm:$0xff]
      %v420 = vld [vmem:[#allocation2 + $0x189] sm:$0xff]
      %v421 = vld [vmem:[#allocation2 + $0x191] sm:$0xff]
      %v422 = vld [vmem:[#allocation2 + $0x1a9] sm:$0xff]
      %v423 = vld [vmem:[#allocation2 + $0x1b1] sm:$0xff]
      %v424 = vld [vmem:[#allocation2 + $0x1c9] sm:$0xff]
      %v425 = vld [vmem:[#allocation2 + $0x1d1] sm:$0xff]
      %v426 = vld [vmem:[#allocation2 + $0x1e9] sm:$0xff]
      %v427 = vld [vmem:[#allocation2 + $0x1f1] sm:$0xff]
      %v428 = vld [vmem:[%s299 + $0x7] sm:$0xff]
      %v429 = vld [vmem:[%s299 + $0xf] sm:$0xff]
      %v430 = vld [vmem:[%s299 + $0x27] sm:$0xff]
      %v431 = vld [vmem:[%s299 + $0x2f] sm:$0xff]
      %v432 = vld [vmem:[%s299 + $0x47] sm:$0xff]
      %v433 = vld [vmem:[%s299 + $0x4f] sm:$0xff]
      %v434 = vld [vmem:[%s299 + $0x67] sm:$0xff]
      %v435 = vld [vmem:[%s299 + $0x6f] sm:$0xff]
      %v436 = vld [vmem:[%s299 + $0x87] sm:$0xff]
      %v437 = vld [vmem:[%s299 + $0x8f] sm:$0xff]
      %v438 = vld [vmem:[%s299 + $0xa7] sm:$0xff]
      %v439 = vld [vmem:[%s299 + $0xaf] sm:$0xff]
      %v440 = vld [vmem:[%s299 + $0xc7] sm:$0xff]
      %v441 = vld [vmem:[%s299 + $0xcf] sm:$0xff]
      %v442 = vld [vmem:[%s299 + $0xe7] sm:$0xff]
      %v443 = vld [vmem:[%s299 + $0xef] sm:$0xff]
      %v444 = vld [vmem:[%s299 + $0x107] sm:$0xff]
      %v445 = vld [vmem:[%s299 + $0x10f] sm:$0xff]
      %v446 = vld [vmem:[%s299 + $0x127] sm:$0xff]
      %v447 = vld [vmem:[%s299 + $0x12f] sm:$0xff]
      %v448 = vld [vmem:[%s299 + $0x147] sm:$0xff]
      %v449 = vld [vmem:[%s299 + $0x14f] sm:$0xff]
      %v450 = vld [vmem:[%s299 + $0x167] sm:$0xff]
      %v451 = vld [vmem:[%s299 + $0x16f] sm:$0xff]
      %v452 = vld [vmem:[%s299 + $0x187] sm:$0xff]
      %v453 = vld [vmem:[%s299 + $0x18f] sm:$0xff]
      %v454 = vld [vmem:[%s299 + $0x1a7] sm:$0xff]
      %v455 = vld [vmem:[%s299 + $0x1af] sm:$0xff]
      %v456 = vld [vmem:[%s299 + $0x1c7] sm:$0xff]
      %v457 = vld [vmem:[%s299 + $0x1cf] sm:$0xff]
      %v458 = vld [vmem:[%s299 + $0x1e7] sm:$0xff]
      %v459 = vld [vmem:[%s299 + $0x1ef] sm:$0xff]
      %v460 = vld [vmem:[%s299 + $0x8] sm:$0xff]
      %v461 = vld [vmem:[%s299 + $0x10] sm:$0xff]
      %v462 = vld [vmem:[%s299 + $0x28] sm:$0xff]
      %v463 = vld [vmem:[%s299 + $0x30] sm:$0xff]
      %v464 = vld [vmem:[%s299 + $0x48] sm:$0xff]
      %v465 = vld [vmem:[%s299 + $0x50] sm:$0xff]
      %v466 = vld [vmem:[%s299 + $0x68] sm:$0xff]
      %v467 = vld [vmem:[%s299 + $0x70] sm:$0xff]
      %v468 = vld [vmem:[%s299 + $0x88] sm:$0xff]
      %v469 = vld [vmem:[%s299 + $0x90] sm:$0xff]
      %v470 = vld [vmem:[%s299 + $0xa8] sm:$0xff]
      %v471 = vld [vmem:[%s299 + $0xb0] sm:$0xff]
      %v472 = vld [vmem:[%s299 + $0xc8] sm:$0xff]
      %v473 = vld [vmem:[%s299 + $0xd0] sm:$0xff]
      %v474 = vld [vmem:[%s299 + $0xe8] sm:$0xff]
      %v475 = vld [vmem:[%s299 + $0xf0] sm:$0xff]
      %v476 = vld [vmem:[%s299 + $0x108] sm:$0xff]
      %v477 = vld [vmem:[%s299 + $0x110] sm:$0xff]
      %v478 = vld [vmem:[%s299 + $0x128] sm:$0xff]
      %v479 = vld [vmem:[%s299 + $0x130] sm:$0xff]
      %v480 = vld [vmem:[%s299 + $0x148] sm:$0xff]
      %v481 = vld [vmem:[%s299 + $0x150] sm:$0xff]
      %v482 = vld [vmem:[%s299 + $0x168] sm:$0xff]
      %v483 = vld [vmem:[%s299 + $0x170] sm:$0xff]
      %v484 = vld [vmem:[%s299 + $0x188] sm:$0xff]
      %v485 = vld [vmem:[%s299 + $0x190] sm:$0xff]
      %v486 = vld [vmem:[%s299 + $0x1a8] sm:$0xff]
      %v487 = vld [vmem:[%s299 + $0x1b0] sm:$0xff]
      %v488 = vld [vmem:[%s299 + $0x1c8] sm:$0xff]
      %v489 = vld [vmem:[%s299 + $0x1d0] sm:$0xff]
      %v490 = vld [vmem:[%s299 + $0x1e8] sm:$0xff]
      %v491 = vld [vmem:[%s299 + $0x1f0] sm:$0xff]
      %v492 = vld [vmem:[%s299 + $0x9] sm:$0xff]
      %v493 = vld [vmem:[%s299 + $0x11] sm:$0xff]
      %v494 = vld [vmem:[%s299 + $0x29] sm:$0xff]
      %v495 = vld [vmem:[%s299 + $0x31] sm:$0xff]
      %v496 = vld [vmem:[%s299 + $0x49] sm:$0xff]
      %v497 = vld [vmem:[%s299 + $0x51] sm:$0xff]
      %v498 = vld [vmem:[%s299 + $0x69] sm:$0xff]
      %v499 = vld [vmem:[%s299 + $0x71] sm:$0xff]
      %v500 = vld [vmem:[%s299 + $0x89] sm:$0xff]
      %v501 = vld [vmem:[%s299 + $0x91] sm:$0xff]
      %v502 = vld [vmem:[%s299 + $0xa9] sm:$0xff]
      %v503 = vld [vmem:[%s299 + $0xb1] sm:$0xff]
      %v504 = vld [vmem:[%s299 + $0xc9] sm:$0xff]
      %v505 = vld [vmem:[%s299 + $0xd1] sm:$0xff]
      %v506 = vld [vmem:[%s299 + $0xe9] sm:$0xff]
      %v507 = vld [vmem:[%s299 + $0xf1] sm:$0xff]
      %v508 = vld [vmem:[%s299 + $0x109] sm:$0xff]
      %v509 = vld [vmem:[%s299 + $0x111] sm:$0xff]
      %v510 = vld [vmem:[%s299 + $0x129] sm:$0xff]
      %v511 = vld [vmem:[%s299 + $0x131] sm:$0xff]
      %v512 = vld [vmem:[%s299 + $0x149] sm:$0xff]
      %v513 = vld [vmem:[%s299 + $0x151] sm:$0xff]
      %v514 = vld [vmem:[%s299 + $0x169] sm:$0xff]
      %v515 = vld [vmem:[%s299 + $0x171] sm:$0xff]
      %v516 = vld [vmem:[%s299 + $0x189] sm:$0xff]
      %v517 = vld [vmem:[%s299 + $0x191] sm:$0xff]
      %v518 = vld [vmem:[%s299 + $0x1a9] sm:$0xff]
      %v519 = vld [vmem:[%s299 + $0x1b1] sm:$0xff]
      %v520 = vld [vmem:[%s299 + $0x1c9] sm:$0xff]
      %v521 = vld [vmem:[%s299 + $0x1d1] sm:$0xff]
      %v522 = vld [vmem:[%s299 + $0x1e9] sm:$0xff]
      %v523 = vld [vmem:[%s299 + $0x1f1] sm:$0xff]
      %s524 = scalar_lea.vmem [#allocation2], 64
      %v525 = vld [vmem:[%s524 + $0x7] sm:$0xff]
      %v526 = vld [vmem:[%s524 + $0xf] sm:$0xff]
      %v527 = vld [vmem:[%s524 + $0x27] sm:$0xff]
      %v528 = vld [vmem:[%s524 + $0x2f] sm:$0xff]
      %v529 = vld [vmem:[%s524 + $0x47] sm:$0xff]
      %v530 = vld [vmem:[%s524 + $0x4f] sm:$0xff]
      %v531 = vld [vmem:[%s524 + $0x67] sm:$0xff]
      %v532 = vld [vmem:[%s524 + $0x6f] sm:$0xff]
      %v533 = vld [vmem:[%s524 + $0x87] sm:$0xff]
      %v534 = vld [vmem:[%s524 + $0x8f] sm:$0xff]
      %v535 = vld [vmem:[%s524 + $0xa7] sm:$0xff]
      %v536 = vld [vmem:[%s524 + $0xaf] sm:$0xff]
      %v537 = vld [vmem:[%s524 + $0xc7] sm:$0xff]
      %v538 = vld [vmem:[%s524 + $0xcf] sm:$0xff]
      %v539 = vld [vmem:[%s524 + $0xe7] sm:$0xff]
      %v540 = vld [vmem:[%s524 + $0xef] sm:$0xff]
      %v541 = vld [vmem:[%s524 + $0x107] sm:$0xff]
      %v542 = vld [vmem:[%s524 + $0x10f] sm:$0xff]
      %v543 = vld [vmem:[%s524 + $0x127] sm:$0xff]
      %v544 = vld [vmem:[%s524 + $0x12f] sm:$0xff]
      %v545 = vld [vmem:[%s524 + $0x147] sm:$0xff]
      %v546 = vld [vmem:[%s524 + $0x14f] sm:$0xff]
      %v547 = vld [vmem:[%s524 + $0x167] sm:$0xff]
      %v548 = vld [vmem:[%s524 + $0x16f] sm:$0xff]
      %v549 = vld [vmem:[%s524 + $0x187] sm:$0xff]
      %v550 = vld [vmem:[%s524 + $0x18f] sm:$0xff]
      %v551 = vld [vmem:[%s524 + $0x1a7] sm:$0xff]
      %v552 = vld [vmem:[%s524 + $0x1af] sm:$0xff]
      %v553 = vld [vmem:[%s524 + $0x1c7] sm:$0xff]
      %v554 = vld [vmem:[%s524 + $0x1cf] sm:$0xff]
      %v555 = vld [vmem:[%s524 + $0x1e7] sm:$0xff]
      %v556 = vld [vmem:[%s524 + $0x1ef] sm:$0xff]
      %v557 = vld [vmem:[%s524 + $0x8] sm:$0xff]
      %v558 = vld [vmem:[%s524 + $0x10] sm:$0xff]
      %v559 = vld [vmem:[%s524 + $0x28] sm:$0xff]
      %v560 = vld [vmem:[%s524 + $0x30] sm:$0xff]
      %v561 = vld [vmem:[%s524 + $0x48] sm:$0xff]
      %v562 = vld [vmem:[%s524 + $0x50] sm:$0xff]
      %v563 = vld [vmem:[%s524 + $0x68] sm:$0xff]
      %v564 = vld [vmem:[%s524 + $0x70] sm:$0xff]
      %v565 = vld [vmem:[%s524 + $0x88] sm:$0xff]
      %v566 = vld [vmem:[%s524 + $0x90] sm:$0xff]
      %v567 = vld [vmem:[%s524 + $0xa8] sm:$0xff]
      %v568 = vld [vmem:[%s524 + $0xb0] sm:$0xff]
      %v569 = vld [vmem:[%s524 + $0xc8] sm:$0xff]
      %v570 = vld [vmem:[%s524 + $0xd0] sm:$0xff]
      %v571 = vld [vmem:[%s524 + $0xe8] sm:$0xff]
      %v572 = vld [vmem:[%s524 + $0xf0] sm:$0xff]
      %v573 = vld [vmem:[%s524 + $0x108] sm:$0xff]
      %v574 = vld [vmem:[%s524 + $0x110] sm:$0xff]
      %v575 = vld [vmem:[%s524 + $0x128] sm:$0xff]
      %v576 = vld [vmem:[%s524 + $0x130] sm:$0xff]
      %v577 = vld [vmem:[%s524 + $0x148] sm:$0xff]
      %v578 = vld [vmem:[%s524 + $0x150] sm:$0xff]
      %v579 = vld [vmem:[%s524 + $0x168] sm:$0xff]
      %v580 = vld [vmem:[%s524 + $0x170] sm:$0xff]
      %v581 = vld [vmem:[%s524 + $0x188] sm:$0xff]
      %v582 = vld [vmem:[%s524 + $0x190] sm:$0xff]
      %v583 = vld [vmem:[%s524 + $0x1a8] sm:$0xff]
      %v584 = vld [vmem:[%s524 + $0x1b0] sm:$0xff]
      %v585 = vld [vmem:[%s524 + $0x1c8] sm:$0xff]
      %v586 = vld [vmem:[%s524 + $0x1d0] sm:$0xff]
      %v587 = vld [vmem:[%s524 + $0x1e8] sm:$0xff]
      %v588 = vld [vmem:[%s524 + $0x1f0] sm:$0xff]
      %v589 = vld [vmem:[%s524 + $0x9] sm:$0xff]
      %v590 = vld [vmem:[%s524 + $0x11] sm:$0xff]
      %v591 = vld [vmem:[%s524 + $0x29] sm:$0xff]
      %v592 = vld [vmem:[%s524 + $0x31] sm:$0xff]
      %v593 = vld [vmem:[%s524 + $0x49] sm:$0xff]
      %v594 = vld [vmem:[%s524 + $0x51] sm:$0xff]
      %v595 = vld [vmem:[%s524 + $0x69] sm:$0xff]
      %v596 = vld [vmem:[%s524 + $0x71] sm:$0xff]
      %v597 = vld [vmem:[%s524 + $0x89] sm:$0xff]
      %v598 = vld [vmem:[%s524 + $0x91] sm:$0xff]
      %v599 = vld [vmem:[%s524 + $0xa9] sm:$0xff]
      %v600 = vld [vmem:[%s524 + $0xb1] sm:$0xff]
      %v601 = vld [vmem:[%s524 + $0xc9] sm:$0xff]
      %v602 = vld [vmem:[%s524 + $0xd1] sm:$0xff]
      %v603 = vld [vmem:[%s524 + $0xe9] sm:$0xff]
      %v604 = vld [vmem:[%s524 + $0xf1] sm:$0xff]
      %v605 = vld [vmem:[%s524 + $0x109] sm:$0xff]
      %v606 = vld [vmem:[%s524 + $0x111] sm:$0xff]
      %v607 = vld [vmem:[%s524 + $0x129] sm:$0xff]
      %v608 = vld [vmem:[%s524 + $0x131] sm:$0xff]
      %v609 = vld [vmem:[%s524 + $0x149] sm:$0xff]
      %v610 = vld [vmem:[%s524 + $0x151] sm:$0xff]
      %v611 = vld [vmem:[%s524 + $0x169] sm:$0xff]
      %v612 = vld [vmem:[%s524 + $0x171] sm:$0xff]
      %v613 = vld [vmem:[%s524 + $0x189] sm:$0xff]
      %v614 = vld [vmem:[%s524 + $0x191] sm:$0xff]
      %v615 = vld [vmem:[%s524 + $0x1a9] sm:$0xff]
      %v616 = vld [vmem:[%s524 + $0x1b1] sm:$0xff]
      %v617 = vld [vmem:[%s524 + $0x1c9] sm:$0xff]
      %v618 = vld [vmem:[%s524 + $0x1d1] sm:$0xff]
      %v619 = vld [vmem:[%s524 + $0x1e9] sm:$0xff]
      %v620 = vld [vmem:[%s524 + $0x1f1] sm:$0xff]
      %653 = vrot.lane.b32.xlu0 %v364, 4
      %v654 = vpop.permute.xlu0 %653
      %655 = vrot.lane.b32.xlu0 %v365, 4
      %v656 = vpop.permute.xlu0 %655
      %657 = vrot.lane.b32.xlu0 %v366, 4
      %v658 = vpop.permute.xlu0 %657
      %659 = vrot.lane.b32.xlu0 %v367, 4
      %v660 = vpop.permute.xlu0 %659
      %661 = vrot.lane.b32.xlu0 %v368, 4
      %v662 = vpop.permute.xlu0 %661
      %663 = vrot.lane.b32.xlu0 %v369, 4
      %v664 = vpop.permute.xlu0 %663
      %665 = vrot.lane.b32.xlu0 %v370, 4
      %v666 = vpop.permute.xlu0 %665
      %667 = vrot.lane.b32.xlu0 %v371, 4
      %v668 = vpop.permute.xlu0 %667
      %669 = vrot.lane.b32.xlu0 %v372, 4
      %v670 = vpop.permute.xlu0 %669
      %671 = vrot.lane.b32.xlu0 %v373, 4
      %v672 = vpop.permute.xlu0 %671
      %673 = vrot.lane.b32.xlu0 %v374, 4
      %v674 = vpop.permute.xlu0 %673
      %675 = vrot.lane.b32.xlu0 %v375, 4
      %v676 = vpop.permute.xlu0 %675
      %677 = vrot.lane.b32.xlu0 %v376, 4
      %v678 = vpop.permute.xlu0 %677
      %679 = vrot.lane.b32.xlu0 %v377, 4
      %v680 = vpop.permute.xlu0 %679
      %681 = vrot.lane.b32.xlu0 %v378, 4
      %v682 = vpop.permute.xlu0 %681
      %683 = vrot.lane.b32.xlu0 %v379, 4
      %v684 = vpop.permute.xlu0 %683
      %685 = vrot.lane.b32.xlu0 %v380, 4
      %v686 = vpop.permute.xlu0 %685
      %687 = vrot.lane.b32.xlu0 %v381, 4
      %v688 = vpop.permute.xlu0 %687
      %689 = vrot.lane.b32.xlu0 %v382, 4
      %v690 = vpop.permute.xlu0 %689
      %691 = vrot.lane.b32.xlu0 %v383, 4
      %v692 = vpop.permute.xlu0 %691
      %693 = vrot.lane.b32.xlu0 %v384, 4
      %v694 = vpop.permute.xlu0 %693
      %695 = vrot.lane.b32.xlu0 %v385, 4
      %v696 = vpop.permute.xlu0 %695
      %697 = vrot.lane.b32.xlu0 %v386, 4
      %v698 = vpop.permute.xlu0 %697
      %699 = vrot.lane.b32.xlu0 %v387, 4
      %v700 = vpop.permute.xlu0 %699
      %701 = vrot.lane.b32.xlu0 %v388, 4
      %v702 = vpop.permute.xlu0 %701
      %703 = vrot.lane.b32.xlu0 %v389, 4
      %v704 = vpop.permute.xlu0 %703
      %705 = vrot.lane.b32.xlu0 %v390, 4
      %v706 = vpop.permute.xlu0 %705
      %707 = vrot.lane.b32.xlu0 %v391, 4
      %v708 = vpop.permute.xlu0 %707
      %709 = vrot.lane.b32.xlu0 %v392, 4
      %v710 = vpop.permute.xlu0 %709
      %711 = vrot.lane.b32.xlu0 %v393, 4
      %v712 = vpop.permute.xlu0 %711
      %713 = vrot.lane.b32.xlu0 %v394, 4
      %v714 = vpop.permute.xlu0 %713
      %715 = vrot.lane.b32.xlu0 %v395, 4
      %v716 = vpop.permute.xlu0 %715
      %781 = vrot.lane.b32.xlu0 %v396, 8
      %v782 = vpop.permute.xlu0 %781
      %783 = vrot.lane.b32.xlu0 %v397, 8
      %v784 = vpop.permute.xlu0 %783
      %785 = vrot.lane.b32.xlu0 %v398, 8
      %v786 = vpop.permute.xlu0 %785
      %787 = vrot.lane.b32.xlu0 %v399, 8
      %v788 = vpop.permute.xlu0 %787
      %789 = vrot.lane.b32.xlu0 %v400, 8
      %v790 = vpop.permute.xlu0 %789
      %791 = vrot.lane.b32.xlu0 %v401, 8
      %v792 = vpop.permute.xlu0 %791
      %793 = vrot.lane.b32.xlu0 %v402, 8
      %v794 = vpop.permute.xlu0 %793
      %795 = vrot.lane.b32.xlu0 %v403, 8
      %v796 = vpop.permute.xlu0 %795
      %797 = vrot.lane.b32.xlu0 %v404, 8
      %v798 = vpop.permute.xlu0 %797
      %799 = vrot.lane.b32.xlu0 %v405, 8
      %v800 = vpop.permute.xlu0 %799
      %801 = vrot.lane.b32.xlu0 %v406, 8
      %v802 = vpop.permute.xlu0 %801
      %803 = vrot.lane.b32.xlu0 %v407, 8
      %v804 = vpop.permute.xlu0 %803
      %805 = vrot.lane.b32.xlu0 %v408, 8
      %v806 = vpop.permute.xlu0 %805
      %807 = vrot.lane.b32.xlu0 %v409, 8
      %v808 = vpop.permute.xlu0 %807
      %809 = vrot.lane.b32.xlu0 %v410, 8
      %v810 = vpop.permute.xlu0 %809
      %811 = vrot.lane.b32.xlu0 %v411, 8
      %v812 = vpop.permute.xlu0 %811
      %813 = vrot.lane.b32.xlu0 %v412, 8
      %v814 = vpop.permute.xlu0 %813
      %815 = vrot.lane.b32.xlu0 %v413, 8
      %v816 = vpop.permute.xlu0 %815
      %817 = vrot.lane.b32.xlu0 %v414, 8
      %v818 = vpop.permute.xlu0 %817
      %819 = vrot.lane.b32.xlu0 %v415, 8
      %v820 = vpop.permute.xlu0 %819
      %821 = vrot.lane.b32.xlu0 %v416, 8
      %v822 = vpop.permute.xlu0 %821
      %823 = vrot.lane.b32.xlu0 %v417, 8
      %v824 = vpop.permute.xlu0 %823
      %825 = vrot.lane.b32.xlu0 %v418, 8
      %v826 = vpop.permute.xlu0 %825
      %827 = vrot.lane.b32.xlu0 %v419, 8
      %v828 = vpop.permute.xlu0 %827
      %829 = vrot.lane.b32.xlu0 %v420, 8
      %v830 = vpop.permute.xlu0 %829
      %831 = vrot.lane.b32.xlu0 %v421, 8
      %v832 = vpop.permute.xlu0 %831
      %833 = vrot.lane.b32.xlu0 %v422, 8
      %v834 = vpop.permute.xlu0 %833
      %835 = vrot.lane.b32.xlu0 %v423, 8
      %v836 = vpop.permute.xlu0 %835
      %837 = vrot.lane.b32.xlu0 %v424, 8
      %v838 = vpop.permute.xlu0 %837
      %839 = vrot.lane.b32.xlu0 %v425, 8
      %v840 = vpop.permute.xlu0 %839
      %841 = vrot.lane.b32.xlu0 %v426, 8
      %v842 = vpop.permute.xlu0 %841
      %843 = vrot.lane.b32.xlu0 %v427, 8
      %v844 = vpop.permute.xlu0 %843
      %909 = vrot.lane.b32.xlu0 %v428, 12
      %v910 = vpop.permute.xlu0 %909
      %911 = vrot.lane.b32.xlu0 %v429, 12
      %v912 = vpop.permute.xlu0 %911
      %913 = vrot.lane.b32.xlu0 %v430, 12
      %v914 = vpop.permute.xlu0 %913
      %915 = vrot.lane.b32.xlu0 %v431, 12
      %v916 = vpop.permute.xlu0 %915
      %917 = vrot.lane.b32.xlu0 %v432, 12
      %v918 = vpop.permute.xlu0 %917
      %919 = vrot.lane.b32.xlu0 %v433, 12
      %v920 = vpop.permute.xlu0 %919
      %921 = vrot.lane.b32.xlu0 %v434, 12
      %v922 = vpop.permute.xlu0 %921
      %923 = vrot.lane.b32.xlu0 %v435, 12
      %v924 = vpop.permute.xlu0 %923
      %925 = vrot.lane.b32.xlu0 %v436, 12
      %v926 = vpop.permute.xlu0 %925
      %927 = vrot.lane.b32.xlu0 %v437, 12
      %v928 = vpop.permute.xlu0 %927
      %929 = vrot.lane.b32.xlu0 %v438, 12
      %v930 = vpop.permute.xlu0 %929
      %931 = vrot.lane.b32.xlu0 %v439, 12
      %v932 = vpop.permute.xlu0 %931
      %933 = vrot.lane.b32.xlu0 %v440, 12
      %v934 = vpop.permute.xlu0 %933
      %935 = vrot.lane.b32.xlu0 %v441, 12
      %v936 = vpop.permute.xlu0 %935
      %937 = vrot.lane.b32.xlu0 %v442, 12
      %v938 = vpop.permute.xlu0 %937
      %939 = vrot.lane.b32.xlu0 %v443, 12
      %v940 = vpop.permute.xlu0 %939
      %941 = vrot.lane.b32.xlu0 %v444, 12
      %v942 = vpop.permute.xlu0 %941
      %943 = vrot.lane.b32.xlu0 %v445, 12
      %v944 = vpop.permute.xlu0 %943
      %945 = vrot.lane.b32.xlu0 %v446, 12
      %v946 = vpop.permute.xlu0 %945
      %947 = vrot.lane.b32.xlu0 %v447, 12
      %v948 = vpop.permute.xlu0 %947
      %949 = vrot.lane.b32.xlu0 %v448, 12
      %v950 = vpop.permute.xlu0 %949
      %951 = vrot.lane.b32.xlu0 %v449, 12
      %v952 = vpop.permute.xlu0 %951
      %953 = vrot.lane.b32.xlu0 %v450, 12
      %v954 = vpop.permute.xlu0 %953
      %955 = vrot.lane.b32.xlu0 %v451, 12
      %v956 = vpop.permute.xlu0 %955
      %957 = vrot.lane.b32.xlu0 %v452, 12
      %v958 = vpop.permute.xlu0 %957
      %959 = vrot.lane.b32.xlu0 %v453, 12
      %v960 = vpop.permute.xlu0 %959
      %961 = vrot.lane.b32.xlu0 %v454, 12
      %v962 = vpop.permute.xlu0 %961
      %963 = vrot.lane.b32.xlu0 %v455, 12
      %v964 = vpop.permute.xlu0 %963
      %965 = vrot.lane.b32.xlu0 %v456, 12
      %v966 = vpop.permute.xlu0 %965
      %967 = vrot.lane.b32.xlu0 %v457, 12
      %v968 = vpop.permute.xlu0 %967
      %969 = vrot.lane.b32.xlu0 %v458, 12
      %v970 = vpop.permute.xlu0 %969
      %971 = vrot.lane.b32.xlu0 %v459, 12
      %v972 = vpop.permute.xlu0 %971
      %1037 = vrot.lane.b32.xlu0 %v460, 16
      %v1038 = vpop.permute.xlu0 %1037
      %1039 = vrot.lane.b32.xlu0 %v461, 16
      %v1040 = vpop.permute.xlu0 %1039
      %1041 = vrot.lane.b32.xlu0 %v462, 16
      %v1042 = vpop.permute.xlu0 %1041
      %1043 = vrot.lane.b32.xlu0 %v463, 16
      %v1044 = vpop.permute.xlu0 %1043
      %1045 = vrot.lane.b32.xlu0 %v464, 16
      %v1046 = vpop.permute.xlu0 %1045
      %1047 = vrot.lane.b32.xlu0 %v465, 16
      %v1048 = vpop.permute.xlu0 %1047
      %1049 = vrot.lane.b32.xlu0 %v466, 16
      %v1050 = vpop.permute.xlu0 %1049
      %1051 = vrot.lane.b32.xlu0 %v467, 16
      %v1052 = vpop.permute.xlu0 %1051
      %1053 = vrot.lane.b32.xlu0 %v468, 16
      %v1054 = vpop.permute.xlu0 %1053
      %1055 = vrot.lane.b32.xlu0 %v469, 16
      %v1056 = vpop.permute.xlu0 %1055
      %1057 = vrot.lane.b32.xlu0 %v470, 16
      %v1058 = vpop.permute.xlu0 %1057
      %1059 = vrot.lane.b32.xlu0 %v471, 16
      %v1060 = vpop.permute.xlu0 %1059
      %1061 = vrot.lane.b32.xlu0 %v472, 16
      %v1062 = vpop.permute.xlu0 %1061
      %1063 = vrot.lane.b32.xlu0 %v473, 16
      %v1064 = vpop.permute.xlu0 %1063
      %1065 = vrot.lane.b32.xlu0 %v474, 16
      %v1066 = vpop.permute.xlu0 %1065
      %1067 = vrot.lane.b32.xlu0 %v475, 16
      %v1068 = vpop.permute.xlu0 %1067
      %1069 = vrot.lane.b32.xlu0 %v476, 16
      %v1070 = vpop.permute.xlu0 %1069
      %1071 = vrot.lane.b32.xlu0 %v477, 16
      %v1072 = vpop.permute.xlu0 %1071
      %1073 = vrot.lane.b32.xlu0 %v478, 16
      %v1074 = vpop.permute.xlu0 %1073
      %1075 = vrot.lane.b32.xlu0 %v479, 16
      %v1076 = vpop.permute.xlu0 %1075
      %1077 = vrot.lane.b32.xlu0 %v480, 16
      %v1078 = vpop.permute.xlu0 %1077
      %1079 = vrot.lane.b32.xlu0 %v481, 16
      %v1080 = vpop.permute.xlu0 %1079
      %1081 = vrot.lane.b32.xlu0 %v482, 16
      %v1082 = vpop.permute.xlu0 %1081
      %1083 = vrot.lane.b32.xlu0 %v483, 16
      %v1084 = vpop.permute.xlu0 %1083
      %1085 = vrot.lane.b32.xlu0 %v484, 16
      %v1086 = vpop.permute.xlu0 %1085
      %1087 = vrot.lane.b32.xlu0 %v485, 16
      %v1088 = vpop.permute.xlu0 %1087
      %1089 = vrot.lane.b32.xlu0 %v486, 16
      %v1090 = vpop.permute.xlu0 %1089
      %1091 = vrot.lane.b32.xlu0 %v487, 16
      %v1092 = vpop.permute.xlu0 %1091
      %1093 = vrot.lane.b32.xlu0 %v488, 16
      %v1094 = vpop.permute.xlu0 %1093
      %1095 = vrot.lane.b32.xlu0 %v489, 16
      %v1096 = vpop.permute.xlu0 %1095
      %1097 = vrot.lane.b32.xlu0 %v490, 16
      %v1098 = vpop.permute.xlu0 %1097
      %1099 = vrot.lane.b32.xlu0 %v491, 16
      %v1100 = vpop.permute.xlu0 %1099
      %1165 = vrot.lane.b32.xlu0 %v492, 20
      %v1166 = vpop.permute.xlu0 %1165
      %1167 = vrot.lane.b32.xlu0 %v493, 20
      %v1168 = vpop.permute.xlu0 %1167
      %1169 = vrot.lane.b32.xlu0 %v494, 20
      %v1170 = vpop.permute.xlu0 %1169
      %1171 = vrot.lane.b32.xlu0 %v495, 20
      %v1172 = vpop.permute.xlu0 %1171
      %1173 = vrot.lane.b32.xlu0 %v496, 20
      %v1174 = vpop.permute.xlu0 %1173
      %1175 = vrot.lane.b32.xlu0 %v497, 20
      %v1176 = vpop.permute.xlu0 %1175
      %1177 = vrot.lane.b32.xlu0 %v498, 20
      %v1178 = vpop.permute.xlu0 %1177
      %1179 = vrot.lane.b32.xlu0 %v499, 20
      %v1180 = vpop.permute.xlu0 %1179
      %1181 = vrot.lane.b32.xlu0 %v500, 20
      %v1182 = vpop.permute.xlu0 %1181
      %1183 = vrot.lane.b32.xlu0 %v501, 20
      %v1184 = vpop.permute.xlu0 %1183
      %1185 = vrot.lane.b32.xlu0 %v502, 20
      %v1186 = vpop.permute.xlu0 %1185
      %1187 = vrot.lane.b32.xlu0 %v503, 20
      %v1188 = vpop.permute.xlu0 %1187
      %1189 = vrot.lane.b32.xlu0 %v504, 20
      %v1190 = vpop.permute.xlu0 %1189
      %1191 = vrot.lane.b32.xlu0 %v505, 20
      %v1192 = vpop.permute.xlu0 %1191
      %1193 = vrot.lane.b32.xlu0 %v506, 20
      %v1194 = vpop.permute.xlu0 %1193
      %1195 = vrot.lane.b32.xlu0 %v507, 20
      %v1196 = vpop.permute.xlu0 %1195
      %1197 = vrot.lane.b32.xlu0 %v508, 20
      %v1198 = vpop.permute.xlu0 %1197
      %1199 = vrot.lane.b32.xlu0 %v509, 20
      %v1200 = vpop.permute.xlu0 %1199
      %1201 = vrot.lane.b32.xlu0 %v510, 20
      %v1202 = vpop.permute.xlu0 %1201
      %1203 = vrot.lane.b32.xlu0 %v511, 20
      %v1204 = vpop.permute.xlu0 %1203
      %1205 = vrot.lane.b32.xlu0 %v512, 20
      %v1206 = vpop.permute.xlu0 %1205
      %1207 = vrot.lane.b32.xlu0 %v513, 20
      %v1208 = vpop.permute.xlu0 %1207
      %1209 = vrot.lane.b32.xlu0 %v514, 20
      %v1210 = vpop.permute.xlu0 %1209
      %1211 = vrot.lane.b32.xlu0 %v515, 20
      %v1212 = vpop.permute.xlu0 %1211
      %1213 = vrot.lane.b32.xlu0 %v516, 20
      %v1214 = vpop.permute.xlu0 %1213
      %1215 = vrot.lane.b32.xlu0 %v517, 20
      %v1216 = vpop.permute.xlu0 %1215
      %1217 = vrot.lane.b32.xlu0 %v518, 20
      %v1218 = vpop.permute.xlu0 %1217
      %1219 = vrot.lane.b32.xlu0 %v519, 20
      %v1220 = vpop.permute.xlu0 %1219
      %1221 = vrot.lane.b32.xlu0 %v520, 20
      %v1222 = vpop.permute.xlu0 %1221
      %1223 = vrot.lane.b32.xlu0 %v521, 20
      %v1224 = vpop.permute.xlu0 %1223
      %1225 = vrot.lane.b32.xlu0 %v522, 20
      %v1226 = vpop.permute.xlu0 %1225
      %1227 = vrot.lane.b32.xlu0 %v523, 20
      %v1228 = vpop.permute.xlu0 %1227
      %1293 = vrot.lane.b32.xlu0 %v525, 24
      %v1294 = vpop.permute.xlu0 %1293
      %1295 = vrot.lane.b32.xlu0 %v526, 24
      %v1296 = vpop.permute.xlu0 %1295
      %1297 = vrot.lane.b32.xlu0 %v527, 24
      %v1298 = vpop.permute.xlu0 %1297
      %1299 = vrot.lane.b32.xlu0 %v528, 24
      %v1300 = vpop.permute.xlu0 %1299
      %1301 = vrot.lane.b32.xlu0 %v529, 24
      %v1302 = vpop.permute.xlu0 %1301
      %1303 = vrot.lane.b32.xlu0 %v530, 24
      %v1304 = vpop.permute.xlu0 %1303
      %1305 = vrot.lane.b32.xlu0 %v531, 24
      %v1306 = vpop.permute.xlu0 %1305
      %1307 = vrot.lane.b32.xlu0 %v532, 24
      %v1308 = vpop.permute.xlu0 %1307
      %1309 = vrot.lane.b32.xlu0 %v533, 24
      %v1310 = vpop.permute.xlu0 %1309
      %1311 = vrot.lane.b32.xlu0 %v534, 24
      %v1312 = vpop.permute.xlu0 %1311
      %1313 = vrot.lane.b32.xlu0 %v535, 24
      %v1314 = vpop.permute.xlu0 %1313
      %1315 = vrot.lane.b32.xlu0 %v536, 24
      %v1316 = vpop.permute.xlu0 %1315
      %1317 = vrot.lane.b32.xlu0 %v537, 24
      %v1318 = vpop.permute.xlu0 %1317
      %1319 = vrot.lane.b32.xlu0 %v538, 24
      %v1320 = vpop.permute.xlu0 %1319
      %1321 = vrot.lane.b32.xlu0 %v539, 24
      %v1322 = vpop.permute.xlu0 %1321
      %1323 = vrot.lane.b32.xlu0 %v540, 24
      %v1324 = vpop.permute.xlu0 %1323
      %1325 = vrot.lane.b32.xlu0 %v541, 24
      %v1326 = vpop.permute.xlu0 %1325
      %1327 = vrot.lane.b32.xlu0 %v542, 24
      %v1328 = vpop.permute.xlu0 %1327
      %1329 = vrot.lane.b32.xlu0 %v543, 24
      %v1330 = vpop.permute.xlu0 %1329
      %1331 = vrot.lane.b32.xlu0 %v544, 24
      %v1332 = vpop.permute.xlu0 %1331
      %1333 = vrot.lane.b32.xlu0 %v545, 24
      %v1334 = vpop.permute.xlu0 %1333
      %1335 = vrot.lane.b32.xlu0 %v546, 24
      %v1336 = vpop.permute.xlu0 %1335
      %1337 = vrot.lane.b32.xlu0 %v547, 24
      %v1338 = vpop.permute.xlu0 %1337
      %1339 = vrot.lane.b32.xlu0 %v548, 24
      %v1340 = vpop.permute.xlu0 %1339
      %1341 = vrot.lane.b32.xlu0 %v549, 24
      %v1342 = vpop.permute.xlu0 %1341
      %1343 = vrot.lane.b32.xlu0 %v550, 24
      %v1344 = vpop.permute.xlu0 %1343
      %1345 = vrot.lane.b32.xlu0 %v551, 24
      %v1346 = vpop.permute.xlu0 %1345
      %1347 = vrot.lane.b32.xlu0 %v552, 24
      %v1348 = vpop.permute.xlu0 %1347
      %1349 = vrot.lane.b32.xlu0 %v553, 24
      %v1350 = vpop.permute.xlu0 %1349
      %1351 = vrot.lane.b32.xlu0 %v554, 24
      %v1352 = vpop.permute.xlu0 %1351
      %1353 = vrot.lane.b32.xlu0 %v555, 24
      %v1354 = vpop.permute.xlu0 %1353
      %1355 = vrot.lane.b32.xlu0 %v556, 24
      %v1356 = vpop.permute.xlu0 %1355
      %1421 = vrot.lane.b32.xlu0 %v557, 28
      %v1422 = vpop.permute.xlu0 %1421
      %1423 = vrot.lane.b32.xlu0 %v558, 28
      %v1424 = vpop.permute.xlu0 %1423
      %1425 = vrot.lane.b32.xlu0 %v559, 28
      %v1426 = vpop.permute.xlu0 %1425
      %1427 = vrot.lane.b32.xlu0 %v560, 28
      %v1428 = vpop.permute.xlu0 %1427
      %1429 = vrot.lane.b32.xlu0 %v561, 28
      %v1430 = vpop.permute.xlu0 %1429
      %1431 = vrot.lane.b32.xlu0 %v562, 28
      %v1432 = vpop.permute.xlu0 %1431
      %1433 = vrot.lane.b32.xlu0 %v563, 28
      %v1434 = vpop.permute.xlu0 %1433
      %1435 = vrot.lane.b32.xlu0 %v564, 28
      %v1436 = vpop.permute.xlu0 %1435
      %1437 = vrot.lane.b32.xlu0 %v565, 28
      %v1438 = vpop.permute.xlu0 %1437
      %1439 = vrot.lane.b32.xlu0 %v566, 28
      %v1440 = vpop.permute.xlu0 %1439
      %1441 = vrot.lane.b32.xlu0 %v567, 28
      %v1442 = vpop.permute.xlu0 %1441
      %1443 = vrot.lane.b32.xlu0 %v568, 28
      %v1444 = vpop.permute.xlu0 %1443
      %1445 = vrot.lane.b32.xlu0 %v569, 28
      %v1446 = vpop.permute.xlu0 %1445
      %1447 = vrot.lane.b32.xlu0 %v570, 28
      %v1448 = vpop.permute.xlu0 %1447
      %1449 = vrot.lane.b32.xlu0 %v571, 28
      %v1450 = vpop.permute.xlu0 %1449
      %1451 = vrot.lane.b32.xlu0 %v572, 28
      %v1452 = vpop.permute.xlu0 %1451
      %1453 = vrot.lane.b32.xlu0 %v573, 28
      %v1454 = vpop.permute.xlu0 %1453
      %1455 = vrot.lane.b32.xlu0 %v574, 28
      %v1456 = vpop.permute.xlu0 %1455
      %1457 = vrot.lane.b32.xlu0 %v575, 28
      %v1458 = vpop.permute.xlu0 %1457
      %1459 = vrot.lane.b32.xlu0 %v576, 28
      %v1460 = vpop.permute.xlu0 %1459
      %1461 = vrot.lane.b32.xlu0 %v577, 28
      %v1462 = vpop.permute.xlu0 %1461
      %1463 = vrot.lane.b32.xlu0 %v578, 28
      %v1464 = vpop.permute.xlu0 %1463
      %1465 = vrot.lane.b32.xlu0 %v579, 28
      %v1466 = vpop.permute.xlu0 %1465
      %1467 = vrot.lane.b32.xlu0 %v580, 28
      %v1468 = vpop.permute.xlu0 %1467
      %1469 = vrot.lane.b32.xlu0 %v581, 28
      %v1470 = vpop.permute.xlu0 %1469
      %1471 = vrot.lane.b32.xlu0 %v582, 28
      %v1472 = vpop.permute.xlu0 %1471
      %1473 = vrot.lane.b32.xlu0 %v583, 28
      %v1474 = vpop.permute.xlu0 %1473
      %1475 = vrot.lane.b32.xlu0 %v584, 28
      %v1476 = vpop.permute.xlu0 %1475
      %1477 = vrot.lane.b32.xlu0 %v585, 28
      %v1478 = vpop.permute.xlu0 %1477
      %1479 = vrot.lane.b32.xlu0 %v586, 28
      %v1480 = vpop.permute.xlu0 %1479
      %1481 = vrot.lane.b32.xlu0 %v587, 28
      %v1482 = vpop.permute.xlu0 %1481
      %1483 = vrot.lane.b32.xlu0 %v588, 28
      %v1484 = vpop.permute.xlu0 %1483
      %1549 = vrot.lane.b32.xlu0 %v589, 32
      %v1550 = vpop.permute.xlu0 %1549
      %1551 = vrot.lane.b32.xlu0 %v590, 32
      %v1552 = vpop.permute.xlu0 %1551
      %1553 = vrot.lane.b32.xlu0 %v591, 32
      %v1554 = vpop.permute.xlu0 %1553
      %1555 = vrot.lane.b32.xlu0 %v592, 32
      %v1556 = vpop.permute.xlu0 %1555
      %1557 = vrot.lane.b32.xlu0 %v593, 32
      %v1558 = vpop.permute.xlu0 %1557
      %1559 = vrot.lane.b32.xlu0 %v594, 32
      %v1560 = vpop.permute.xlu0 %1559
      %1561 = vrot.lane.b32.xlu0 %v595, 32
      %v1562 = vpop.permute.xlu0 %1561
      %1563 = vrot.lane.b32.xlu0 %v596, 32
      %v1564 = vpop.permute.xlu0 %1563
      %1565 = vrot.lane.b32.xlu0 %v597, 32
      %v1566 = vpop.permute.xlu0 %1565
      %1567 = vrot.lane.b32.xlu0 %v598, 32
      %v1568 = vpop.permute.xlu0 %1567
      %1569 = vrot.lane.b32.xlu0 %v599, 32
      %v1570 = vpop.permute.xlu0 %1569
      %1571 = vrot.lane.b32.xlu0 %v600, 32
      %v1572 = vpop.permute.xlu0 %1571
      %1573 = vrot.lane.b32.xlu0 %v601, 32
      %v1574 = vpop.permute.xlu0 %1573
      %1575 = vrot.lane.b32.xlu0 %v602, 32
      %v1576 = vpop.permute.xlu0 %1575
      %1577 = vrot.lane.b32.xlu0 %v603, 32
      %v1578 = vpop.permute.xlu0 %1577
      %1579 = vrot.lane.b32.xlu0 %v604, 32
      %v1580 = vpop.permute.xlu0 %1579
      %1581 = vrot.lane.b32.xlu0 %v605, 32
      %v1582 = vpop.permute.xlu0 %1581
      %1583 = vrot.lane.b32.xlu0 %v606, 32
      %v1584 = vpop.permute.xlu0 %1583
      %1585 = vrot.lane.b32.xlu0 %v607, 32
      %v1586 = vpop.permute.xlu0 %1585
      %1587 = vrot.lane.b32.xlu0 %v608, 32
      %v1588 = vpop.permute.xlu0 %1587
      %1589 = vrot.lane.b32.xlu0 %v609, 32
      %v1590 = vpop.permute.xlu0 %1589
      %1591 = vrot.lane.b32.xlu0 %v610, 32
      %v1592 = vpop.permute.xlu0 %1591
      %1593 = vrot.lane.b32.xlu0 %v611, 32
      %v1594 = vpop.permute.xlu0 %1593
      %1595 = vrot.lane.b32.xlu0 %v612, 32
      %v1596 = vpop.permute.xlu0 %1595
      %1597 = vrot.lane.b32.xlu0 %v613, 32
      %v1598 = vpop.permute.xlu0 %1597
      %1599 = vrot.lane.b32.xlu0 %v614, 32
      %v1600 = vpop.permute.xlu0 %1599
      %1601 = vrot.lane.b32.xlu0 %v615, 32
      %v1602 = vpop.permute.xlu0 %1601
      %1603 = vrot.lane.b32.xlu0 %v616, 32
      %v1604 = vpop.permute.xlu0 %1603
      %1605 = vrot.lane.b32.xlu0 %v617, 32
      %v1606 = vpop.permute.xlu0 %1605
      %1607 = vrot.lane.b32.xlu0 %v618, 32
      %v1608 = vpop.permute.xlu0 %1607
      %1609 = vrot.lane.b32.xlu0 %v619, 32
      %v1610 = vpop.permute.xlu0 %1609
      %1611 = vrot.lane.b32.xlu0 %v620, 32
      %v1612 = vpop.permute.xlu0 %1611
      %v1645 = vsel %vm257, %v332, %v654
      %v1646 = vsel %vm257, %v333, %v656
      %v1647 = vsel %vm257, %v334, %v658
      %v1648 = vsel %vm257, %v335, %v660
      %v1649 = vsel %vm257, %v336, %v662
      %v1650 = vsel %vm257, %v337, %v664
      %v1651 = vsel %vm257, %v338, %v666
      %v1652 = vsel %vm257, %v339, %v668
      %v1653 = vsel %vm257, %v340, %v670
      %v1654 = vsel %vm257, %v341, %v672
      %v1655 = vsel %vm257, %v342, %v674
      %v1656 = vsel %vm257, %v343, %v676
      %v1657 = vsel %vm257, %v344, %v678
      %v1658 = vsel %vm257, %v345, %v680
      %v1659 = vsel %vm257, %v346, %v682
      %v1660 = vsel %vm257, %v347, %v684
      %v1661 = vsel %vm257, %v348, %v686
      %v1662 = vsel %vm257, %v349, %v688
      %v1663 = vsel %vm257, %v350, %v690
      %v1664 = vsel %vm257, %v351, %v692
      %v1665 = vsel %vm257, %v352, %v694
      %v1666 = vsel %vm257, %v353, %v696
      %v1667 = vsel %vm257, %v354, %v698
      %v1668 = vsel %vm257, %v355, %v700
      %v1669 = vsel %vm257, %v356, %v702
      %v1670 = vsel %vm257, %v357, %v704
      %v1671 = vsel %vm257, %v358, %v706
      %v1672 = vsel %vm257, %v359, %v708
      %v1673 = vsel %vm257, %v360, %v710
      %v1674 = vsel %vm257, %v361, %v712
      %v1675 = vsel %vm257, %v362, %v714
      %v1676 = vsel %vm257, %v363, %v716
      %vm1677 = vcmask 64512
      %v1678 = vsel %vm1677, %v1645, %v782
      %v1679 = vsel %vm1677, %v1646, %v784
      %v1680 = vsel %vm1677, %v1647, %v786
      %v1681 = vsel %vm1677, %v1648, %v788
      %v1682 = vsel %vm1677, %v1649, %v790
      %v1683 = vsel %vm1677, %v1650, %v792
      %v1684 = vsel %vm1677, %v1651, %v794
      %v1685 = vsel %vm1677, %v1652, %v796
      %v1686 = vsel %vm1677, %v1653, %v798
      %v1687 = vsel %vm1677, %v1654, %v800
      %v1688 = vsel %vm1677, %v1655, %v802
      %v1689 = vsel %vm1677, %v1656, %v804
      %v1690 = vsel %vm1677, %v1657, %v806
      %v1691 = vsel %vm1677, %v1658, %v808
      %v1692 = vsel %vm1677, %v1659, %v810
      %v1693 = vsel %vm1677, %v1660, %v812
      %v1694 = vsel %vm1677, %v1661, %v814
      %v1695 = vsel %vm1677, %v1662, %v816
      %v1696 = vsel %vm1677, %v1663, %v818
      %v1697 = vsel %vm1677, %v1664, %v820
      %v1698 = vsel %vm1677, %v1665, %v822
      %v1699 = vsel %vm1677, %v1666, %v824
      %v1700 = vsel %vm1677, %v1667, %v826
      %v1701 = vsel %vm1677, %v1668, %v828
      %v1702 = vsel %vm1677, %v1669, %v830
      %v1703 = vsel %vm1677, %v1670, %v832
      %v1704 = vsel %vm1677, %v1671, %v834
      %v1705 = vsel %vm1677, %v1672, %v836
      %v1706 = vsel %vm1677, %v1673, %v838
      %v1707 = vsel %vm1677, %v1674, %v840
      %v1708 = vsel %vm1677, %v1675, %v842
      %v1709 = vsel %vm1677, %v1676, %v844
      %vm1710 = vcmask 97280
      %v1711 = vsel %vm1710, %v1678, %v910
      %v1712 = vsel %vm1710, %v1679, %v912
      %v1713 = vsel %vm1710, %v1680, %v914
      %v1714 = vsel %vm1710, %v1681, %v916
      %v1715 = vsel %vm1710, %v1682, %v918
      %v1716 = vsel %vm1710, %v1683, %v920
      %v1717 = vsel %vm1710, %v1684, %v922
      %v1718 = vsel %vm1710, %v1685, %v924
      %v1719 = vsel %vm1710, %v1686, %v926
      %v1720 = vsel %vm1710, %v1687, %v928
      %v1721 = vsel %vm1710, %v1688, %v930
      %v1722 = vsel %vm1710, %v1689, %v932
      %v1723 = vsel %vm1710, %v1690, %v934
      %v1724 = vsel %vm1710, %v1691, %v936
      %v1725 = vsel %vm1710, %v1692, %v938
      %v1726 = vsel %vm1710, %v1693, %v940
      %v1727 = vsel %vm1710, %v1694, %v942
      %v1728 = vsel %vm1710, %v1695, %v944
      %v1729 = vsel %vm1710, %v1696, %v946
      %v1730 = vsel %vm1710, %v1697, %v948
      %v1731 = vsel %vm1710, %v1698, %v950
      %v1732 = vsel %vm1710, %v1699, %v952
      %v1733 = vsel %vm1710, %v1700, %v954
      %v1734 = vsel %vm1710, %v1701, %v956
      %v1735 = vsel %vm1710, %v1702, %v958
      %v1736 = vsel %vm1710, %v1703, %v960
      %v1737 = vsel %vm1710, %v1704, %v962
      %v1738 = vsel %vm1710, %v1705, %v964
      %v1739 = vsel %vm1710, %v1706, %v966
      %v1740 = vsel %vm1710, %v1707, %v968
      %v1741 = vsel %vm1710, %v1708, %v970
      %v1742 = vsel %vm1710, %v1709, %v972
      %vm1743 = vcmask 130048
      %v1744 = vsel %vm1743, %v1711, %v1038
      %v1745 = vsel %vm1743, %v1712, %v1040
      %v1746 = vsel %vm1743, %v1713, %v1042
      %v1747 = vsel %vm1743, %v1714, %v1044
      %v1748 = vsel %vm1743, %v1715, %v1046
      %v1749 = vsel %vm1743, %v1716, %v1048
      %v1750 = vsel %vm1743, %v1717, %v1050
      %v1751 = vsel %vm1743, %v1718, %v1052
      %v1752 = vsel %vm1743, %v1719, %v1054
      %v1753 = vsel %vm1743, %v1720, %v1056
      %v1754 = vsel %vm1743, %v1721, %v1058
      %v1755 = vsel %vm1743, %v1722, %v1060
      %v1756 = vsel %vm1743, %v1723, %v1062
      %v1757 = vsel %vm1743, %v1724, %v1064
      %v1758 = vsel %vm1743, %v1725, %v1066
      %v1759 = vsel %vm1743, %v1726, %v1068
      %v1760 = vsel %vm1743, %v1727, %v1070
      %v1761 = vsel %vm1743, %v1728, %v1072
      %v1762 = vsel %vm1743, %v1729, %v1074
      %v1763 = vsel %vm1743, %v1730, %v1076
      %v1764 = vsel %vm1743, %v1731, %v1078
      %v1765 = vsel %vm1743, %v1732, %v1080
      %v1766 = vsel %vm1743, %v1733, %v1082
      %v1767 = vsel %vm1743, %v1734, %v1084
      %v1768 = vsel %vm1743, %v1735, %v1086
      %v1769 = vsel %vm1743, %v1736, %v1088
      %v1770 = vsel %vm1743, %v1737, %v1090
      %v1771 = vsel %vm1743, %v1738, %v1092
      %v1772 = vsel %vm1743, %v1739, %v1094
      %v1773 = vsel %vm1743, %v1740, %v1096
      %v1774 = vsel %vm1743, %v1741, %v1098
      %v1775 = vsel %vm1743, %v1742, %v1100
      %vm1776 = vcmask 162816
      %v1777 = vsel %vm1776, %v1744, %v1166
      %v1778 = vsel %vm1776, %v1745, %v1168
      %v1779 = vsel %vm1776, %v1746, %v1170
      %v1780 = vsel %vm1776, %v1747, %v1172
      %v1781 = vsel %vm1776, %v1748, %v1174
      %v1782 = vsel %vm1776, %v1749, %v1176
      %v1783 = vsel %vm1776, %v1750, %v1178
      %v1784 = vsel %vm1776, %v1751, %v1180
      %v1785 = vsel %vm1776, %v1752, %v1182
      %v1786 = vsel %vm1776, %v1753, %v1184
      %v1787 = vsel %vm1776, %v1754, %v1186
      %v1788 = vsel %vm1776, %v1755, %v1188
      %v1789 = vsel %vm1776, %v1756, %v1190
      %v1790 = vsel %vm1776, %v1757, %v1192
      %v1791 = vsel %vm1776, %v1758, %v1194
      %v1792 = vsel %vm1776, %v1759, %v1196
      %v1793 = vsel %vm1776, %v1760, %v1198
      %v1794 = vsel %vm1776, %v1761, %v1200
      %v1795 = vsel %vm1776, %v1762, %v1202
      %v1796 = vsel %vm1776, %v1763, %v1204
      %v1797 = vsel %vm1776, %v1764, %v1206
      %v1798 = vsel %vm1776, %v1765, %v1208
      %v1799 = vsel %vm1776, %v1766, %v1210
      %v1800 = vsel %vm1776, %v1767, %v1212
      %v1801 = vsel %vm1776, %v1768, %v1214
      %v1802 = vsel %vm1776, %v1769, %v1216
      %v1803 = vsel %vm1776, %v1770, %v1218
      %v1804 = vsel %vm1776, %v1771, %v1220
      %v1805 = vsel %vm1776, %v1772, %v1222
      %v1806 = vsel %vm1776, %v1773, %v1224
      %v1807 = vsel %vm1776, %v1774, %v1226
      %v1808 = vsel %vm1776, %v1775, %v1228
      %vm1809 = vcmask 195584
      %v1810 = vsel %vm1809, %v1777, %v1294
      %v1811 = vsel %vm1809, %v1778, %v1296
      %v1812 = vsel %vm1809, %v1779, %v1298
      %v1813 = vsel %vm1809, %v1780, %v1300
      %v1814 = vsel %vm1809, %v1781, %v1302
      %v1815 = vsel %vm1809, %v1782, %v1304
      %v1816 = vsel %vm1809, %v1783, %v1306
      %v1817 = vsel %vm1809, %v1784, %v1308
      %v1818 = vsel %vm1809, %v1785, %v1310
      %v1819 = vsel %vm1809, %v1786, %v1312
      %v1820 = vsel %vm1809, %v1787, %v1314
      %v1821 = vsel %vm1809, %v1788, %v1316
      %v1822 = vsel %vm1809, %v1789, %v1318
      %v1823 = vsel %vm1809, %v1790, %v1320
      %v1824 = vsel %vm1809, %v1791, %v1322
      %v1825 = vsel %vm1809, %v1792, %v1324
      %v1826 = vsel %vm1809, %v1793, %v1326
      %v1827 = vsel %vm1809, %v1794, %v1328
      %v1828 = vsel %vm1809, %v1795, %v1330
      %v1829 = vsel %vm1809, %v1796, %v1332
      %v1830 = vsel %vm1809, %v1797, %v1334
      %v1831 = vsel %vm1809, %v1798, %v1336
      %v1832 = vsel %vm1809, %v1799, %v1338
      %v1833 = vsel %vm1809, %v1800, %v1340
      %v1834 = vsel %vm1809, %v1801, %v1342
      %v1835 = vsel %vm1809, %v1802, %v1344
      %v1836 = vsel %vm1809, %v1803, %v1346
      %v1837 = vsel %vm1809, %v1804, %v1348
      %v1838 = vsel %vm1809, %v1805, %v1350
      %v1839 = vsel %vm1809, %v1806, %v1352
      %v1840 = vsel %vm1809, %v1807, %v1354
      %v1841 = vsel %vm1809, %v1808, %v1356
      %vm1842 = vcmask 228352
      %v1843 = vsel %vm1842, %v1810, %v1422
      %v1844 = vsel %vm1842, %v1811, %v1424
      %v1845 = vsel %vm1842, %v1812, %v1426
      %v1846 = vsel %vm1842, %v1813, %v1428
      %v1847 = vsel %vm1842, %v1814, %v1430
      %v1848 = vsel %vm1842, %v1815, %v1432
      %v1849 = vsel %vm1842, %v1816, %v1434
      %v1850 = vsel %vm1842, %v1817, %v1436
      %v1851 = vsel %vm1842, %v1818, %v1438
      %v1852 = vsel %vm1842, %v1819, %v1440
      %v1853 = vsel %vm1842, %v1820, %v1442
      %v1854 = vsel %vm1842, %v1821, %v1444
      %v1855 = vsel %vm1842, %v1822, %v1446
      %v1856 = vsel %vm1842, %v1823, %v1448
      %v1857 = vsel %vm1842, %v1824, %v1450
      %v1858 = vsel %vm1842, %v1825, %v1452
      %v1859 = vsel %vm1842, %v1826, %v1454
      %v1860 = vsel %vm1842, %v1827, %v1456
      %v1861 = vsel %vm1842, %v1828, %v1458
      %v1862 = vsel %vm1842, %v1829, %v1460
      %v1863 = vsel %vm1842, %v1830, %v1462
      %v1864 = vsel %vm1842, %v1831, %v1464
      %v1865 = vsel %vm1842, %v1832, %v1466
      %v1866 = vsel %vm1842, %v1833, %v1468
      %v1867 = vsel %vm1842, %v1834, %v1470
      %v1868 = vsel %vm1842, %v1835, %v1472
      %v1869 = vsel %vm1842, %v1836, %v1474
      %v1870 = vsel %vm1842, %v1837, %v1476
      %v1871 = vsel %vm1842, %v1838, %v1478
      %v1872 = vsel %vm1842, %v1839, %v1480
      %v1873 = vsel %vm1842, %v1840, %v1482
      %v1874 = vsel %vm1842, %v1841, %v1484
      %vm1875 = vcmask 261120
      %v1876 = vsel %vm1875, %v1843, %v1550
      %v1877 = vsel %vm1875, %v1844, %v1552
      %v1878 = vsel %vm1875, %v1845, %v1554
      %v1879 = vsel %vm1875, %v1846, %v1556
      %v1880 = vsel %vm1875, %v1847, %v1558
      %v1881 = vsel %vm1875, %v1848, %v1560
      %v1882 = vsel %vm1875, %v1849, %v1562
      %v1883 = vsel %vm1875, %v1850, %v1564
      %v1884 = vsel %vm1875, %v1851, %v1566
      %v1885 = vsel %vm1875, %v1852, %v1568
      %v1886 = vsel %vm1875, %v1853, %v1570
      %v1887 = vsel %vm1875, %v1854, %v1572
      %v1888 = vsel %vm1875, %v1855, %v1574
      %v1889 = vsel %vm1875, %v1856, %v1576
      %v1890 = vsel %vm1875, %v1857, %v1578
      %v1891 = vsel %vm1875, %v1858, %v1580
      %v1892 = vsel %vm1875, %v1859, %v1582
      %v1893 = vsel %vm1875, %v1860, %v1584
      %v1894 = vsel %vm1875, %v1861, %v1586
      %v1895 = vsel %vm1875, %v1862, %v1588
      %v1896 = vsel %vm1875, %v1863, %v1590
      %v1897 = vsel %vm1875, %v1864, %v1592
      %v1898 = vsel %vm1875, %v1865, %v1594
      %v1899 = vsel %vm1875, %v1866, %v1596
      %v1900 = vsel %vm1875, %v1867, %v1598
      %v1901 = vsel %vm1875, %v1868, %v1600
      %v1902 = vsel %vm1875, %v1869, %v1602
      %v1903 = vsel %vm1875, %v1870, %v1604
      %v1904 = vsel %vm1875, %v1871, %v1606
      %v1905 = vsel %vm1875, %v1872, %v1608
      %v1906 = vsel %vm1875, %v1873, %v1610
      %v1907 = vsel %vm1875, %v1874, %v1612
      %v1908 = vld [vmem:[%s1] sm:$0xff]
      %v1909 = vld [vmem:[%s1 + $0x8] sm:$0xff]
      %v1910 = vld [vmem:[%s1 + $0x10] sm:$0xff]
      %v1911 = vld [vmem:[%s1 + $0x18] sm:$0xff]
      %v1912 = vld [vmem:[%s1 + $0x20] sm:$0xf]
      %v1913 = vld [vmem:[%s2] sm:$0x1]
      %v1915 = vperm.slane %v1913, 0
      %vm1917 = vcmask 293888
      %v1919 = vsel %vm1917, %v1876, 0
      %v1922 = vsel %vm1917, %v1877, 0
      %v1925 = vsel %vm1917, %v1878, 0
      %v1928 = vsel %vm1917, %v1879, 0
      %v1931 = vsel %vm1917, %v1880, 0
      %v1934 = vsel %vm1917, %v1881, 0
      %v1937 = vsel %vm1917, %v1882, 0
      %v1940 = vsel %vm1917, %v1883, 0
      %v1943 = vsel %vm1917, %v1884, 0
      %v1946 = vsel %vm1917, %v1885, 0
      %v1949 = vsel %vm1917, %v1886, 0
      %v1952 = vsel %vm1917, %v1887, 0
      %v1955 = vsel %vm1917, %v1888, 0
      %v1958 = vsel %vm1917, %v1889, 0
      %v1961 = vsel %vm1917, %v1890, 0
      %v1964 = vsel %vm1917, %v1891, 0
      %v1967 = vsel %vm1917, %v1892, 0
      %v1970 = vsel %vm1917, %v1893, 0
      %v1973 = vsel %vm1917, %v1894, 0
      %v1976 = vsel %vm1917, %v1895, 0
      %v1979 = vsel %vm1917, %v1896, 0
      %v1982 = vsel %vm1917, %v1897, 0
      %v1985 = vsel %vm1917, %v1898, 0
      %v1988 = vsel %vm1917, %v1899, 0
      %v1991 = vsel %vm1917, %v1900, 0
      %v1994 = vsel %vm1917, %v1901, 0
      %v1997 = vsel %vm1917, %v1902, 0
      %v2000 = vsel %vm1917, %v1903, 0
      %v2003 = vsel %vm1917, %v1904, 0
      %v2006 = vsel %vm1917, %v1905, 0
      %v2009 = vsel %vm1917, %v1906, 0
      %v2012 = vsel %vm1917, %v1907, 0
      %vm2014 = vcmask 1043456
      %v2016 = vsel %vm2014, %v1912, 0
      %2018 = vmatpush.msra.mxu0 0.0
      %2019 = vmatpush.msra.mxu0 0.0
      %2020 = vmatpush.msra.mxu0 0.0
      %2021 = vmatpush.msra.mxu0 0.0
      %2022 = vmatpush.msra.mxu0 0.0
      %2023 = vmatpush.msra.mxu0 0.0
      %2024 = vmatpush.msra.mxu0 0.0
      %2025 = vmatpush.msra.mxu0 0.0
      %2026 = vmatpush.msra.mxu0 0.0
      %2027 = vmatpush.msra.mxu0 0.0
      %2028 = vmatpush.msra.mxu0 0.0
      %2029 = vmatpush.msra.mxu0 %v2016
      %2030 = vmatpush.msra.mxu0 %v1911
      %2031 = vmatpush.msra.mxu0 %v1910
      %2032 = vmatpush.msra.mxu0 %v1909
      %2033 = vmatpush.msra.mxu0 %v1908
      %2034 = vmatmul.f32.gmra.mxu0 %v1919
      %v2035 = vpop.f32.mrf.mxu0
      %v2036 = vadd.f32 %v1915, %v2035
      %2037 = vmatmul.f32.gmra.mxu0 %v1922
      %v2038 = vpop.f32.mrf.mxu0
      %v2039 = vadd.f32 %v1915, %v2038
      %2040 = vmatmul.f32.gmra.mxu0 %v1925
      %v2041 = vpop.f32.mrf.mxu0
      %v2042 = vadd.f32 %v1915, %v2041
      %2043 = vmatmul.f32.gmra.mxu0 %v1928
      %v2044 = vpop.f32.mrf.mxu0
      %v2045 = vadd.f32 %v1915, %v2044
      %2046 = vmatmul.f32.gmra.mxu0 %v1931
      %v2047 = vpop.f32.mrf.mxu0
      %v2048 = vadd.f32 %v1915, %v2047
      %2049 = vmatmul.f32.gmra.mxu0 %v1934
      %v2050 = vpop.f32.mrf.mxu0
      %v2051 = vadd.f32 %v1915, %v2050
      %2052 = vmatmul.f32.gmra.mxu0 %v1937
      %v2053 = vpop.f32.mrf.mxu0
      %v2054 = vadd.f32 %v1915, %v2053
      %2055 = vmatmul.f32.gmra.mxu0 %v1940
      %v2056 = vpop.f32.mrf.mxu0
      %v2057 = vadd.f32 %v1915, %v2056
      %2058 = vmatmul.f32.gmra.mxu0 %v1943
      %v2059 = vpop.f32.mrf.mxu0
      %v2060 = vadd.f32 %v1915, %v2059
      %2061 = vmatmul.f32.gmra.mxu0 %v1946
      %v2062 = vpop.f32.mrf.mxu0
      %v2063 = vadd.f32 %v1915, %v2062
      %2064 = vmatmul.f32.gmra.mxu0 %v1949
      %v2065 = vpop.f32.mrf.mxu0
      %v2066 = vadd.f32 %v1915, %v2065
      %2067 = vmatmul.f32.gmra.mxu0 %v1952
      %v2068 = vpop.f32.mrf.mxu0
      %v2069 = vadd.f32 %v1915, %v2068
      %2070 = vmatmul.f32.gmra.mxu0 %v1955
      %v2071 = vpop.f32.mrf.mxu0
      %v2072 = vadd.f32 %v1915, %v2071
      %2073 = vmatmul.f32.gmra.mxu0 %v1958
      %v2074 = vpop.f32.mrf.mxu0
      %v2075 = vadd.f32 %v1915, %v2074
      %2076 = vmatmul.f32.gmra.mxu0 %v1961
      %v2077 = vpop.f32.mrf.mxu0
      %v2078 = vadd.f32 %v1915, %v2077
      %2079 = vmatmul.f32.gmra.mxu0 %v1964
      %v2080 = vpop.f32.mrf.mxu0
      %v2081 = vadd.f32 %v1915, %v2080
      %2082 = vmatmul.f32.gmra.mxu0 %v1967
      %v2083 = vpop.f32.mrf.mxu0
      %v2084 = vadd.f32 %v1915, %v2083
      %2085 = vmatmul.f32.gmra.mxu0 %v1970
      %v2086 = vpop.f32.mrf.mxu0
      %v2087 = vadd.f32 %v1915, %v2086
      %2088 = vmatmul.f32.gmra.mxu0 %v1973
      %v2089 = vpop.f32.mrf.mxu0
      %v2090 = vadd.f32 %v1915, %v2089
      %2091 = vmatmul.f32.gmra.mxu0 %v1976
      %v2092 = vpop.f32.mrf.mxu0
      %v2093 = vadd.f32 %v1915, %v2092
      %2094 = vmatmul.f32.gmra.mxu0 %v1979
      %v2095 = vpop.f32.mrf.mxu0
      %v2096 = vadd.f32 %v1915, %v2095
      %2097 = vmatmul.f32.gmra.mxu0 %v1982
      %v2098 = vpop.f32.mrf.mxu0
      %v2099 = vadd.f32 %v1915, %v2098
      %2100 = vmatmul.f32.gmra.mxu0 %v1985
      %v2101 = vpop.f32.mrf.mxu0
      %v2102 = vadd.f32 %v1915, %v2101
      %2103 = vmatmul.f32.gmra.mxu0 %v1988
      %v2104 = vpop.f32.mrf.mxu0
      %v2105 = vadd.f32 %v1915, %v2104
      %2106 = vmatmul.f32.gmra.mxu0 %v1991
      %v2107 = vpop.f32.mrf.mxu0
      %v2108 = vadd.f32 %v1915, %v2107
      %2109 = vmatmul.f32.gmra.mxu0 %v1994
      %v2110 = vpop.f32.mrf.mxu0
      %v2111 = vadd.f32 %v1915, %v2110
      %2112 = vmatmul.f32.gmra.mxu0 %v1997
      %v2113 = vpop.f32.mrf.mxu0
      %v2114 = vadd.f32 %v1915, %v2113
      %2115 = vmatmul.f32.gmra.mxu0 %v2000
      %v2116 = vpop.f32.mrf.mxu0
      %v2117 = vadd.f32 %v1915, %v2116
      %2118 = vmatmul.f32.gmra.mxu0 %v2003
      %v2119 = vpop.f32.mrf.mxu0
      %v2120 = vadd.f32 %v1915, %v2119
      %2121 = vmatmul.f32.gmra.mxu0 %v2006
      %v2122 = vpop.f32.mrf.mxu0
      %v2123 = vadd.f32 %v1915, %v2122
      %2124 = vmatmul.f32.gmra.mxu0 %v2009
      %v2125 = vpop.f32.mrf.mxu0
      %v2126 = vadd.f32 %v1915, %v2125
      %2127 = vmatmul.f32.gmra.mxu0 %v2012
      %v2128 = vpop.f32.mrf.mxu0
      %v2129 = vadd.f32 %v1915, %v2128
      %2130 = vdwg.mxu0
      %v2131 = vmax.f32 %v2036, 0.0
      %v2132 = vmax.f32 %v2039, 0.0
      %v2133 = vmax.f32 %v2042, 0.0
      %v2134 = vmax.f32 %v2045, 0.0
      %v2135 = vmax.f32 %v2048, 0.0
      %v2136 = vmax.f32 %v2051, 0.0
      %v2137 = vmax.f32 %v2054, 0.0
      %v2138 = vmax.f32 %v2057, 0.0
      %v2139 = vmax.f32 %v2060, 0.0
      %v2140 = vmax.f32 %v2063, 0.0
      %v2141 = vmax.f32 %v2066, 0.0
      %v2142 = vmax.f32 %v2069, 0.0
      %v2143 = vmax.f32 %v2072, 0.0
      %v2144 = vmax.f32 %v2075, 0.0
      %v2145 = vmax.f32 %v2078, 0.0
      %v2146 = vmax.f32 %v2081, 0.0
      %v2147 = vmax.f32 %v2084, 0.0
      %v2148 = vmax.f32 %v2087, 0.0
      %v2149 = vmax.f32 %v2090, 0.0
      %v2150 = vmax.f32 %v2093, 0.0
      %v2151 = vmax.f32 %v2096, 0.0
      %v2152 = vmax.f32 %v2099, 0.0
      %v2153 = vmax.f32 %v2102, 0.0
      %v2154 = vmax.f32 %v2105, 0.0
      %v2155 = vmax.f32 %v2108, 0.0
      %v2156 = vmax.f32 %v2111, 0.0
      %v2157 = vmax.f32 %v2114, 0.0
      %v2158 = vmax.f32 %v2117, 0.0
      %v2159 = vmax.f32 %v2120, 0.0
      %v2160 = vmax.f32 %v2123, 0.0
      %v2161 = vmax.f32 %v2126, 0.0
      %v2162 = vmax.f32 %v2129, 0.0
      %2163 = vst.msk [vmem:[#allocation3] sm:$0xff] %vm257, 0.0
      %2164 = vst.msk [vmem:[#allocation3 + $0x20] sm:$0xff] %vm257, 0.0
      %2165 = vst.msk [vmem:[#allocation3 + $0x40] sm:$0xff] %vm257, 0.0
      %2166 = vst.msk [vmem:[#allocation3 + $0x60] sm:$0xff] %vm257, 0.0
      %2167 = vst.msk [vmem:[#allocation3 + $0x80] sm:$0xff] %vm257, 0.0
      %2168 = vst.msk [vmem:[#allocation3 + $0xa0] sm:$0xff] %vm257, 0.0
      %2169 = vst.msk [vmem:[#allocation3 + $0xc0] sm:$0xff] %vm257, 0.0
      %2170 = vst.msk [vmem:[#allocation3 + $0xe0] sm:$0xff] %vm257, 0.0
      %2171 = vst.msk [vmem:[#allocation3 + $0x100] sm:$0xff] %vm257, 0.0
      %2172 = vst.msk [vmem:[#allocation3 + $0x120] sm:$0xff] %vm257, 0.0
      %2173 = vst.msk [vmem:[#allocation3 + $0x140] sm:$0xff] %vm257, 0.0
      %2174 = vst.msk [vmem:[#allocation3 + $0x160] sm:$0xff] %vm257, 0.0
      %2175 = vst.msk [vmem:[#allocation3 + $0x180] sm:$0xff] %vm257, 0.0
      %2176 = vst.msk [vmem:[#allocation3 + $0x1a0] sm:$0xff] %vm257, 0.0
      %2177 = vst.msk [vmem:[#allocation3 + $0x1c0] sm:$0xff] %vm257, 0.0
      %2178 = vst.msk [vmem:[#allocation3 + $0x1e0] sm:$0xff] %vm257, 0.0
      %2179 = vst.msk [vmem:[#allocation3 + $0x200] sm:$0xff] %vm257, 0.0
      %2180 = vst.msk [vmem:[#allocation3 + $0x220] sm:$0xff] %vm257, 0.0
      %2181 = vst.msk [vmem:[#allocation3 + $0x18] sm:$0xff] %vm257, 0.0
      %2182 = vst.msk [vmem:[#allocation3 + $0x38] sm:$0xff] %vm257, 0.0
      %2183 = vst.msk [vmem:[#allocation3 + $0x58] sm:$0xff] %vm257, 0.0
      %2184 = vst.msk [vmem:[#allocation3 + $0x78] sm:$0xff] %vm257, 0.0
      %2185 = vst.msk [vmem:[#allocation3 + $0x98] sm:$0xff] %vm257, 0.0
      %2186 = vst.msk [vmem:[#allocation3 + $0xb8] sm:$0xff] %vm257, 0.0
      %2187 = vst.msk [vmem:[#allocation3 + $0xd8] sm:$0xff] %vm257, 0.0
      %2188 = vst.msk [vmem:[#allocation3 + $0xf8] sm:$0xff] %vm257, 0.0
      %2189 = vst.msk [vmem:[#allocation3 + $0x118] sm:$0xff] %vm257, 0.0
      %2190 = vst.msk [vmem:[#allocation3 + $0x138] sm:$0xff] %vm257, 0.0
      %2191 = vst.msk [vmem:[#allocation3 + $0x158] sm:$0xff] %vm257, 0.0
      %2192 = vst.msk [vmem:[#allocation3 + $0x178] sm:$0xff] %vm257, 0.0
      %2193 = vst.msk [vmem:[#allocation3 + $0x198] sm:$0xff] %vm257, 0.0
      %2194 = vst.msk [vmem:[#allocation3 + $0x1b8] sm:$0xff] %vm257, 0.0
      %2195 = vst.msk [vmem:[#allocation3 + $0x1d8] sm:$0xff] %vm257, 0.0
      %2196 = vst.msk [vmem:[#allocation3 + $0x1f8] sm:$0xff] %vm257, 0.0
      %2197 = vst.msk [vmem:[#allocation3 + $0x218] sm:$0xff] %vm257, 0.0
      %2198 = vst.msk [vmem:[#allocation3 + $0x238] sm:$0xff] %vm257, 0.0
      %2199 = vst.msk [vmem:[#allocation3 + $0x8] sm:$0xff] %vm257, 0.0
      %2200 = vst.msk [vmem:[#allocation3 + $0x10] sm:$0xff] %vm257, 0.0
      %s2201 = scalar_lea.vmem [#allocation3], 544
      %2202 = vst.msk [vmem:[%s2201 + $0x8] sm:$0xff] %vm257, 0.0
      %2203 = vst.msk [vmem:[%s2201 + $0x10] sm:$0xff] %vm257, 0.0
      %s2204 = scalar_lea.vmem [#allocation3], 32
      %2205 = vst.msk [vmem:[%s2204 + $0x8] sm:$0xff] %vm257, %v2131
      %2206 = vst.msk [vmem:[%s2204 + $0x10] sm:$0xff] %vm257, %v2132
      %2207 = vst.msk [vmem:[%s2204 + $0x28] sm:$0xff] %vm257, %v2133
      %2208 = vst.msk [vmem:[%s2204 + $0x30] sm:$0xff] %vm257, %v2134
      %2209 = vst.msk [vmem:[%s2204 + $0x48] sm:$0xff] %vm257, %v2135
      %2210 = vst.msk [vmem:[%s2204 + $0x50] sm:$0xff] %vm257, %v2136
      %2211 = vst.msk [vmem:[%s2204 + $0x68] sm:$0xff] %vm257, %v2137
      %2212 = vst.msk [vmem:[%s2204 + $0x70] sm:$0xff] %vm257, %v2138
      %2213 = vst.msk [vmem:[%s2204 + $0x88] sm:$0xff] %vm257, %v2139
      %2214 = vst.msk [vmem:[%s2204 + $0x90] sm:$0xff] %vm257, %v2140
      %2215 = vst.msk [vmem:[%s2204 + $0xa8] sm:$0xff] %vm257, %v2141
      %2216 = vst.msk [vmem:[%s2204 + $0xb0] sm:$0xff] %vm257, %v2142
      %2217 = vst.msk [vmem:[%s2204 + $0xc8] sm:$0xff] %vm257, %v2143
      %2218 = vst.msk [vmem:[%s2204 + $0xd0] sm:$0xff] %vm257, %v2144
      %2219 = vst.msk [vmem:[%s2204 + $0xe8] sm:$0xff] %vm257, %v2145
      %2220 = vst.msk [vmem:[%s2204 + $0xf0] sm:$0xff] %vm257, %v2146
      %2221 = vst.msk [vmem:[%s2204 + $0x108] sm:$0xff] %vm257, %v2147
      %2222 = vst.msk [vmem:[%s2204 + $0x110] sm:$0xff] %vm257, %v2148
      %2223 = vst.msk [vmem:[%s2204 + $0x128] sm:$0xff] %vm257, %v2149
      %2224 = vst.msk [vmem:[%s2204 + $0x130] sm:$0xff] %vm257, %v2150
      %2225 = vst.msk [vmem:[%s2204 + $0x148] sm:$0xff] %vm257, %v2151
      %2226 = vst.msk [vmem:[%s2204 + $0x150] sm:$0xff] %vm257, %v2152
      %2227 = vst.msk [vmem:[%s2204 + $0x168] sm:$0xff] %vm257, %v2153
      %2228 = vst.msk [vmem:[%s2204 + $0x170] sm:$0xff] %vm257, %v2154
      %2229 = vst.msk [vmem:[%s2204 + $0x188] sm:$0xff] %vm257, %v2155
      %2230 = vst.msk [vmem:[%s2204 + $0x190] sm:$0xff] %vm257, %v2156
      %2231 = vst.msk [vmem:[%s2204 + $0x1a8] sm:$0xff] %vm257, %v2157
      %2232 = vst.msk [vmem:[%s2204 + $0x1b0] sm:$0xff] %vm257, %v2158
      %2233 = vst.msk [vmem:[%s2204 + $0x1c8] sm:$0xff] %vm257, %v2159
      %2234 = vst.msk [vmem:[%s2204 + $0x1d0] sm:$0xff] %vm257, %v2160
      %2235 = vst.msk [vmem:[%s2204 + $0x1e8] sm:$0xff] %vm257, %v2161
      %2236 = vst.msk [vmem:[%s2204 + $0x1f0] sm:$0xff] %vm257, %v2162
      %v2237 = vld [vmem:[#allocation3 + $0x7] sm:$0xff]
      %v2238 = vld [vmem:[#allocation3 + $0xf] sm:$0xff]
      %v2239 = vld [vmem:[#allocation3 + $0x27] sm:$0xff]
      %v2240 = vld [vmem:[#allocation3 + $0x2f] sm:$0xff]
      %v2241 = vld [vmem:[#allocation3 + $0x47] sm:$0xff]
      %v2242 = vld [vmem:[#allocation3 + $0x4f] sm:$0xff]
      %v2243 = vld [vmem:[#allocation3 + $0x67] sm:$0xff]
      %v2244 = vld [vmem:[#allocation3 + $0x6f] sm:$0xff]
      %v2245 = vld [vmem:[#allocation3 + $0x87] sm:$0xff]
      %v2246 = vld [vmem:[#allocation3 + $0x8f] sm:$0xff]
      %v2247 = vld [vmem:[#allocation3 + $0xa7] sm:$0xff]
      %v2248 = vld [vmem:[#allocation3 + $0xaf] sm:$0xff]
      %v2249 = vld [vmem:[#allocation3 + $0xc7] sm:$0xff]
      %v2250 = vld [vmem:[#allocation3 + $0xcf] sm:$0xff]
      %v2251 = vld [vmem:[#allocation3 + $0xe7] sm:$0xff]
      %v2252 = vld [vmem:[#allocation3 + $0xef] sm:$0xff]
      %v2253 = vld [vmem:[#allocation3 + $0x107] sm:$0xff]
      %v2254 = vld [vmem:[#allocation3 + $0x10f] sm:$0xff]
      %v2255 = vld [vmem:[#allocation3 + $0x127] sm:$0xff]
      %v2256 = vld [vmem:[#allocation3 + $0x12f] sm:$0xff]
      %v2257 = vld [vmem:[#allocation3 + $0x147] sm:$0xff]
      %v2258 = vld [vmem:[#allocation3 + $0x14f] sm:$0xff]
      %v2259 = vld [vmem:[#allocation3 + $0x167] sm:$0xff]
      %v2260 = vld [vmem:[#allocation3 + $0x16f] sm:$0xff]
      %v2261 = vld [vmem:[#allocation3 + $0x187] sm:$0xff]
      %v2262 = vld [vmem:[#allocation3 + $0x18f] sm:$0xff]
      %v2263 = vld [vmem:[#allocation3 + $0x1a7] sm:$0xff]
      %v2264 = vld [vmem:[#allocation3 + $0x1af] sm:$0xff]
      %v2265 = vld [vmem:[#allocation3 + $0x1c7] sm:$0xff]
      %v2266 = vld [vmem:[#allocation3 + $0x1cf] sm:$0xff]
      %v2267 = vld [vmem:[#allocation3 + $0x1e7] sm:$0xff]
      %v2268 = vld [vmem:[#allocation3 + $0x1ef] sm:$0xff]
      %v2269 = vld [vmem:[#allocation3 + $0x8] sm:$0xff]
      %v2270 = vld [vmem:[#allocation3 + $0x10] sm:$0xff]
      %v2271 = vld [vmem:[#allocation3 + $0x28] sm:$0xff]
      %v2272 = vld [vmem:[#allocation3 + $0x30] sm:$0xff]
      %v2273 = vld [vmem:[#allocation3 + $0x48] sm:$0xff]
      %v2274 = vld [vmem:[#allocation3 + $0x50] sm:$0xff]
      %v2275 = vld [vmem:[#allocation3 + $0x68] sm:$0xff]
      %v2276 = vld [vmem:[#allocation3 + $0x70] sm:$0xff]
      %v2277 = vld [vmem:[#allocation3 + $0x88] sm:$0xff]
      %v2278 = vld [vmem:[#allocation3 + $0x90] sm:$0xff]
      %v2279 = vld [vmem:[#allocation3 + $0xa8] sm:$0xff]
      %v2280 = vld [vmem:[#allocation3 + $0xb0] sm:$0xff]
      %v2281 = vld [vmem:[#allocation3 + $0xc8] sm:$0xff]
      %v2282 = vld [vmem:[#allocation3 + $0xd0] sm:$0xff]
      %v2283 = vld [vmem:[#allocation3 + $0xe8] sm:$0xff]
      %v2284 = vld [vmem:[#allocation3 + $0xf0] sm:$0xff]
      %v2285 = vld [vmem:[#allocation3 + $0x108] sm:$0xff]
      %v2286 = vld [vmem:[#allocation3 + $0x110] sm:$0xff]
      %v2287 = vld [vmem:[#allocation3 + $0x128] sm:$0xff]
      %v2288 = vld [vmem:[#allocation3 + $0x130] sm:$0xff]
      %v2289 = vld [vmem:[#allocation3 + $0x148] sm:$0xff]
      %v2290 = vld [vmem:[#allocation3 + $0x150] sm:$0xff]
      %v2291 = vld [vmem:[#allocation3 + $0x168] sm:$0xff]
      %v2292 = vld [vmem:[#allocation3 + $0x170] sm:$0xff]
      %v2293 = vld [vmem:[#allocation3 + $0x188] sm:$0xff]
      %v2294 = vld [vmem:[#allocation3 + $0x190] sm:$0xff]
      %v2295 = vld [vmem:[#allocation3 + $0x1a8] sm:$0xff]
      %v2296 = vld [vmem:[#allocation3 + $0x1b0] sm:$0xff]
      %v2297 = vld [vmem:[#allocation3 + $0x1c8] sm:$0xff]
      %v2298 = vld [vmem:[#allocation3 + $0x1d0] sm:$0xff]
      %v2299 = vld [vmem:[#allocation3 + $0x1e8] sm:$0xff]
      %v2300 = vld [vmem:[#allocation3 + $0x1f0] sm:$0xff]
      %v2301 = vld [vmem:[#allocation3 + $0x9] sm:$0xff]
      %v2302 = vld [vmem:[#allocation3 + $0x11] sm:$0xff]
      %v2303 = vld [vmem:[#allocation3 + $0x29] sm:$0xff]
      %v2304 = vld [vmem:[#allocation3 + $0x31] sm:$0xff]
      %v2305 = vld [vmem:[#allocation3 + $0x49] sm:$0xff]
      %v2306 = vld [vmem:[#allocation3 + $0x51] sm:$0xff]
      %v2307 = vld [vmem:[#allocation3 + $0x69] sm:$0xff]
      %v2308 = vld [vmem:[#allocation3 + $0x71] sm:$0xff]
      %v2309 = vld [vmem:[#allocation3 + $0x89] sm:$0xff]
      %v2310 = vld [vmem:[#allocation3 + $0x91] sm:$0xff]
      %v2311 = vld [vmem:[#allocation3 + $0xa9] sm:$0xff]
      %v2312 = vld [vmem:[#allocation3 + $0xb1] sm:$0xff]
      %v2313 = vld [vmem:[#allocation3 + $0xc9] sm:$0xff]
      %v2314 = vld [vmem:[#allocation3 + $0xd1] sm:$0xff]
      %v2315 = vld [vmem:[#allocation3 + $0xe9] sm:$0xff]
      %v2316 = vld [vmem:[#allocation3 + $0xf1] sm:$0xff]
      %v2317 = vld [vmem:[#allocation3 + $0x109] sm:$0xff]
      %v2318 = vld [vmem:[#allocation3 + $0x111] sm:$0xff]
      %v2319 = vld [vmem:[#allocation3 + $0x129] sm:$0xff]
      %v2320 = vld [vmem:[#allocation3 + $0x131] sm:$0xff]
      %v2321 = vld [vmem:[#allocation3 + $0x149] sm:$0xff]
      %v2322 = vld [vmem:[#allocation3 + $0x151] sm:$0xff]
      %v2323 = vld [vmem:[#allocation3 + $0x169] sm:$0xff]
      %v2324 = vld [vmem:[#allocation3 + $0x171] sm:$0xff]
      %v2325 = vld [vmem:[#allocation3 + $0x189] sm:$0xff]
      %v2326 = vld [vmem:[#allocation3 + $0x191] sm:$0xff]
      %v2327 = vld [vmem:[#allocation3 + $0x1a9] sm:$0xff]
      %v2328 = vld [vmem:[#allocation3 + $0x1b1] sm:$0xff]
      %v2329 = vld [vmem:[#allocation3 + $0x1c9] sm:$0xff]
      %v2330 = vld [vmem:[#allocation3 + $0x1d1] sm:$0xff]
      %v2331 = vld [vmem:[#allocation3 + $0x1e9] sm:$0xff]
      %v2332 = vld [vmem:[#allocation3 + $0x1f1] sm:$0xff]
      %v2333 = vld [vmem:[%s2204 + $0x7] sm:$0xff]
      %v2334 = vld [vmem:[%s2204 + $0xf] sm:$0xff]
      %v2335 = vld [vmem:[%s2204 + $0x27] sm:$0xff]
      %v2336 = vld [vmem:[%s2204 + $0x2f] sm:$0xff]
      %v2337 = vld [vmem:[%s2204 + $0x47] sm:$0xff]
      %v2338 = vld [vmem:[%s2204 + $0x4f] sm:$0xff]
      %v2339 = vld [vmem:[%s2204 + $0x67] sm:$0xff]
      %v2340 = vld [vmem:[%s2204 + $0x6f] sm:$0xff]
      %v2341 = vld [vmem:[%s2204 + $0x87] sm:$0xff]
      %v2342 = vld [vmem:[%s2204 + $0x8f] sm:$0xff]
      %v2343 = vld [vmem:[%s2204 + $0xa7] sm:$0xff]
      %v2344 = vld [vmem:[%s2204 + $0xaf] sm:$0xff]
      %v2345 = vld [vmem:[%s2204 + $0xc7] sm:$0xff]
      %v2346 = vld [vmem:[%s2204 + $0xcf] sm:$0xff]
      %v2347 = vld [vmem:[%s2204 + $0xe7] sm:$0xff]
      %v2348 = vld [vmem:[%s2204 + $0xef] sm:$0xff]
      %v2349 = vld [vmem:[%s2204 + $0x107] sm:$0xff]
      %v2350 = vld [vmem:[%s2204 + $0x10f] sm:$0xff]
      %v2351 = vld [vmem:[%s2204 + $0x127] sm:$0xff]
      %v2352 = vld [vmem:[%s2204 + $0x12f] sm:$0xff]
      %v2353 = vld [vmem:[%s2204 + $0x147] sm:$0xff]
      %v2354 = vld [vmem:[%s2204 + $0x14f] sm:$0xff]
      %v2355 = vld [vmem:[%s2204 + $0x167] sm:$0xff]
      %v2356 = vld [vmem:[%s2204 + $0x16f] sm:$0xff]
      %v2357 = vld [vmem:[%s2204 + $0x187] sm:$0xff]
      %v2358 = vld [vmem:[%s2204 + $0x18f] sm:$0xff]
      %v2359 = vld [vmem:[%s2204 + $0x1a7] sm:$0xff]
      %v2360 = vld [vmem:[%s2204 + $0x1af] sm:$0xff]
      %v2361 = vld [vmem:[%s2204 + $0x1c7] sm:$0xff]
      %v2362 = vld [vmem:[%s2204 + $0x1cf] sm:$0xff]
      %v2363 = vld [vmem:[%s2204 + $0x1e7] sm:$0xff]
      %v2364 = vld [vmem:[%s2204 + $0x1ef] sm:$0xff]
      %v2365 = vld [vmem:[%s2204 + $0x8] sm:$0xff]
      %v2366 = vld [vmem:[%s2204 + $0x10] sm:$0xff]
      %v2367 = vld [vmem:[%s2204 + $0x28] sm:$0xff]
      %v2368 = vld [vmem:[%s2204 + $0x30] sm:$0xff]
      %v2369 = vld [vmem:[%s2204 + $0x48] sm:$0xff]
      %v2370 = vld [vmem:[%s2204 + $0x50] sm:$0xff]
      %v2371 = vld [vmem:[%s2204 + $0x68] sm:$0xff]
      %v2372 = vld [vmem:[%s2204 + $0x70] sm:$0xff]
      %v2373 = vld [vmem:[%s2204 + $0x88] sm:$0xff]
      %v2374 = vld [vmem:[%s2204 + $0x90] sm:$0xff]
      %v2375 = vld [vmem:[%s2204 + $0xa8] sm:$0xff]
      %v2376 = vld [vmem:[%s2204 + $0xb0] sm:$0xff]
      %v2377 = vld [vmem:[%s2204 + $0xc8] sm:$0xff]
      %v2378 = vld [vmem:[%s2204 + $0xd0] sm:$0xff]
      %v2379 = vld [vmem:[%s2204 + $0xe8] sm:$0xff]
      %v2380 = vld [vmem:[%s2204 + $0xf0] sm:$0xff]
      %v2381 = vld [vmem:[%s2204 + $0x108] sm:$0xff]
      %v2382 = vld [vmem:[%s2204 + $0x110] sm:$0xff]
      %v2383 = vld [vmem:[%s2204 + $0x128] sm:$0xff]
      %v2384 = vld [vmem:[%s2204 + $0x130] sm:$0xff]
      %v2385 = vld [vmem:[%s2204 + $0x148] sm:$0xff]
      %v2386 = vld [vmem:[%s2204 + $0x150] sm:$0xff]
      %v2387 = vld [vmem:[%s2204 + $0x168] sm:$0xff]
      %v2388 = vld [vmem:[%s2204 + $0x170] sm:$0xff]
      %v2389 = vld [vmem:[%s2204 + $0x188] sm:$0xff]
      %v2390 = vld [vmem:[%s2204 + $0x190] sm:$0xff]
      %v2391 = vld [vmem:[%s2204 + $0x1a8] sm:$0xff]
      %v2392 = vld [vmem:[%s2204 + $0x1b0] sm:$0xff]
      %v2393 = vld [vmem:[%s2204 + $0x1c8] sm:$0xff]
      %v2394 = vld [vmem:[%s2204 + $0x1d0] sm:$0xff]
      %v2395 = vld [vmem:[%s2204 + $0x1e8] sm:$0xff]
      %v2396 = vld [vmem:[%s2204 + $0x1f0] sm:$0xff]
      %v2397 = vld [vmem:[%s2204 + $0x9] sm:$0xff]
      %v2398 = vld [vmem:[%s2204 + $0x11] sm:$0xff]
      %v2399 = vld [vmem:[%s2204 + $0x29] sm:$0xff]
      %v2400 = vld [vmem:[%s2204 + $0x31] sm:$0xff]
      %v2401 = vld [vmem:[%s2204 + $0x49] sm:$0xff]
      %v2402 = vld [vmem:[%s2204 + $0x51] sm:$0xff]
      %v2403 = vld [vmem:[%s2204 + $0x69] sm:$0xff]
      %v2404 = vld [vmem:[%s2204 + $0x71] sm:$0xff]
      %v2405 = vld [vmem:[%s2204 + $0x89] sm:$0xff]
      %v2406 = vld [vmem:[%s2204 + $0x91] sm:$0xff]
      %v2407 = vld [vmem:[%s2204 + $0xa9] sm:$0xff]
      %v2408 = vld [vmem:[%s2204 + $0xb1] sm:$0xff]
      %v2409 = vld [vmem:[%s2204 + $0xc9] sm:$0xff]
      %v2410 = vld [vmem:[%s2204 + $0xd1] sm:$0xff]
      %v2411 = vld [vmem:[%s2204 + $0xe9] sm:$0xff]
      %v2412 = vld [vmem:[%s2204 + $0xf1] sm:$0xff]
      %v2413 = vld [vmem:[%s2204 + $0x109] sm:$0xff]
      %v2414 = vld [vmem:[%s2204 + $0x111] sm:$0xff]
      %v2415 = vld [vmem:[%s2204 + $0x129] sm:$0xff]
      %v2416 = vld [vmem:[%s2204 + $0x131] sm:$0xff]
      %v2417 = vld [vmem:[%s2204 + $0x149] sm:$0xff]
      %v2418 = vld [vmem:[%s2204 + $0x151] sm:$0xff]
      %v2419 = vld [vmem:[%s2204 + $0x169] sm:$0xff]
      %v2420 = vld [vmem:[%s2204 + $0x171] sm:$0xff]
      %v2421 = vld [vmem:[%s2204 + $0x189] sm:$0xff]
      %v2422 = vld [vmem:[%s2204 + $0x191] sm:$0xff]
      %v2423 = vld [vmem:[%s2204 + $0x1a9] sm:$0xff]
      %v2424 = vld [vmem:[%s2204 + $0x1b1] sm:$0xff]
      %v2425 = vld [vmem:[%s2204 + $0x1c9] sm:$0xff]
      %v2426 = vld [vmem:[%s2204 + $0x1d1] sm:$0xff]
      %v2427 = vld [vmem:[%s2204 + $0x1e9] sm:$0xff]
      %v2428 = vld [vmem:[%s2204 + $0x1f1] sm:$0xff]
      %s2429 = scalar_lea.vmem [#allocation3], 64
      %v2430 = vld [vmem:[%s2429 + $0x7] sm:$0xff]
      %v2431 = vld [vmem:[%s2429 + $0xf] sm:$0xff]
      %v2432 = vld [vmem:[%s2429 + $0x27] sm:$0xff]
      %v2433 = vld [vmem:[%s2429 + $0x2f] sm:$0xff]
      %v2434 = vld [vmem:[%s2429 + $0x47] sm:$0xff]
      %v2435 = vld [vmem:[%s2429 + $0x4f] sm:$0xff]
      %v2436 = vld [vmem:[%s2429 + $0x67] sm:$0xff]
      %v2437 = vld [vmem:[%s2429 + $0x6f] sm:$0xff]
      %v2438 = vld [vmem:[%s2429 + $0x87] sm:$0xff]
      %v2439 = vld [vmem:[%s2429 + $0x8f] sm:$0xff]
      %v2440 = vld [vmem:[%s2429 + $0xa7] sm:$0xff]
      %v2441 = vld [vmem:[%s2429 + $0xaf] sm:$0xff]
      %v2442 = vld [vmem:[%s2429 + $0xc7] sm:$0xff]
      %v2443 = vld [vmem:[%s2429 + $0xcf] sm:$0xff]
      %v2444 = vld [vmem:[%s2429 + $0xe7] sm:$0xff]
      %v2445 = vld [vmem:[%s2429 + $0xef] sm:$0xff]
      %v2446 = vld [vmem:[%s2429 + $0x107] sm:$0xff]
      %v2447 = vld [vmem:[%s2429 + $0x10f] sm:$0xff]
      %v2448 = vld [vmem:[%s2429 + $0x127] sm:$0xff]
      %v2449 = vld [vmem:[%s2429 + $0x12f] sm:$0xff]
      %v2450 = vld [vmem:[%s2429 + $0x147] sm:$0xff]
      %v2451 = vld [vmem:[%s2429 + $0x14f] sm:$0xff]
      %v2452 = vld [vmem:[%s2429 + $0x167] sm:$0xff]
      %v2453 = vld [vmem:[%s2429 + $0x16f] sm:$0xff]
      %v2454 = vld [vmem:[%s2429 + $0x187] sm:$0xff]
      %v2455 = vld [vmem:[%s2429 + $0x18f] sm:$0xff]
      %v2456 = vld [vmem:[%s2429 + $0x1a7] sm:$0xff]
      %v2457 = vld [vmem:[%s2429 + $0x1af] sm:$0xff]
      %v2458 = vld [vmem:[%s2429 + $0x1c7] sm:$0xff]
      %v2459 = vld [vmem:[%s2429 + $0x1cf] sm:$0xff]
      %v2460 = vld [vmem:[%s2429 + $0x1e7] sm:$0xff]
      %v2461 = vld [vmem:[%s2429 + $0x1ef] sm:$0xff]
      %v2462 = vld [vmem:[%s2429 + $0x8] sm:$0xff]
      %v2463 = vld [vmem:[%s2429 + $0x10] sm:$0xff]
      %v2464 = vld [vmem:[%s2429 + $0x28] sm:$0xff]
      %v2465 = vld [vmem:[%s2429 + $0x30] sm:$0xff]
      %v2466 = vld [vmem:[%s2429 + $0x48] sm:$0xff]
      %v2467 = vld [vmem:[%s2429 + $0x50] sm:$0xff]
      %v2468 = vld [vmem:[%s2429 + $0x68] sm:$0xff]
      %v2469 = vld [vmem:[%s2429 + $0x70] sm:$0xff]
      %v2470 = vld [vmem:[%s2429 + $0x88] sm:$0xff]
      %v2471 = vld [vmem:[%s2429 + $0x90] sm:$0xff]
      %v2472 = vld [vmem:[%s2429 + $0xa8] sm:$0xff]
      %v2473 = vld [vmem:[%s2429 + $0xb0] sm:$0xff]
      %v2474 = vld [vmem:[%s2429 + $0xc8] sm:$0xff]
      %v2475 = vld [vmem:[%s2429 + $0xd0] sm:$0xff]
      %v2476 = vld [vmem:[%s2429 + $0xe8] sm:$0xff]
      %v2477 = vld [vmem:[%s2429 + $0xf0] sm:$0xff]
      %v2478 = vld [vmem:[%s2429 + $0x108] sm:$0xff]
      %v2479 = vld [vmem:[%s2429 + $0x110] sm:$0xff]
      %v2480 = vld [vmem:[%s2429 + $0x128] sm:$0xff]
      %v2481 = vld [vmem:[%s2429 + $0x130] sm:$0xff]
      %v2482 = vld [vmem:[%s2429 + $0x148] sm:$0xff]
      %v2483 = vld [vmem:[%s2429 + $0x150] sm:$0xff]
      %v2484 = vld [vmem:[%s2429 + $0x168] sm:$0xff]
      %v2485 = vld [vmem:[%s2429 + $0x170] sm:$0xff]
      %v2486 = vld [vmem:[%s2429 + $0x188] sm:$0xff]
      %v2487 = vld [vmem:[%s2429 + $0x190] sm:$0xff]
      %v2488 = vld [vmem:[%s2429 + $0x1a8] sm:$0xff]
      %v2489 = vld [vmem:[%s2429 + $0x1b0] sm:$0xff]
      %v2490 = vld [vmem:[%s2429 + $0x1c8] sm:$0xff]
      %v2491 = vld [vmem:[%s2429 + $0x1d0] sm:$0xff]
      %v2492 = vld [vmem:[%s2429 + $0x1e8] sm:$0xff]
      %v2493 = vld [vmem:[%s2429 + $0x1f0] sm:$0xff]
      %v2494 = vld [vmem:[%s2429 + $0x9] sm:$0xff]
      %v2495 = vld [vmem:[%s2429 + $0x11] sm:$0xff]
      %v2496 = vld [vmem:[%s2429 + $0x29] sm:$0xff]
      %v2497 = vld [vmem:[%s2429 + $0x31] sm:$0xff]
      %v2498 = vld [vmem:[%s2429 + $0x49] sm:$0xff]
      %v2499 = vld [vmem:[%s2429 + $0x51] sm:$0xff]
      %v2500 = vld [vmem:[%s2429 + $0x69] sm:$0xff]
      %v2501 = vld [vmem:[%s2429 + $0x71] sm:$0xff]
      %v2502 = vld [vmem:[%s2429 + $0x89] sm:$0xff]
      %v2503 = vld [vmem:[%s2429 + $0x91] sm:$0xff]
      %v2504 = vld [vmem:[%s2429 + $0xa9] sm:$0xff]
      %v2505 = vld [vmem:[%s2429 + $0xb1] sm:$0xff]
      %v2506 = vld [vmem:[%s2429 + $0xc9] sm:$0xff]
      %v2507 = vld [vmem:[%s2429 + $0xd1] sm:$0xff]
      %v2508 = vld [vmem:[%s2429 + $0xe9] sm:$0xff]
      %v2509 = vld [vmem:[%s2429 + $0xf1] sm:$0xff]
      %v2510 = vld [vmem:[%s2429 + $0x109] sm:$0xff]
      %v2511 = vld [vmem:[%s2429 + $0x111] sm:$0xff]
      %v2512 = vld [vmem:[%s2429 + $0x129] sm:$0xff]
      %v2513 = vld [vmem:[%s2429 + $0x131] sm:$0xff]
      %v2514 = vld [vmem:[%s2429 + $0x149] sm:$0xff]
      %v2515 = vld [vmem:[%s2429 + $0x151] sm:$0xff]
      %v2516 = vld [vmem:[%s2429 + $0x169] sm:$0xff]
      %v2517 = vld [vmem:[%s2429 + $0x171] sm:$0xff]
      %v2518 = vld [vmem:[%s2429 + $0x189] sm:$0xff]
      %v2519 = vld [vmem:[%s2429 + $0x191] sm:$0xff]
      %v2520 = vld [vmem:[%s2429 + $0x1a9] sm:$0xff]
      %v2521 = vld [vmem:[%s2429 + $0x1b1] sm:$0xff]
      %v2522 = vld [vmem:[%s2429 + $0x1c9] sm:$0xff]
      %v2523 = vld [vmem:[%s2429 + $0x1d1] sm:$0xff]
      %v2524 = vld [vmem:[%s2429 + $0x1e9] sm:$0xff]
      %v2525 = vld [vmem:[%s2429 + $0x1f1] sm:$0xff]
      %2558 = vrot.lane.b32.xlu0 %v2269, 4
      %v2559 = vpop.permute.xlu0 %2558
      %2560 = vrot.lane.b32.xlu0 %v2270, 4
      %v2561 = vpop.permute.xlu0 %2560
      %2562 = vrot.lane.b32.xlu0 %v2271, 4
      %v2563 = vpop.permute.xlu0 %2562
      %2564 = vrot.lane.b32.xlu0 %v2272, 4
      %v2565 = vpop.permute.xlu0 %2564
      %2566 = vrot.lane.b32.xlu0 %v2273, 4
      %v2567 = vpop.permute.xlu0 %2566
      %2568 = vrot.lane.b32.xlu0 %v2274, 4
      %v2569 = vpop.permute.xlu0 %2568
      %2570 = vrot.lane.b32.xlu0 %v2275, 4
      %v2571 = vpop.permute.xlu0 %2570
      %2572 = vrot.lane.b32.xlu0 %v2276, 4
      %v2573 = vpop.permute.xlu0 %2572
      %2574 = vrot.lane.b32.xlu0 %v2277, 4
      %v2575 = vpop.permute.xlu0 %2574
      %2576 = vrot.lane.b32.xlu0 %v2278, 4
      %v2577 = vpop.permute.xlu0 %2576
      %2578 = vrot.lane.b32.xlu0 %v2279, 4
      %v2579 = vpop.permute.xlu0 %2578
      %2580 = vrot.lane.b32.xlu0 %v2280, 4
      %v2581 = vpop.permute.xlu0 %2580
      %2582 = vrot.lane.b32.xlu0 %v2281, 4
      %v2583 = vpop.permute.xlu0 %2582
      %2584 = vrot.lane.b32.xlu0 %v2282, 4
      %v2585 = vpop.permute.xlu0 %2584
      %2586 = vrot.lane.b32.xlu0 %v2283, 4
      %v2587 = vpop.permute.xlu0 %2586
      %2588 = vrot.lane.b32.xlu0 %v2284, 4
      %v2589 = vpop.permute.xlu0 %2588
      %2590 = vrot.lane.b32.xlu0 %v2285, 4
      %v2591 = vpop.permute.xlu0 %2590
      %2592 = vrot.lane.b32.xlu0 %v2286, 4
      %v2593 = vpop.permute.xlu0 %2592
      %2594 = vrot.lane.b32.xlu0 %v2287, 4
      %v2595 = vpop.permute.xlu0 %2594
      %2596 = vrot.lane.b32.xlu0 %v2288, 4
      %v2597 = vpop.permute.xlu0 %2596
      %2598 = vrot.lane.b32.xlu0 %v2289, 4
      %v2599 = vpop.permute.xlu0 %2598
      %2600 = vrot.lane.b32.xlu0 %v2290, 4
      %v2601 = vpop.permute.xlu0 %2600
      %2602 = vrot.lane.b32.xlu0 %v2291, 4
      %v2603 = vpop.permute.xlu0 %2602
      %2604 = vrot.lane.b32.xlu0 %v2292, 4
      %v2605 = vpop.permute.xlu0 %2604
      %2606 = vrot.lane.b32.xlu0 %v2293, 4
      %v2607 = vpop.permute.xlu0 %2606
      %2608 = vrot.lane.b32.xlu0 %v2294, 4
      %v2609 = vpop.permute.xlu0 %2608
      %2610 = vrot.lane.b32.xlu0 %v2295, 4
      %v2611 = vpop.permute.xlu0 %2610
      %2612 = vrot.lane.b32.xlu0 %v2296, 4
      %v2613 = vpop.permute.xlu0 %2612
      %2614 = vrot.lane.b32.xlu0 %v2297, 4
      %v2615 = vpop.permute.xlu0 %2614
      %2616 = vrot.lane.b32.xlu0 %v2298, 4
      %v2617 = vpop.permute.xlu0 %2616
      %2618 = vrot.lane.b32.xlu0 %v2299, 4
      %v2619 = vpop.permute.xlu0 %2618
      %2620 = vrot.lane.b32.xlu0 %v2300, 4
      %v2621 = vpop.permute.xlu0 %2620
      %2686 = vrot.lane.b32.xlu0 %v2301, 8
      %v2687 = vpop.permute.xlu0 %2686
      %2688 = vrot.lane.b32.xlu0 %v2302, 8
      %v2689 = vpop.permute.xlu0 %2688
      %2690 = vrot.lane.b32.xlu0 %v2303, 8
      %v2691 = vpop.permute.xlu0 %2690
      %2692 = vrot.lane.b32.xlu0 %v2304, 8
      %v2693 = vpop.permute.xlu0 %2692
      %2694 = vrot.lane.b32.xlu0 %v2305, 8
      %v2695 = vpop.permute.xlu0 %2694
      %2696 = vrot.lane.b32.xlu0 %v2306, 8
      %v2697 = vpop.permute.xlu0 %2696
      %2698 = vrot.lane.b32.xlu0 %v2307, 8
      %v2699 = vpop.permute.xlu0 %2698
      %2700 = vrot.lane.b32.xlu0 %v2308, 8
      %v2701 = vpop.permute.xlu0 %2700
      %2702 = vrot.lane.b32.xlu0 %v2309, 8
      %v2703 = vpop.permute.xlu0 %2702
      %2704 = vrot.lane.b32.xlu0 %v2310, 8
      %v2705 = vpop.permute.xlu0 %2704
      %2706 = vrot.lane.b32.xlu0 %v2311, 8
      %v2707 = vpop.permute.xlu0 %2706
      %2708 = vrot.lane.b32.xlu0 %v2312, 8
      %v2709 = vpop.permute.xlu0 %2708
      %2710 = vrot.lane.b32.xlu0 %v2313, 8
      %v2711 = vpop.permute.xlu0 %2710
      %2712 = vrot.lane.b32.xlu0 %v2314, 8
      %v2713 = vpop.permute.xlu0 %2712
      %2714 = vrot.lane.b32.xlu0 %v2315, 8
      %v2715 = vpop.permute.xlu0 %2714
      %2716 = vrot.lane.b32.xlu0 %v2316, 8
      %v2717 = vpop.permute.xlu0 %2716
      %2718 = vrot.lane.b32.xlu0 %v2317, 8
      %v2719 = vpop.permute.xlu0 %2718
      %2720 = vrot.lane.b32.xlu0 %v2318, 8
      %v2721 = vpop.permute.xlu0 %2720
      %2722 = vrot.lane.b32.xlu0 %v2319, 8
      %v2723 = vpop.permute.xlu0 %2722
      %2724 = vrot.lane.b32.xlu0 %v2320, 8
      %v2725 = vpop.permute.xlu0 %2724
      %2726 = vrot.lane.b32.xlu0 %v2321, 8
      %v2727 = vpop.permute.xlu0 %2726
      %2728 = vrot.lane.b32.xlu0 %v2322, 8
      %v2729 = vpop.permute.xlu0 %2728
      %2730 = vrot.lane.b32.xlu0 %v2323, 8
      %v2731 = vpop.permute.xlu0 %2730
      %2732 = vrot.lane.b32.xlu0 %v2324, 8
      %v2733 = vpop.permute.xlu0 %2732
      %2734 = vrot.lane.b32.xlu0 %v2325, 8
      %v2735 = vpop.permute.xlu0 %2734
      %2736 = vrot.lane.b32.xlu0 %v2326, 8
      %v2737 = vpop.permute.xlu0 %2736
      %2738 = vrot.lane.b32.xlu0 %v2327, 8
      %v2739 = vpop.permute.xlu0 %2738
      %2740 = vrot.lane.b32.xlu0 %v2328, 8
      %v2741 = vpop.permute.xlu0 %2740
      %2742 = vrot.lane.b32.xlu0 %v2329, 8
      %v2743 = vpop.permute.xlu0 %2742
      %2744 = vrot.lane.b32.xlu0 %v2330, 8
      %v2745 = vpop.permute.xlu0 %2744
      %2746 = vrot.lane.b32.xlu0 %v2331, 8
      %v2747 = vpop.permute.xlu0 %2746
      %2748 = vrot.lane.b32.xlu0 %v2332, 8
      %v2749 = vpop.permute.xlu0 %2748
      %2814 = vrot.lane.b32.xlu0 %v2333, 12
      %v2815 = vpop.permute.xlu0 %2814
      %2816 = vrot.lane.b32.xlu0 %v2334, 12
      %v2817 = vpop.permute.xlu0 %2816
      %2818 = vrot.lane.b32.xlu0 %v2335, 12
      %v2819 = vpop.permute.xlu0 %2818
      %2820 = vrot.lane.b32.xlu0 %v2336, 12
      %v2821 = vpop.permute.xlu0 %2820
      %2822 = vrot.lane.b32.xlu0 %v2337, 12
      %v2823 = vpop.permute.xlu0 %2822
      %2824 = vrot.lane.b32.xlu0 %v2338, 12
      %v2825 = vpop.permute.xlu0 %2824
      %2826 = vrot.lane.b32.xlu0 %v2339, 12
      %v2827 = vpop.permute.xlu0 %2826
      %2828 = vrot.lane.b32.xlu0 %v2340, 12
      %v2829 = vpop.permute.xlu0 %2828
      %2830 = vrot.lane.b32.xlu0 %v2341, 12
      %v2831 = vpop.permute.xlu0 %2830
      %2832 = vrot.lane.b32.xlu0 %v2342, 12
      %v2833 = vpop.permute.xlu0 %2832
      %2834 = vrot.lane.b32.xlu0 %v2343, 12
      %v2835 = vpop.permute.xlu0 %2834
      %2836 = vrot.lane.b32.xlu0 %v2344, 12
      %v2837 = vpop.permute.xlu0 %2836
      %2838 = vrot.lane.b32.xlu0 %v2345, 12
      %v2839 = vpop.permute.xlu0 %2838
      %2840 = vrot.lane.b32.xlu0 %v2346, 12
      %v2841 = vpop.permute.xlu0 %2840
      %2842 = vrot.lane.b32.xlu0 %v2347, 12
      %v2843 = vpop.permute.xlu0 %2842
      %2844 = vrot.lane.b32.xlu0 %v2348, 12
      %v2845 = vpop.permute.xlu0 %2844
      %2846 = vrot.lane.b32.xlu0 %v2349, 12
      %v2847 = vpop.permute.xlu0 %2846
      %2848 = vrot.lane.b32.xlu0 %v2350, 12
      %v2849 = vpop.permute.xlu0 %2848
      %2850 = vrot.lane.b32.xlu0 %v2351, 12
      %v2851 = vpop.permute.xlu0 %2850
      %2852 = vrot.lane.b32.xlu0 %v2352, 12
      %v2853 = vpop.permute.xlu0 %2852
      %2854 = vrot.lane.b32.xlu0 %v2353, 12
      %v2855 = vpop.permute.xlu0 %2854
      %2856 = vrot.lane.b32.xlu0 %v2354, 12
      %v2857 = vpop.permute.xlu0 %2856
      %2858 = vrot.lane.b32.xlu0 %v2355, 12
      %v2859 = vpop.permute.xlu0 %2858
      %2860 = vrot.lane.b32.xlu0 %v2356, 12
      %v2861 = vpop.permute.xlu0 %2860
      %2862 = vrot.lane.b32.xlu0 %v2357, 12
      %v2863 = vpop.permute.xlu0 %2862
      %2864 = vrot.lane.b32.xlu0 %v2358, 12
      %v2865 = vpop.permute.xlu0 %2864
      %2866 = vrot.lane.b32.xlu0 %v2359, 12
      %v2867 = vpop.permute.xlu0 %2866
      %2868 = vrot.lane.b32.xlu0 %v2360, 12
      %v2869 = vpop.permute.xlu0 %2868
      %2870 = vrot.lane.b32.xlu0 %v2361, 12
      %v2871 = vpop.permute.xlu0 %2870
      %2872 = vrot.lane.b32.xlu0 %v2362, 12
      %v2873 = vpop.permute.xlu0 %2872
      %2874 = vrot.lane.b32.xlu0 %v2363, 12
      %v2875 = vpop.permute.xlu0 %2874
      %2876 = vrot.lane.b32.xlu0 %v2364, 12
      %v2877 = vpop.permute.xlu0 %2876
      %2942 = vrot.lane.b32.xlu0 %v2365, 16
      %v2943 = vpop.permute.xlu0 %2942
      %2944 = vrot.lane.b32.xlu0 %v2366, 16
      %v2945 = vpop.permute.xlu0 %2944
      %2946 = vrot.lane.b32.xlu0 %v2367, 16
      %v2947 = vpop.permute.xlu0 %2946
      %2948 = vrot.lane.b32.xlu0 %v2368, 16
      %v2949 = vpop.permute.xlu0 %2948
      %2950 = vrot.lane.b32.xlu0 %v2369, 16
      %v2951 = vpop.permute.xlu0 %2950
      %2952 = vrot.lane.b32.xlu0 %v2370, 16
      %v2953 = vpop.permute.xlu0 %2952
      %2954 = vrot.lane.b32.xlu0 %v2371, 16
      %v2955 = vpop.permute.xlu0 %2954
      %2956 = vrot.lane.b32.xlu0 %v2372, 16
      %v2957 = vpop.permute.xlu0 %2956
      %2958 = vrot.lane.b32.xlu0 %v2373, 16
      %v2959 = vpop.permute.xlu0 %2958
      %2960 = vrot.lane.b32.xlu0 %v2374, 16
      %v2961 = vpop.permute.xlu0 %2960
      %2962 = vrot.lane.b32.xlu0 %v2375, 16
      %v2963 = vpop.permute.xlu0 %2962
      %2964 = vrot.lane.b32.xlu0 %v2376, 16
      %v2965 = vpop.permute.xlu0 %2964
      %2966 = vrot.lane.b32.xlu0 %v2377, 16
      %v2967 = vpop.permute.xlu0 %2966
      %2968 = vrot.lane.b32.xlu0 %v2378, 16
      %v2969 = vpop.permute.xlu0 %2968
      %2970 = vrot.lane.b32.xlu0 %v2379, 16
      %v2971 = vpop.permute.xlu0 %2970
      %2972 = vrot.lane.b32.xlu0 %v2380, 16
      %v2973 = vpop.permute.xlu0 %2972
      %2974 = vrot.lane.b32.xlu0 %v2381, 16
      %v2975 = vpop.permute.xlu0 %2974
      %2976 = vrot.lane.b32.xlu0 %v2382, 16
      %v2977 = vpop.permute.xlu0 %2976
      %2978 = vrot.lane.b32.xlu0 %v2383, 16
      %v2979 = vpop.permute.xlu0 %2978
      %2980 = vrot.lane.b32.xlu0 %v2384, 16
      %v2981 = vpop.permute.xlu0 %2980
      %2982 = vrot.lane.b32.xlu0 %v2385, 16
      %v2983 = vpop.permute.xlu0 %2982
      %2984 = vrot.lane.b32.xlu0 %v2386, 16
      %v2985 = vpop.permute.xlu0 %2984
      %2986 = vrot.lane.b32.xlu0 %v2387, 16
      %v2987 = vpop.permute.xlu0 %2986
      %2988 = vrot.lane.b32.xlu0 %v2388, 16
      %v2989 = vpop.permute.xlu0 %2988
      %2990 = vrot.lane.b32.xlu0 %v2389, 16
      %v2991 = vpop.permute.xlu0 %2990
      %2992 = vrot.lane.b32.xlu0 %v2390, 16
      %v2993 = vpop.permute.xlu0 %2992
      %2994 = vrot.lane.b32.xlu0 %v2391, 16
      %v2995 = vpop.permute.xlu0 %2994
      %2996 = vrot.lane.b32.xlu0 %v2392, 16
      %v2997 = vpop.permute.xlu0 %2996
      %2998 = vrot.lane.b32.xlu0 %v2393, 16
      %v2999 = vpop.permute.xlu0 %2998
      %3000 = vrot.lane.b32.xlu0 %v2394, 16
      %v3001 = vpop.permute.xlu0 %3000
      %3002 = vrot.lane.b32.xlu0 %v2395, 16
      %v3003 = vpop.permute.xlu0 %3002
      %3004 = vrot.lane.b32.xlu0 %v2396, 16
      %v3005 = vpop.permute.xlu0 %3004
      %3070 = vrot.lane.b32.xlu0 %v2397, 20
      %v3071 = vpop.permute.xlu0 %3070
      %3072 = vrot.lane.b32.xlu0 %v2398, 20
      %v3073 = vpop.permute.xlu0 %3072
      %3074 = vrot.lane.b32.xlu0 %v2399, 20
      %v3075 = vpop.permute.xlu0 %3074
      %3076 = vrot.lane.b32.xlu0 %v2400, 20
      %v3077 = vpop.permute.xlu0 %3076
      %3078 = vrot.lane.b32.xlu0 %v2401, 20
      %v3079 = vpop.permute.xlu0 %3078
      %3080 = vrot.lane.b32.xlu0 %v2402, 20
      %v3081 = vpop.permute.xlu0 %3080
      %3082 = vrot.lane.b32.xlu0 %v2403, 20
      %v3083 = vpop.permute.xlu0 %3082
      %3084 = vrot.lane.b32.xlu0 %v2404, 20
      %v3085 = vpop.permute.xlu0 %3084
      %3086 = vrot.lane.b32.xlu0 %v2405, 20
      %v3087 = vpop.permute.xlu0 %3086
      %3088 = vrot.lane.b32.xlu0 %v2406, 20
      %v3089 = vpop.permute.xlu0 %3088
      %3090 = vrot.lane.b32.xlu0 %v2407, 20
      %v3091 = vpop.permute.xlu0 %3090
      %3092 = vrot.lane.b32.xlu0 %v2408, 20
      %v3093 = vpop.permute.xlu0 %3092
      %3094 = vrot.lane.b32.xlu0 %v2409, 20
      %v3095 = vpop.permute.xlu0 %3094
      %3096 = vrot.lane.b32.xlu0 %v2410, 20
      %v3097 = vpop.permute.xlu0 %3096
      %3098 = vrot.lane.b32.xlu0 %v2411, 20
      %v3099 = vpop.permute.xlu0 %3098
      %3100 = vrot.lane.b32.xlu0 %v2412, 20
      %v3101 = vpop.permute.xlu0 %3100
      %3102 = vrot.lane.b32.xlu0 %v2413, 20
      %v3103 = vpop.permute.xlu0 %3102
      %3104 = vrot.lane.b32.xlu0 %v2414, 20
      %v3105 = vpop.permute.xlu0 %3104
      %3106 = vrot.lane.b32.xlu0 %v2415, 20
      %v3107 = vpop.permute.xlu0 %3106
      %3108 = vrot.lane.b32.xlu0 %v2416, 20
      %v3109 = vpop.permute.xlu0 %3108
      %3110 = vrot.lane.b32.xlu0 %v2417, 20
      %v3111 = vpop.permute.xlu0 %3110
      %3112 = vrot.lane.b32.xlu0 %v2418, 20
      %v3113 = vpop.permute.xlu0 %3112
      %3114 = vrot.lane.b32.xlu0 %v2419, 20
      %v3115 = vpop.permute.xlu0 %3114
      %3116 = vrot.lane.b32.xlu0 %v2420, 20
      %v3117 = vpop.permute.xlu0 %3116
      %3118 = vrot.lane.b32.xlu0 %v2421, 20
      %v3119 = vpop.permute.xlu0 %3118
      %3120 = vrot.lane.b32.xlu0 %v2422, 20
      %v3121 = vpop.permute.xlu0 %3120
      %3122 = vrot.lane.b32.xlu0 %v2423, 20
      %v3123 = vpop.permute.xlu0 %3122
      %3124 = vrot.lane.b32.xlu0 %v2424, 20
      %v3125 = vpop.permute.xlu0 %3124
      %3126 = vrot.lane.b32.xlu0 %v2425, 20
      %v3127 = vpop.permute.xlu0 %3126
      %3128 = vrot.lane.b32.xlu0 %v2426, 20
      %v3129 = vpop.permute.xlu0 %3128
      %3130 = vrot.lane.b32.xlu0 %v2427, 20
      %v3131 = vpop.permute.xlu0 %3130
      %3132 = vrot.lane.b32.xlu0 %v2428, 20
      %v3133 = vpop.permute.xlu0 %3132
      %3198 = vrot.lane.b32.xlu0 %v2430, 24
      %v3199 = vpop.permute.xlu0 %3198
      %3200 = vrot.lane.b32.xlu0 %v2431, 24
      %v3201 = vpop.permute.xlu0 %3200
      %3202 = vrot.lane.b32.xlu0 %v2432, 24
      %v3203 = vpop.permute.xlu0 %3202
      %3204 = vrot.lane.b32.xlu0 %v2433, 24
      %v3205 = vpop.permute.xlu0 %3204
      %3206 = vrot.lane.b32.xlu0 %v2434, 24
      %v3207 = vpop.permute.xlu0 %3206
      %3208 = vrot.lane.b32.xlu0 %v2435, 24
      %v3209 = vpop.permute.xlu0 %3208
      %3210 = vrot.lane.b32.xlu0 %v2436, 24
      %v3211 = vpop.permute.xlu0 %3210
      %3212 = vrot.lane.b32.xlu0 %v2437, 24
      %v3213 = vpop.permute.xlu0 %3212
      %3214 = vrot.lane.b32.xlu0 %v2438, 24
      %v3215 = vpop.permute.xlu0 %3214
      %3216 = vrot.lane.b32.xlu0 %v2439, 24
      %v3217 = vpop.permute.xlu0 %3216
      %3218 = vrot.lane.b32.xlu0 %v2440, 24
      %v3219 = vpop.permute.xlu0 %3218
      %3220 = vrot.lane.b32.xlu0 %v2441, 24
      %v3221 = vpop.permute.xlu0 %3220
      %3222 = vrot.lane.b32.xlu0 %v2442, 24
      %v3223 = vpop.permute.xlu0 %3222
      %3224 = vrot.lane.b32.xlu0 %v2443, 24
      %v3225 = vpop.permute.xlu0 %3224
      %3226 = vrot.lane.b32.xlu0 %v2444, 24
      %v3227 = vpop.permute.xlu0 %3226
      %3228 = vrot.lane.b32.xlu0 %v2445, 24
      %v3229 = vpop.permute.xlu0 %3228
      %3230 = vrot.lane.b32.xlu0 %v2446, 24
      %v3231 = vpop.permute.xlu0 %3230
      %3232 = vrot.lane.b32.xlu0 %v2447, 24
      %v3233 = vpop.permute.xlu0 %3232
      %3234 = vrot.lane.b32.xlu0 %v2448, 24
      %v3235 = vpop.permute.xlu0 %3234
      %3236 = vrot.lane.b32.xlu0 %v2449, 24
      %v3237 = vpop.permute.xlu0 %3236
      %3238 = vrot.lane.b32.xlu0 %v2450, 24
      %v3239 = vpop.permute.xlu0 %3238
      %3240 = vrot.lane.b32.xlu0 %v2451, 24
      %v3241 = vpop.permute.xlu0 %3240
      %3242 = vrot.lane.b32.xlu0 %v2452, 24
      %v3243 = vpop.permute.xlu0 %3242
      %3244 = vrot.lane.b32.xlu0 %v2453, 24
      %v3245 = vpop.permute.xlu0 %3244
      %3246 = vrot.lane.b32.xlu0 %v2454, 24
      %v3247 = vpop.permute.xlu0 %3246
      %3248 = vrot.lane.b32.xlu0 %v2455, 24
      %v3249 = vpop.permute.xlu0 %3248
      %3250 = vrot.lane.b32.xlu0 %v2456, 24
      %v3251 = vpop.permute.xlu0 %3250
      %3252 = vrot.lane.b32.xlu0 %v2457, 24
      %v3253 = vpop.permute.xlu0 %3252
      %3254 = vrot.lane.b32.xlu0 %v2458, 24
      %v3255 = vpop.permute.xlu0 %3254
      %3256 = vrot.lane.b32.xlu0 %v2459, 24
      %v3257 = vpop.permute.xlu0 %3256
      %3258 = vrot.lane.b32.xlu0 %v2460, 24
      %v3259 = vpop.permute.xlu0 %3258
      %3260 = vrot.lane.b32.xlu0 %v2461, 24
      %v3261 = vpop.permute.xlu0 %3260
      %3326 = vrot.lane.b32.xlu0 %v2462, 28
      %v3327 = vpop.permute.xlu0 %3326
      %3328 = vrot.lane.b32.xlu0 %v2463, 28
      %v3329 = vpop.permute.xlu0 %3328
      %3330 = vrot.lane.b32.xlu0 %v2464, 28
      %v3331 = vpop.permute.xlu0 %3330
      %3332 = vrot.lane.b32.xlu0 %v2465, 28
      %v3333 = vpop.permute.xlu0 %3332
      %3334 = vrot.lane.b32.xlu0 %v2466, 28
      %v3335 = vpop.permute.xlu0 %3334
      %3336 = vrot.lane.b32.xlu0 %v2467, 28
      %v3337 = vpop.permute.xlu0 %3336
      %3338 = vrot.lane.b32.xlu0 %v2468, 28
      %v3339 = vpop.permute.xlu0 %3338
      %3340 = vrot.lane.b32.xlu0 %v2469, 28
      %v3341 = vpop.permute.xlu0 %3340
      %3342 = vrot.lane.b32.xlu0 %v2470, 28
      %v3343 = vpop.permute.xlu0 %3342
      %3344 = vrot.lane.b32.xlu0 %v2471, 28
      %v3345 = vpop.permute.xlu0 %3344
      %3346 = vrot.lane.b32.xlu0 %v2472, 28
      %v3347 = vpop.permute.xlu0 %3346
      %3348 = vrot.lane.b32.xlu0 %v2473, 28
      %v3349 = vpop.permute.xlu0 %3348
      %3350 = vrot.lane.b32.xlu0 %v2474, 28
      %v3351 = vpop.permute.xlu0 %3350
      %3352 = vrot.lane.b32.xlu0 %v2475, 28
      %v3353 = vpop.permute.xlu0 %3352
      %3354 = vrot.lane.b32.xlu0 %v2476, 28
      %v3355 = vpop.permute.xlu0 %3354
      %3356 = vrot.lane.b32.xlu0 %v2477, 28
      %v3357 = vpop.permute.xlu0 %3356
      %3358 = vrot.lane.b32.xlu0 %v2478, 28
      %v3359 = vpop.permute.xlu0 %3358
      %3360 = vrot.lane.b32.xlu0 %v2479, 28
      %v3361 = vpop.permute.xlu0 %3360
      %3362 = vrot.lane.b32.xlu0 %v2480, 28
      %v3363 = vpop.permute.xlu0 %3362
      %3364 = vrot.lane.b32.xlu0 %v2481, 28
      %v3365 = vpop.permute.xlu0 %3364
      %3366 = vrot.lane.b32.xlu0 %v2482, 28
      %v3367 = vpop.permute.xlu0 %3366
      %3368 = vrot.lane.b32.xlu0 %v2483, 28
      %v3369 = vpop.permute.xlu0 %3368
      %3370 = vrot.lane.b32.xlu0 %v2484, 28
      %v3371 = vpop.permute.xlu0 %3370
      %3372 = vrot.lane.b32.xlu0 %v2485, 28
      %v3373 = vpop.permute.xlu0 %3372
      %3374 = vrot.lane.b32.xlu0 %v2486, 28
      %v3375 = vpop.permute.xlu0 %3374
      %3376 = vrot.lane.b32.xlu0 %v2487, 28
      %v3377 = vpop.permute.xlu0 %3376
      %3378 = vrot.lane.b32.xlu0 %v2488, 28
      %v3379 = vpop.permute.xlu0 %3378
      %3380 = vrot.lane.b32.xlu0 %v2489, 28
      %v3381 = vpop.permute.xlu0 %3380
      %3382 = vrot.lane.b32.xlu0 %v2490, 28
      %v3383 = vpop.permute.xlu0 %3382
      %3384 = vrot.lane.b32.xlu0 %v2491, 28
      %v3385 = vpop.permute.xlu0 %3384
      %3386 = vrot.lane.b32.xlu0 %v2492, 28
      %v3387 = vpop.permute.xlu0 %3386
      %3388 = vrot.lane.b32.xlu0 %v2493, 28
      %v3389 = vpop.permute.xlu0 %3388
      %3454 = vrot.lane.b32.xlu0 %v2494, 32
      %v3455 = vpop.permute.xlu0 %3454
      %3456 = vrot.lane.b32.xlu0 %v2495, 32
      %v3457 = vpop.permute.xlu0 %3456
      %3458 = vrot.lane.b32.xlu0 %v2496, 32
      %v3459 = vpop.permute.xlu0 %3458
      %3460 = vrot.lane.b32.xlu0 %v2497, 32
      %v3461 = vpop.permute.xlu0 %3460
      %3462 = vrot.lane.b32.xlu0 %v2498, 32
      %v3463 = vpop.permute.xlu0 %3462
      %3464 = vrot.lane.b32.xlu0 %v2499, 32
      %v3465 = vpop.permute.xlu0 %3464
      %3466 = vrot.lane.b32.xlu0 %v2500, 32
      %v3467 = vpop.permute.xlu0 %3466
      %3468 = vrot.lane.b32.xlu0 %v2501, 32
      %v3469 = vpop.permute.xlu0 %3468
      %3470 = vrot.lane.b32.xlu0 %v2502, 32
      %v3471 = vpop.permute.xlu0 %3470
      %3472 = vrot.lane.b32.xlu0 %v2503, 32
      %v3473 = vpop.permute.xlu0 %3472
      %3474 = vrot.lane.b32.xlu0 %v2504, 32
      %v3475 = vpop.permute.xlu0 %3474
      %3476 = vrot.lane.b32.xlu0 %v2505, 32
      %v3477 = vpop.permute.xlu0 %3476
      %3478 = vrot.lane.b32.xlu0 %v2506, 32
      %v3479 = vpop.permute.xlu0 %3478
      %3480 = vrot.lane.b32.xlu0 %v2507, 32
      %v3481 = vpop.permute.xlu0 %3480
      %3482 = vrot.lane.b32.xlu0 %v2508, 32
      %v3483 = vpop.permute.xlu0 %3482
      %3484 = vrot.lane.b32.xlu0 %v2509, 32
      %v3485 = vpop.permute.xlu0 %3484
      %3486 = vrot.lane.b32.xlu0 %v2510, 32
      %v3487 = vpop.permute.xlu0 %3486
      %3488 = vrot.lane.b32.xlu0 %v2511, 32
      %v3489 = vpop.permute.xlu0 %3488
      %3490 = vrot.lane.b32.xlu0 %v2512, 32
      %v3491 = vpop.permute.xlu0 %3490
      %3492 = vrot.lane.b32.xlu0 %v2513, 32
      %v3493 = vpop.permute.xlu0 %3492
      %3494 = vrot.lane.b32.xlu0 %v2514, 32
      %v3495 = vpop.permute.xlu0 %3494
      %3496 = vrot.lane.b32.xlu0 %v2515, 32
      %v3497 = vpop.permute.xlu0 %3496
      %3498 = vrot.lane.b32.xlu0 %v2516, 32
      %v3499 = vpop.permute.xlu0 %3498
      %3500 = vrot.lane.b32.xlu0 %v2517, 32
      %v3501 = vpop.permute.xlu0 %3500
      %3502 = vrot.lane.b32.xlu0 %v2518, 32
      %v3503 = vpop.permute.xlu0 %3502
      %3504 = vrot.lane.b32.xlu0 %v2519, 32
      %v3505 = vpop.permute.xlu0 %3504
      %3506 = vrot.lane.b32.xlu0 %v2520, 32
      %v3507 = vpop.permute.xlu0 %3506
      %3508 = vrot.lane.b32.xlu0 %v2521, 32
      %v3509 = vpop.permute.xlu0 %3508
      %3510 = vrot.lane.b32.xlu0 %v2522, 32
      %v3511 = vpop.permute.xlu0 %3510
      %3512 = vrot.lane.b32.xlu0 %v2523, 32
      %v3513 = vpop.permute.xlu0 %3512
      %3514 = vrot.lane.b32.xlu0 %v2524, 32
      %v3515 = vpop.permute.xlu0 %3514
      %3516 = vrot.lane.b32.xlu0 %v2525, 32
      %v3517 = vpop.permute.xlu0 %3516
      %v3550 = vsel %vm257, %v2237, %v2559
      %v3551 = vsel %vm257, %v2238, %v2561
      %v3552 = vsel %vm257, %v2239, %v2563
      %v3553 = vsel %vm257, %v2240, %v2565
      %v3554 = vsel %vm257, %v2241, %v2567
      %v3555 = vsel %vm257, %v2242, %v2569
      %v3556 = vsel %vm257, %v2243, %v2571
      %v3557 = vsel %vm257, %v2244, %v2573
      %v3558 = vsel %vm257, %v2245, %v2575
      %v3559 = vsel %vm257, %v2246, %v2577
      %v3560 = vsel %vm257, %v2247, %v2579
      %v3561 = vsel %vm257, %v2248, %v2581
      %v3562 = vsel %vm257, %v2249, %v2583
      %v3563 = vsel %vm257, %v2250, %v2585
      %v3564 = vsel %vm257, %v2251, %v2587
      %v3565 = vsel %vm257, %v2252, %v2589
      %v3566 = vsel %vm257, %v2253, %v2591
      %v3567 = vsel %vm257, %v2254, %v2593
      %v3568 = vsel %vm257, %v2255, %v2595
      %v3569 = vsel %vm257, %v2256, %v2597
      %v3570 = vsel %vm257, %v2257, %v2599
      %v3571 = vsel %vm257, %v2258, %v2601
      %v3572 = vsel %vm257, %v2259, %v2603
      %v3573 = vsel %vm257, %v2260, %v2605
      %v3574 = vsel %vm257, %v2261, %v2607
      %v3575 = vsel %vm257, %v2262, %v2609
      %v3576 = vsel %vm257, %v2263, %v2611
      %v3577 = vsel %vm257, %v2264, %v2613
      %v3578 = vsel %vm257, %v2265, %v2615
      %v3579 = vsel %vm257, %v2266, %v2617
      %v3580 = vsel %vm257, %v2267, %v2619
      %v3581 = vsel %vm257, %v2268, %v2621
      %v3582 = vsel %vm1677, %v3550, %v2687
      %v3583 = vsel %vm1677, %v3551, %v2689
      %v3584 = vsel %vm1677, %v3552, %v2691
      %v3585 = vsel %vm1677, %v3553, %v2693
      %v3586 = vsel %vm1677, %v3554, %v2695
      %v3587 = vsel %vm1677, %v3555, %v2697
      %v3588 = vsel %vm1677, %v3556, %v2699
      %v3589 = vsel %vm1677, %v3557, %v2701
      %v3590 = vsel %vm1677, %v3558, %v2703
      %v3591 = vsel %vm1677, %v3559, %v2705
      %v3592 = vsel %vm1677, %v3560, %v2707
      %v3593 = vsel %vm1677, %v3561, %v2709
      %v3594 = vsel %vm1677, %v3562, %v2711
      %v3595 = vsel %vm1677, %v3563, %v2713
      %v3596 = vsel %vm1677, %v3564, %v2715
      %v3597 = vsel %vm1677, %v3565, %v2717
      %v3598 = vsel %vm1677, %v3566, %v2719
      %v3599 = vsel %vm1677, %v3567, %v2721
      %v3600 = vsel %vm1677, %v3568, %v2723
      %v3601 = vsel %vm1677, %v3569, %v2725
      %v3602 = vsel %vm1677, %v3570, %v2727
      %v3603 = vsel %vm1677, %v3571, %v2729
      %v3604 = vsel %vm1677, %v3572, %v2731
      %v3605 = vsel %vm1677, %v3573, %v2733
      %v3606 = vsel %vm1677, %v3574, %v2735
      %v3607 = vsel %vm1677, %v3575, %v2737
      %v3608 = vsel %vm1677, %v3576, %v2739
      %v3609 = vsel %vm1677, %v3577, %v2741
      %v3610 = vsel %vm1677, %v3578, %v2743
      %v3611 = vsel %vm1677, %v3579, %v2745
      %v3612 = vsel %vm1677, %v3580, %v2747
      %v3613 = vsel %vm1677, %v3581, %v2749
      %v3614 = vsel %vm1710, %v3582, %v2815
      %v3615 = vsel %vm1710, %v3583, %v2817
      %v3616 = vsel %vm1710, %v3584, %v2819
      %v3617 = vsel %vm1710, %v3585, %v2821
      %v3618 = vsel %vm1710, %v3586, %v2823
      %v3619 = vsel %vm1710, %v3587, %v2825
      %v3620 = vsel %vm1710, %v3588, %v2827
      %v3621 = vsel %vm1710, %v3589, %v2829
      %v3622 = vsel %vm1710, %v3590, %v2831
      %v3623 = vsel %vm1710, %v3591, %v2833
      %v3624 = vsel %vm1710, %v3592, %v2835
      %v3625 = vsel %vm1710, %v3593, %v2837
      %v3626 = vsel %vm1710, %v3594, %v2839
      %v3627 = vsel %vm1710, %v3595, %v2841
      %v3628 = vsel %vm1710, %v3596, %v2843
      %v3629 = vsel %vm1710, %v3597, %v2845
      %v3630 = vsel %vm1710, %v3598, %v2847
      %v3631 = vsel %vm1710, %v3599, %v2849
      %v3632 = vsel %vm1710, %v3600, %v2851
      %v3633 = vsel %vm1710, %v3601, %v2853
      %v3634 = vsel %vm1710, %v3602, %v2855
      %v3635 = vsel %vm1710, %v3603, %v2857
      %v3636 = vsel %vm1710, %v3604, %v2859
      %v3637 = vsel %vm1710, %v3605, %v2861
      %v3638 = vsel %vm1710, %v3606, %v2863
      %v3639 = vsel %vm1710, %v3607, %v2865
      %v3640 = vsel %vm1710, %v3608, %v2867
      %v3641 = vsel %vm1710, %v3609, %v2869
      %v3642 = vsel %vm1710, %v3610, %v2871
      %v3643 = vsel %vm1710, %v3611, %v2873
      %v3644 = vsel %vm1710, %v3612, %v2875
      %v3645 = vsel %vm1710, %v3613, %v2877
      %v3646 = vsel %vm1743, %v3614, %v2943
      %v3647 = vsel %vm1743, %v3615, %v2945
      %v3648 = vsel %vm1743, %v3616, %v2947
      %v3649 = vsel %vm1743, %v3617, %v2949
      %v3650 = vsel %vm1743, %v3618, %v2951
      %v3651 = vsel %vm1743, %v3619, %v2953
      %v3652 = vsel %vm1743, %v3620, %v2955
      %v3653 = vsel %vm1743, %v3621, %v2957
      %v3654 = vsel %vm1743, %v3622, %v2959
      %v3655 = vsel %vm1743, %v3623, %v2961
      %v3656 = vsel %vm1743, %v3624, %v2963
      %v3657 = vsel %vm1743, %v3625, %v2965
      %v3658 = vsel %vm1743, %v3626, %v2967
      %v3659 = vsel %vm1743, %v3627, %v2969
      %v3660 = vsel %vm1743, %v3628, %v2971
      %v3661 = vsel %vm1743, %v3629, %v2973
      %v3662 = vsel %vm1743, %v3630, %v2975
      %v3663 = vsel %vm1743, %v3631, %v2977
      %v3664 = vsel %vm1743, %v3632, %v2979
      %v3665 = vsel %vm1743, %v3633, %v2981
      %v3666 = vsel %vm1743, %v3634, %v2983
      %v3667 = vsel %vm1743, %v3635, %v2985
      %v3668 = vsel %vm1743, %v3636, %v2987
      %v3669 = vsel %vm1743, %v3637, %v2989
      %v3670 = vsel %vm1743, %v3638, %v2991
      %v3671 = vsel %vm1743, %v3639, %v2993
      %v3672 = vsel %vm1743, %v3640, %v2995
      %v3673 = vsel %vm1743, %v3641, %v2997
      %v3674 = vsel %vm1743, %v3642, %v2999
      %v3675 = vsel %vm1743, %v3643, %v3001
      %v3676 = vsel %vm1743, %v3644, %v3003
      %v3677 = vsel %vm1743, %v3645, %v3005
      %v3678 = vsel %vm1776, %v3646, %v3071
      %v3679 = vsel %vm1776, %v3647, %v3073
      %v3680 = vsel %vm1776, %v3648, %v3075
      %v3681 = vsel %vm1776, %v3649, %v3077
      %v3682 = vsel %vm1776, %v3650, %v3079
      %v3683 = vsel %vm1776, %v3651, %v3081
      %v3684 = vsel %vm1776, %v3652, %v3083
      %v3685 = vsel %vm1776, %v3653, %v3085
      %v3686 = vsel %vm1776, %v3654, %v3087
      %v3687 = vsel %vm1776, %v3655, %v3089
      %v3688 = vsel %vm1776, %v3656, %v3091
      %v3689 = vsel %vm1776, %v3657, %v3093
      %v3690 = vsel %vm1776, %v3658, %v3095
      %v3691 = vsel %vm1776, %v3659, %v3097
      %v3692 = vsel %vm1776, %v3660, %v3099
      %v3693 = vsel %vm1776, %v3661, %v3101
      %v3694 = vsel %vm1776, %v3662, %v3103
      %v3695 = vsel %vm1776, %v3663, %v3105
      %v3696 = vsel %vm1776, %v3664, %v3107
      %v3697 = vsel %vm1776, %v3665, %v3109
      %v3698 = vsel %vm1776, %v3666, %v3111
      %v3699 = vsel %vm1776, %v3667, %v3113
      %v3700 = vsel %vm1776, %v3668, %v3115
      %v3701 = vsel %vm1776, %v3669, %v3117
      %v3702 = vsel %vm1776, %v3670, %v3119
      %v3703 = vsel %vm1776, %v3671, %v3121
      %v3704 = vsel %vm1776, %v3672, %v3123
      %v3705 = vsel %vm1776, %v3673, %v3125
      %v3706 = vsel %vm1776, %v3674, %v3127
      %v3707 = vsel %vm1776, %v3675, %v3129
      %v3708 = vsel %vm1776, %v3676, %v3131
      %v3709 = vsel %vm1776, %v3677, %v3133
      %v3710 = vsel %vm1809, %v3678, %v3199
      %v3711 = vsel %vm1809, %v3679, %v3201
      %v3712 = vsel %vm1809, %v3680, %v3203
      %v3713 = vsel %vm1809, %v3681, %v3205
      %v3714 = vsel %vm1809, %v3682, %v3207
      %v3715 = vsel %vm1809, %v3683, %v3209
      %v3716 = vsel %vm1809, %v3684, %v3211
      %v3717 = vsel %vm1809, %v3685, %v3213
      %v3718 = vsel %vm1809, %v3686, %v3215
      %v3719 = vsel %vm1809, %v3687, %v3217
      %v3720 = vsel %vm1809, %v3688, %v3219
      %v3721 = vsel %vm1809, %v3689, %v3221
      %v3722 = vsel %vm1809, %v3690, %v3223
      %v3723 = vsel %vm1809, %v3691, %v3225
      %v3724 = vsel %vm1809, %v3692, %v3227
      %v3725 = vsel %vm1809, %v3693, %v3229
      %v3726 = vsel %vm1809, %v3694, %v3231
      %v3727 = vsel %vm1809, %v3695, %v3233
      %v3728 = vsel %vm1809, %v3696, %v3235
      %v3729 = vsel %vm1809, %v3697, %v3237
      %v3730 = vsel %vm1809, %v3698, %v3239
      %v3731 = vsel %vm1809, %v3699, %v3241
      %v3732 = vsel %vm1809, %v3700, %v3243
      %v3733 = vsel %vm1809, %v3701, %v3245
      %v3734 = vsel %vm1809, %v3702, %v3247
      %v3735 = vsel %vm1809, %v3703, %v3249
      %v3736 = vsel %vm1809, %v3704, %v3251
      %v3737 = vsel %vm1809, %v3705, %v3253
      %v3738 = vsel %vm1809, %v3706, %v3255
      %v3739 = vsel %vm1809, %v3707, %v3257
      %v3740 = vsel %vm1809, %v3708, %v3259
      %v3741 = vsel %vm1809, %v3709, %v3261
      %v3742 = vsel %vm1842, %v3710, %v3327
      %v3743 = vsel %vm1842, %v3711, %v3329
      %v3744 = vsel %vm1842, %v3712, %v3331
      %v3745 = vsel %vm1842, %v3713, %v3333
      %v3746 = vsel %vm1842, %v3714, %v3335
      %v3747 = vsel %vm1842, %v3715, %v3337
      %v3748 = vsel %vm1842, %v3716, %v3339
      %v3749 = vsel %vm1842, %v3717, %v3341
      %v3750 = vsel %vm1842, %v3718, %v3343
      %v3751 = vsel %vm1842, %v3719, %v3345
      %v3752 = vsel %vm1842, %v3720, %v3347
      %v3753 = vsel %vm1842, %v3721, %v3349
      %v3754 = vsel %vm1842, %v3722, %v3351
      %v3755 = vsel %vm1842, %v3723, %v3353
      %v3756 = vsel %vm1842, %v3724, %v3355
      %v3757 = vsel %vm1842, %v3725, %v3357
      %v3758 = vsel %vm1842, %v3726, %v3359
      %v3759 = vsel %vm1842, %v3727, %v3361
      %v3760 = vsel %vm1842, %v3728, %v3363
      %v3761 = vsel %vm1842, %v3729, %v3365
      %v3762 = vsel %vm1842, %v3730, %v3367
      %v3763 = vsel %vm1842, %v3731, %v3369
      %v3764 = vsel %vm1842, %v3732, %v3371
      %v3765 = vsel %vm1842, %v3733, %v3373
      %v3766 = vsel %vm1842, %v3734, %v3375
      %v3767 = vsel %vm1842, %v3735, %v3377
      %v3768 = vsel %vm1842, %v3736, %v3379
      %v3769 = vsel %vm1842, %v3737, %v3381
      %v3770 = vsel %vm1842, %v3738, %v3383
      %v3771 = vsel %vm1842, %v3739, %v3385
      %v3772 = vsel %vm1842, %v3740, %v3387
      %v3773 = vsel %vm1842, %v3741, %v3389
      %v3774 = vsel %vm1875, %v3742, %v3455
      %v3775 = vsel %vm1875, %v3743, %v3457
      %v3776 = vsel %vm1875, %v3744, %v3459
      %v3777 = vsel %vm1875, %v3745, %v3461
      %v3778 = vsel %vm1875, %v3746, %v3463
      %v3779 = vsel %vm1875, %v3747, %v3465
      %v3780 = vsel %vm1875, %v3748, %v3467
      %v3781 = vsel %vm1875, %v3749, %v3469
      %v3782 = vsel %vm1875, %v3750, %v3471
      %v3783 = vsel %vm1875, %v3751, %v3473
      %v3784 = vsel %vm1875, %v3752, %v3475
      %v3785 = vsel %vm1875, %v3753, %v3477
      %v3786 = vsel %vm1875, %v3754, %v3479
      %v3787 = vsel %vm1875, %v3755, %v3481
      %v3788 = vsel %vm1875, %v3756, %v3483
      %v3789 = vsel %vm1875, %v3757, %v3485
      %v3790 = vsel %vm1875, %v3758, %v3487
      %v3791 = vsel %vm1875, %v3759, %v3489
      %v3792 = vsel %vm1875, %v3760, %v3491
      %v3793 = vsel %vm1875, %v3761, %v3493
      %v3794 = vsel %vm1875, %v3762, %v3495
      %v3795 = vsel %vm1875, %v3763, %v3497
      %v3796 = vsel %vm1875, %v3764, %v3499
      %v3797 = vsel %vm1875, %v3765, %v3501
      %v3798 = vsel %vm1875, %v3766, %v3503
      %v3799 = vsel %vm1875, %v3767, %v3505
      %v3800 = vsel %vm1875, %v3768, %v3507
      %v3801 = vsel %vm1875, %v3769, %v3509
      %v3802 = vsel %vm1875, %v3770, %v3511
      %v3803 = vsel %vm1875, %v3771, %v3513
      %v3804 = vsel %vm1875, %v3772, %v3515
      %v3805 = vsel %vm1875, %v3773, %v3517
      %v3806 = vld [vmem:[%s3] sm:$0xff]
      %v3807 = vld [vmem:[%s3 + $0x8] sm:$0xff]
      %v3808 = vld [vmem:[%s3 + $0x10] sm:$0xff]
      %v3809 = vld [vmem:[%s3 + $0x18] sm:$0xff]
      %v3810 = vld [vmem:[%s3 + $0x20] sm:$0xf]
      %v3811 = vld [vmem:[%s4] sm:$0x1]
      %v3813 = vperm.slane %v3811, 0
      %v3816 = vsel %vm1917, %v3774, 0
      %v3819 = vsel %vm1917, %v3775, 0
      %v3822 = vsel %vm1917, %v3776, 0
      %v3825 = vsel %vm1917, %v3777, 0
      %v3828 = vsel %vm1917, %v3778, 0
      %v3831 = vsel %vm1917, %v3779, 0
      %v3834 = vsel %vm1917, %v3780, 0
      %v3837 = vsel %vm1917, %v3781, 0
      %v3840 = vsel %vm1917, %v3782, 0
      %v3843 = vsel %vm1917, %v3783, 0
      %v3846 = vsel %vm1917, %v3784, 0
      %v3849 = vsel %vm1917, %v3785, 0
      %v3852 = vsel %vm1917, %v3786, 0
      %v3855 = vsel %vm1917, %v3787, 0
      %v3858 = vsel %vm1917, %v3788, 0
      %v3861 = vsel %vm1917, %v3789, 0
      %v3864 = vsel %vm1917, %v3790, 0
      %v3867 = vsel %vm1917, %v3791, 0
      %v3870 = vsel %vm1917, %v3792, 0
      %v3873 = vsel %vm1917, %v3793, 0
      %v3876 = vsel %vm1917, %v3794, 0
      %v3879 = vsel %vm1917, %v3795, 0
      %v3882 = vsel %vm1917, %v3796, 0
      %v3885 = vsel %vm1917, %v3797, 0
      %v3888 = vsel %vm1917, %v3798, 0
      %v3891 = vsel %vm1917, %v3799, 0
      %v3894 = vsel %vm1917, %v3800, 0
      %v3897 = vsel %vm1917, %v3801, 0
      %v3900 = vsel %vm1917, %v3802, 0
      %v3903 = vsel %vm1917, %v3803, 0
      %v3906 = vsel %vm1917, %v3804, 0
      %v3909 = vsel %vm1917, %v3805, 0
      %v3912 = vsel %vm2014, %v3810, 0
      %3914 = vmatpush.msra.mxu0 0.0
      %3915 = vmatpush.msra.mxu0 0.0
      %3916 = vmatpush.msra.mxu0 0.0
      %3917 = vmatpush.msra.mxu0 0.0
      %3918 = vmatpush.msra.mxu0 0.0
      %3919 = vmatpush.msra.mxu0 0.0
      %3920 = vmatpush.msra.mxu0 0.0
      %3921 = vmatpush.msra.mxu0 0.0
      %3922 = vmatpush.msra.mxu0 0.0
      %3923 = vmatpush.msra.mxu0 0.0
      %3924 = vmatpush.msra.mxu0 0.0
      %3925 = vmatpush.msra.mxu0 %v3912
      %3926 = vmatpush.msra.mxu0 %v3809
      %3927 = vmatpush.msra.mxu0 %v3808
      %3928 = vmatpush.msra.mxu0 %v3807
      %3929 = vmatpush.msra.mxu0 %v3806
      %3930 = vmatmul.f32.gmra.mxu0 %v3816
      %v3931 = vpop.f32.mrf.mxu0
      %v3932 = vadd.f32 %v3813, %v3931
      %3933 = vmatmul.f32.gmra.mxu0 %v3819
      %v3934 = vpop.f32.mrf.mxu0
      %v3935 = vadd.f32 %v3813, %v3934
      %3936 = vmatmul.f32.gmra.mxu0 %v3822
      %v3937 = vpop.f32.mrf.mxu0
      %v3938 = vadd.f32 %v3813, %v3937
      %3939 = vmatmul.f32.gmra.mxu0 %v3825
      %v3940 = vpop.f32.mrf.mxu0
      %v3941 = vadd.f32 %v3813, %v3940
      %3942 = vmatmul.f32.gmra.mxu0 %v3828
      %v3943 = vpop.f32.mrf.mxu0
      %v3944 = vadd.f32 %v3813, %v3943
      %3945 = vmatmul.f32.gmra.mxu0 %v3831
      %v3946 = vpop.f32.mrf.mxu0
      %v3947 = vadd.f32 %v3813, %v3946
      %3948 = vmatmul.f32.gmra.mxu0 %v3834
      %v3949 = vpop.f32.mrf.mxu0
      %v3950 = vadd.f32 %v3813, %v3949
      %3951 = vmatmul.f32.gmra.mxu0 %v3837
      %v3952 = vpop.f32.mrf.mxu0
      %v3953 = vadd.f32 %v3813, %v3952
      %3954 = vmatmul.f32.gmra.mxu0 %v3840
      %v3955 = vpop.f32.mrf.mxu0
      %v3956 = vadd.f32 %v3813, %v3955
      %3957 = vmatmul.f32.gmra.mxu0 %v3843
      %v3958 = vpop.f32.mrf.mxu0
      %v3959 = vadd.f32 %v3813, %v3958
      %3960 = vmatmul.f32.gmra.mxu0 %v3846
      %v3961 = vpop.f32.mrf.mxu0
      %v3962 = vadd.f32 %v3813, %v3961
      %3963 = vmatmul.f32.gmra.mxu0 %v3849
      %v3964 = vpop.f32.mrf.mxu0
      %v3965 = vadd.f32 %v3813, %v3964
      %3966 = vmatmul.f32.gmra.mxu0 %v3852
      %v3967 = vpop.f32.mrf.mxu0
      %v3968 = vadd.f32 %v3813, %v3967
      %3969 = vmatmul.f32.gmra.mxu0 %v3855
      %v3970 = vpop.f32.mrf.mxu0
      %v3971 = vadd.f32 %v3813, %v3970
      %3972 = vmatmul.f32.gmra.mxu0 %v3858
      %v3973 = vpop.f32.mrf.mxu0
      %v3974 = vadd.f32 %v3813, %v3973
      %3975 = vmatmul.f32.gmra.mxu0 %v3861
      %v3976 = vpop.f32.mrf.mxu0
      %v3977 = vadd.f32 %v3813, %v3976
      %3978 = vmatmul.f32.gmra.mxu0 %v3864
      %v3979 = vpop.f32.mrf.mxu0
      %v3980 = vadd.f32 %v3813, %v3979
      %3981 = vmatmul.f32.gmra.mxu0 %v3867
      %v3982 = vpop.f32.mrf.mxu0
      %v3983 = vadd.f32 %v3813, %v3982
      %3984 = vmatmul.f32.gmra.mxu0 %v3870
      %v3985 = vpop.f32.mrf.mxu0
      %v3986 = vadd.f32 %v3813, %v3985
      %3987 = vmatmul.f32.gmra.mxu0 %v3873
      %v3988 = vpop.f32.mrf.mxu0
      %v3989 = vadd.f32 %v3813, %v3988
      %3990 = vmatmul.f32.gmra.mxu0 %v3876
      %v3991 = vpop.f32.mrf.mxu0
      %v3992 = vadd.f32 %v3813, %v3991
      %3993 = vmatmul.f32.gmra.mxu0 %v3879
      %v3994 = vpop.f32.mrf.mxu0
      %v3995 = vadd.f32 %v3813, %v3994
      %3996 = vmatmul.f32.gmra.mxu0 %v3882
      %v3997 = vpop.f32.mrf.mxu0
      %v3998 = vadd.f32 %v3813, %v3997
      %3999 = vmatmul.f32.gmra.mxu0 %v3885
      %v4000 = vpop.f32.mrf.mxu0
      %v4001 = vadd.f32 %v3813, %v4000
      %4002 = vmatmul.f32.gmra.mxu0 %v3888
      %v4003 = vpop.f32.mrf.mxu0
      %v4004 = vadd.f32 %v3813, %v4003
      %4005 = vmatmul.f32.gmra.mxu0 %v3891
      %v4006 = vpop.f32.mrf.mxu0
      %v4007 = vadd.f32 %v3813, %v4006
      %4008 = vmatmul.f32.gmra.mxu0 %v3894
      %v4009 = vpop.f32.mrf.mxu0
      %v4010 = vadd.f32 %v3813, %v4009
      %4011 = vmatmul.f32.gmra.mxu0 %v3897
      %v4012 = vpop.f32.mrf.mxu0
      %v4013 = vadd.f32 %v3813, %v4012
      %4014 = vmatmul.f32.gmra.mxu0 %v3900
      %v4015 = vpop.f32.mrf.mxu0
      %v4016 = vadd.f32 %v3813, %v4015
      %4017 = vmatmul.f32.gmra.mxu0 %v3903
      %v4018 = vpop.f32.mrf.mxu0
      %v4019 = vadd.f32 %v3813, %v4018
      %4020 = vmatmul.f32.gmra.mxu0 %v3906
      %v4021 = vpop.f32.mrf.mxu0
      %v4022 = vadd.f32 %v3813, %v4021
      %4023 = vmatmul.f32.gmra.mxu0 %v3909
      %v4024 = vpop.f32.mrf.mxu0
      %v4025 = vadd.f32 %v3813, %v4024
      %4026 = vdwg.mxu0
      %v4027 = vadd.f32 %v3932, %v225
      %v4028 = vadd.f32 %v3935, %v226
      %v4029 = vadd.f32 %v3938, %v227
      %v4030 = vadd.f32 %v3941, %v228
      %v4031 = vadd.f32 %v3944, %v229
      %v4032 = vadd.f32 %v3947, %v230
      %v4033 = vadd.f32 %v3950, %v231
      %v4034 = vadd.f32 %v3953, %v232
      %v4035 = vadd.f32 %v3956, %v233
      %v4036 = vadd.f32 %v3959, %v234
      %v4037 = vadd.f32 %v3962, %v235
      %v4038 = vadd.f32 %v3965, %v236
      %v4039 = vadd.f32 %v3968, %v237
      %v4040 = vadd.f32 %v3971, %v238
      %v4041 = vadd.f32 %v3974, %v239
      %v4042 = vadd.f32 %v3977, %v240
      %v4043 = vadd.f32 %v3980, %v241
      %v4044 = vadd.f32 %v3983, %v242
      %v4045 = vadd.f32 %v3986, %v243
      %v4046 = vadd.f32 %v3989, %v244
      %v4047 = vadd.f32 %v3992, %v245
      %v4048 = vadd.f32 %v3995, %v246
      %v4049 = vadd.f32 %v3998, %v247
      %v4050 = vadd.f32 %v4001, %v248
      %v4051 = vadd.f32 %v4004, %v249
      %v4052 = vadd.f32 %v4007, %v250
      %v4053 = vadd.f32 %v4010, %v251
      %v4054 = vadd.f32 %v4013, %v252
      %v4055 = vadd.f32 %v4016, %v253
      %v4056 = vadd.f32 %v4019, %v254
      %v4057 = vadd.f32 %v4022, %v255
      %v4058 = vadd.f32 %v4025, %v256
      %v4059 = vmax.f32 %v4027, 0.0
      %v4060 = vmax.f32 %v4028, 0.0
      %v4061 = vmax.f32 %v4029, 0.0
      %v4062 = vmax.f32 %v4030, 0.0
      %v4063 = vmax.f32 %v4031, 0.0
      %v4064 = vmax.f32 %v4032, 0.0
      %v4065 = vmax.f32 %v4033, 0.0
      %v4066 = vmax.f32 %v4034, 0.0
      %v4067 = vmax.f32 %v4035, 0.0
      %v4068 = vmax.f32 %v4036, 0.0
      %v4069 = vmax.f32 %v4037, 0.0
      %v4070 = vmax.f32 %v4038, 0.0
      %v4071 = vmax.f32 %v4039, 0.0
      %v4072 = vmax.f32 %v4040, 0.0
      %v4073 = vmax.f32 %v4041, 0.0
      %v4074 = vmax.f32 %v4042, 0.0
      %v4075 = vmax.f32 %v4043, 0.0
      %v4076 = vmax.f32 %v4044, 0.0
      %v4077 = vmax.f32 %v4045, 0.0
      %v4078 = vmax.f32 %v4046, 0.0
      %v4079 = vmax.f32 %v4047, 0.0
      %v4080 = vmax.f32 %v4048, 0.0
      %v4081 = vmax.f32 %v4049, 0.0
      %v4082 = vmax.f32 %v4050, 0.0
      %v4083 = vmax.f32 %v4051, 0.0
      %v4084 = vmax.f32 %v4052, 0.0
      %v4085 = vmax.f32 %v4053, 0.0
      %v4086 = vmax.f32 %v4054, 0.0
      %v4087 = vmax.f32 %v4055, 0.0
      %v4088 = vmax.f32 %v4056, 0.0
      %v4089 = vmax.f32 %v4057, 0.0
      %v4090 = vmax.f32 %v4058, 0.0
      %4091 = vst.msk [vmem:[%s224] sm:$0xff] %vm257, %v4059
      %4092 = vst.msk [vmem:[%s224 + $0x8] sm:$0xff] %vm257, %v4060
      %4093 = vst.msk [vmem:[%s224 + $0x10] sm:$0xff] %vm257, %v4061
      %4094 = vst.msk [vmem:[%s224 + $0x18] sm:$0xff] %vm257, %v4062
      %4095 = vst.msk [vmem:[%s224 + $0x20] sm:$0xff] %vm257, %v4063
      %4096 = vst.msk [vmem:[%s224 + $0x28] sm:$0xff] %vm257, %v4064
      %4097 = vst.msk [vmem:[%s224 + $0x30] sm:$0xff] %vm257, %v4065
      %4098 = vst.msk [vmem:[%s224 + $0x38] sm:$0xff] %vm257, %v4066
      %4099 = vst.msk [vmem:[%s224 + $0x40] sm:$0xff] %vm257, %v4067
      %4100 = vst.msk [vmem:[%s224 + $0x48] sm:$0xff] %vm257, %v4068
      %4101 = vst.msk [vmem:[%s224 + $0x50] sm:$0xff] %vm257, %v4069
      %4102 = vst.msk [vmem:[%s224 + $0x58] sm:$0xff] %vm257, %v4070
      %4103 = vst.msk [vmem:[%s224 + $0x60] sm:$0xff] %vm257, %v4071
      %4104 = vst.msk [vmem:[%s224 + $0x68] sm:$0xff] %vm257, %v4072
      %4105 = vst.msk [vmem:[%s224 + $0x70] sm:$0xff] %vm257, %v4073
      %4106 = vst.msk [vmem:[%s224 + $0x78] sm:$0xff] %vm257, %v4074
      %4107 = vst.msk [vmem:[%s224 + $0x80] sm:$0xff] %vm257, %v4075
      %4108 = vst.msk [vmem:[%s224 + $0x88] sm:$0xff] %vm257, %v4076
      %4109 = vst.msk [vmem:[%s224 + $0x90] sm:$0xff] %vm257, %v4077
      %4110 = vst.msk [vmem:[%s224 + $0x98] sm:$0xff] %vm257, %v4078
      %4111 = vst.msk [vmem:[%s224 + $0xa0] sm:$0xff] %vm257, %v4079
      %4112 = vst.msk [vmem:[%s224 + $0xa8] sm:$0xff] %vm257, %v4080
      %4113 = vst.msk [vmem:[%s224 + $0xb0] sm:$0xff] %vm257, %v4081
      %4114 = vst.msk [vmem:[%s224 + $0xb8] sm:$0xff] %vm257, %v4082
      %4115 = vst.msk [vmem:[%s224 + $0xc0] sm:$0xff] %vm257, %v4083
      %4116 = vst.msk [vmem:[%s224 + $0xc8] sm:$0xff] %vm257, %v4084
      %4117 = vst.msk [vmem:[%s224 + $0xd0] sm:$0xff] %vm257, %v4085
      %4118 = vst.msk [vmem:[%s224 + $0xd8] sm:$0xff] %vm257, %v4086
      %4119 = vst.msk [vmem:[%s224 + $0xe0] sm:$0xff] %vm257, %v4087
      %4120 = vst.msk [vmem:[%s224 + $0xe8] sm:$0xff] %vm257, %v4088
      %4121 = vst.msk [vmem:[%s224 + $0xf0] sm:$0xff] %vm257, %v4089
      %4122 = vst.msk [vmem:[%s224 + $0xf8] sm:$0xff] %vm257, %v4090
      %p4123 = scmp.lt.s32.totalorder %s16, 1
      %s4124 = scalar_select %p4123, %s16, 1
      %s4125 = smul.addr %s4124, 32
      %s4126 = smul.addr %s4125, 8
      %s4127 = scalar_lea.vmem %s5, %s4126
      // Predicated region
      $region41: #{tpu_custom_call.1} parent=39 // pred_check
        %p4128 = pneg %p144
      $region42: #{tpu_custom_call.1} parent=39 // pred_check_branch
        %4130 = sbr.rel (%p4128) target = $region44
      $region43: #{tpu_custom_call.1} parent=39 // pred_region
        _
      $region44: #{tpu_custom_call.1} parent=39 // pred_fallthru
        _
    $region40: #{tpu_custom_call.1} parent=5 // pred_fallthru
      _
    %p4131 = scmp.le.s32.totalorder 2, %s11
    // Predicated region
    $region45: #{tpu_custom_call.1} parent=5 // pred_check
      %p4132 = pneg %p4131
    $region46: #{tpu_custom_call.1} parent=5 // pred_check_branch
      %4134 = sbr.rel (%p4132) target = $region48
    $region47: #{tpu_custom_call.1} parent=5 // pred_region
      %s4135 = ssub.s32 %s11, 2
      // Predicated region
      $region49: #{tpu_custom_call.1} parent=47 // pred_check
        %p4136 = pneg %p150
      $region50: #{tpu_custom_call.1} parent=47 // pred_check_branch
        %4138 = sbr.rel (%p4136) target = $region52
      $region51: #{tpu_custom_call.1} parent=47 // pred_region
        %p4139 = scmp.lt.s32.totalorder %s17, 1
        %s4140 = scalar_select %p4139, %s17, 1
        %s4141 = smul.addr %s4140, 32
        %s4142 = smul.addr %s4141, 8
        %s4143 = scalar_lea.vmem %s5, %s4142
      $region52: #{tpu_custom_call.1} parent=47 // pred_fallthru
        _
    $region48: #{tpu_custom_call.1} parent=5 // pred_fallthru
      _
  $region6: #{tpu_custom_call.1} parent=0 // loop_footer
    %s15 = sadd.s32 1, %s11
  $region7: #{tpu_custom_call.1} parent=0 // loop_footer_branch
    %10 = sbr.rel target = $region3
  $region8: #{tpu_custom_call.1} parent=0 // loop_exit
    _

</llo_original>
